<compile_context>
chip_gen: v7x
topology: tpu7x:2x2x1
jax: 0.10.0
libtpu: 0.0.40
codegen_flags: <defaults>
</compile_context>

<pallas_src>
import functools

import jax
import jax.numpy as jnp
from jax.experimental import pallas as pl
from jax.experimental.pallas import tpu as pltpu


def _round_up(n, m):
    return ((n + m - 1) // m) * m


# ----------------------------------------------------------------------------
# Fused Pallas kernel: all LSTM layers + FC head, whole sequence resident.
# ----------------------------------------------------------------------------
def _make_generator_kernel(num_layers, seq_len, hidden_size):
    T = seq_len
    H = hidden_size

    def kernel(*args):
        # ---- unpack refs: inputs, outputs, scratch --------------------------
        x_ref, h0_ref, c0_ref = args[0], args[1], args[2]
        wih_refs = [args[3 + 3 * l] for l in range(num_layers)]   # (Din_l, 4H)
        whh_refs = [args[4 + 3 * l] for l in range(num_layers)]   # (H, 4H)
        b_refs = [args[5 + 3 * l] for l in range(num_layers)]     # (1, 4H) f32
        base = 3 + 3 * num_layers
        wfc_ref, bfc_ref = args[base], args[base + 1]             # (H, Cp), (1, Cp)
        out_ref, hT_ref, cT_ref = args[base + 2], args[base + 3], args[base + 4]
        ybuf = [args[base + 5], args[base + 6]]                   # (T, Bp, H) f32 scratch

        Bp = x_ref.shape[1]
        cdt = wfc_ref.dtype    # compute dtype for MXU inputs (f32 or bf16)

        # Layer-0 input, flattened to (T*Bp, Din) — leading-dim collapse is free.
        inp2d = x_ref[...].reshape(T * Bp, x_ref.shape[-1])

        for l in range(num_layers):
            # Hoist weight / bias loads out of the time loop.
            wih = wih_refs[l][...]
            whh = whh_refs[l][...]
            b = b_refs[l][...]

            # Input projection for ALL timesteps in one MXU call (+ bias once).
            xg = jnp.dot(inp2d.astype(cdt), wih,
                         preferred_element_type=jnp.float32) + b
            xg = xg.reshape(T, Bp, 4 * H)

            h_l = h0_ref[l]            # (Bp, H) f32 state, carried in vregs
            c_l = c0_ref[l]
            dst = ybuf[l % 2]          # ping-pong inter-layer activation buffer

            # Statically unrolled time loop: only the recurrent matmul remains
            # on the per-step critical path.
            for t in range(T):
                gates = xg[t] + jnp.dot(h_l.astype(cdt), whh,
                                        preferred_element_type=jnp.float32)
                # PyTorch LSTM gate order: i, f, g, o.  i/f are lane-contiguous
                # so one sigmoid covers both (2H lanes); each slice is a whole
                # 128-lane tile with H=128 (no masked lane selects).
                if_g = jax.nn.sigmoid(gates[:, 0:2 * H])
                i_g = if_g[:, 0:H]
                f_g = if_g[:, H:2 * H]
                g_g = jnp.tanh(gates[:, 2 * H:3 * H])
                o_g = jax.nn.sigmoid(gates[:, 3 * H:4 * H])
                c_l = f_g * c_l + i_g * g_g
                h_l = o_g * jnp.tanh(c_l)
                dst[t] = h_l           # (Bp, H) full-tile store

            hT_ref[l] = h_l            # final states written once per layer
            cT_ref[l] = c_l
            inp2d = dst[...].reshape(T * Bp, H)   # next layer's input

        # FC head over all timesteps at once; Cp is a multiple of 128 so the
        # output store is lane-dense (unmasked vst).
        wfc = wfc_ref[...]
        bfc = bfc_ref[...]
        out = jnp.dot(inp2d.astype(cdt), wfc,
                      preferred_element_type=jnp.float32) + bfc
        out_ref[...] = out.reshape(T, Bp, out_ref.shape[-1])

    return kernel


def _generator_pallas_call(x_p, h0_p, c0_p, wih_list, whh_list, bias_list, wfc, bfc):
    T, Bp, _ = x_p.shape
    L, _, H = h0_p.shape
    Cp = wfc.shape[-1]

    kernel = _make_generator_kernel(L, T, H)
    flat_w = []
    for l in range(L):
        flat_w += [wih_list[l], whh_list[l], bias_list[l]]

    vmem = pl.BlockSpec(memory_space=pltpu.MemorySpace.VMEM)
    n_in = 3 + 3 * L + 2
    return pl.pallas_call(
        kernel,
        out_shape=(jax.ShapeDtypeStruct((T, Bp, Cp), jnp.float32),
                   jax.ShapeDtypeStruct((L, Bp, H), jnp.float32),
                   jax.ShapeDtypeStruct((L, Bp, H), jnp.float32)),
        in_specs=[vmem] * n_in,
        out_specs=(vmem, vmem, vmem),
        scratch_shapes=[pltpu.VMEM((T, Bp, H), jnp.float32),
                        pltpu.VMEM((T, Bp, H), jnp.float32)],
    )(x_p, h0_p, c0_p, *flat_w, wfc, bfc)


# ----------------------------------------------------------------------------
# Whole forward (padding + kernel + un-padding) as one jitted function so the
# layout plumbing fuses instead of dispatching op-by-op.
# ----------------------------------------------------------------------------
def _forward_impl(params, x, h0, c0, *, latent_size, hidden_size, num_classes,
                  latent_pad, compute_dtype):
    wih_list, whh_list, bias_list, wfc, bfc = params
    B, T, _ = x.shape
    H = hidden_size
    L = h0.shape[0]
    Bp = max(8, _round_up(B, 8))                     # full sublanes

    # Time-major + pad batch (sublanes) and latent dim (lanes).
    x_tm = jnp.transpose(x, (1, 0, 2)).astype(compute_dtype)
    x_p = jnp.zeros((T, Bp, latent_pad), compute_dtype)
    x_p = x_p.at[:, :B, :latent_size].set(x_tm)
    h0_p = jnp.zeros((L, Bp, H), jnp.float32).at[:, :B, :].set(h0)
    c0_p = jnp.zeros((L, Bp, H), jnp.float32).at[:, :B, :].set(c0)

    out_p, hT_p, cT_p = _generator_pallas_call(
        x_p, h0_p, c0_p, wih_list, whh_list, bias_list, wfc, bfc)

    out = out_p[:, :B, :num_classes].transpose(1, 0, 2)   # (B, T, C)
    return out, (hT_p[:, :B, :], cT_p[:, :B, :])


# ----------------------------------------------------------------------------
# Generator module (parameter setup + padding glue in plain JAX)
# ----------------------------------------------------------------------------
class GeneratorPallas:
    def __init__(self, latent_size, hidden_size, num_layers, num_classes, key,
                 compute_dtype=jnp.float32):
        self.latent_size = latent_size
        self.hidden_size = hidden_size
        self.num_layers = num_layers
        self.num_classes = num_classes
        self.compute_dtype = compute_dtype

        H = hidden_size
        self.latent_pad = _round_up(latent_size, 128)   # lane-dense layer-0 input
        self.classes_pad = _round_up(num_classes, 128)  # lane-dense output store

        k = 1.0 / jnp.sqrt(jnp.float32(H))              # PyTorch LSTM/Linear init range
        keys = jax.random.split(key, 4 * num_layers + 2)

        self.wih_t, self.whh_t, self.bias = [], [], []
        self._ref_wih_t, self._ref_whh_t, self._ref_bias = [], [], []
        ki = 0
        for layer in range(num_layers):
            din = latent_size if layer == 0 else H
            din_p = self.latent_pad if layer == 0 else H
            w_ih = jax.random.uniform(keys[ki], (4 * H, din), jnp.float32, -k, k); ki += 1
            w_hh = jax.random.uniform(keys[ki], (4 * H, H), jnp.float32, -k, k);  ki += 1
            b_ih = jax.random.uniform(keys[ki], (4 * H,), jnp.float32, -k, k);    ki += 1
            b_hh = jax.random.uniform(keys[ki], (4 * H,), jnp.float32, -k, k);    ki += 1

            wih_t = w_ih.T                               # (din, 4H)
            whh_t = w_hh.T                               # (H, 4H)
            bias = (b_ih + b_hh)[None, :]                # (1, 4H)
            self._ref_wih_t.append(wih_t)
            self._ref_whh_t.append(whh_t)
            self._ref_bias.append(bias)

            # Zero-pad the input dim of layer 0 to a lane multiple; cast weights
            # to the compute dtype (bf16 on v6e/v7x), keep biases in f32.
            wih_t_p = jnp.zeros((din_p, 4 * H), jnp.float32).at[:din, :].set(wih_t)
            self.wih_t.append(wih_t_p.astype(compute_dtype))
            self.whh_t.append(whh_t.astype(compute_dtype))
            self.bias.append(bias)

        w_fc = jax.random.uniform(keys[ki], (num_classes, H), jnp.float32, -k, k); ki += 1
        b_fc = jax.random.uniform(keys[ki], (num_classes,), jnp.float32, -k, k)
        self._ref_wfc_t = w_fc.T                         # (H, C)
        self._ref_bfc = b_fc[None, :]                    # (1, C)
        wfc_t_p = jnp.zeros((H, self.classes_pad), jnp.float32)
        wfc_t_p = wfc_t_p.at[:, :num_classes].set(w_fc.T)
        bfc_p = jnp.zeros((1, self.classes_pad), jnp.float32)
        bfc_p = bfc_p.at[:, :num_classes].set(b_fc[None, :])
        self.wfc_t = wfc_t_p.astype(compute_dtype)
        self.bfc = bfc_p                                 # f32 (added post-matmul)

        self._params = (tuple(self.wih_t), tuple(self.whh_t), tuple(self.bias),
                        self.wfc_t, self.bfc)
        self._jitted_forward = jax.jit(functools.partial(
            _forward_impl,
            latent_size=latent_size, hidden_size=hidden_size,
            num_classes=num_classes, latent_pad=self.latent_pad,
            compute_dtype=compute_dtype))

    def init_hidden(self, batch_size):
        shape = (self.num_layers, batch_size, self.hidden_size)
        return (jnp.zeros(shape, jnp.float32), jnp.zeros(shape, jnp.float32))

    def __call__(self, x, h):
        """x: (B, T, latent_size) batch_first; h = (h0, c0) each (L, B, H)."""
        h0, c0 = h
        return self._jitted_forward(self._params, x, h0, c0)


# ----------------------------------------------------------------------------
# Pure-JAX reference (for correctness check only)
# ----------------------------------------------------------------------------
def _reference_forward(gen, x, h):
    h0, c0 = h
    B, T, _ = x.shape
    H = gen.hidden_size
    cur = x
    h_finals, c_finals = [], []
    for layer in range(gen.num_layers):
        hs, cs = h0[layer], c0[layer]
        ys = []
        for t in range(T):
            gates = (cur[:, t, :] @ gen._ref_wih_t[layer]
                     + hs @ gen._ref_whh_t[layer] + gen._ref_bias[layer])
            i = jax.nn.sigmoid(gates[:, 0 * H:1 * H])
            f = jax.nn.sigmoid(gates[:, 1 * H:2 * H])
            g = jnp.tanh(gates[:, 2 * H:3 * H])
            o = jax.nn.sigmoid(gates[:, 3 * H:4 * H])
            cs = f * cs + i * g
            hs = o * jnp.tanh(cs)
            ys.append(hs)
        cur = jnp.stack(ys, axis=1)
        h_finals.append(hs)
        c_finals.append(cs)
    out = cur @ gen._ref_wfc_t + gen._ref_bfc
    return out, (jnp.stack(h_finals), jnp.stack(c_finals))


# ----------------------------------------------------------------------------
if __name__ == "__main__":
    # Module-consistent shapes: hidden_size=128, latent_size=100, num_layers=2
    # (as in the spec), small batch=2, seq=8, num_classes=10.
    B, T = 2, 8
    latent_size, hidden_size, num_layers, num_classes = 100, 128, 2, 10

    key = jax.random.PRNGKey(0)
    k_param, k_x = jax.random.split(key)

    gen = GeneratorPallas(latent_size, hidden_size, num_layers, num_classes, k_param)
    x = jax.random.normal(k_x, (B, T, latent_size), jnp.float32)
    h = gen.init_hidden(B)

    out, (hT, cT) = gen(x, h)
    out = jax.block_until_ready(out)
    hT = jax.block_until_ready(hT)
    cT = jax.block_until_ready(cT)

    # Correctness vs pure-JAX reference (f32 path).
    out_ref, (hT_ref, cT_ref) = _reference_forward(gen, x, h)
    assert out.shape == (B, T, num_classes)
    assert hT.shape == (num_layers, B, hidden_size)
    assert cT.shape == (num_layers, B, hidden_size)
    assert jnp.allclose(out, out_ref, atol=1e-3, rtol=1e-3)
    assert jnp.allclose(hT, hT_ref, atol=1e-3, rtol=1e-3)
    assert jnp.allclose(cT, cT_ref, atol=1e-3, rtol=1e-3)

    # bf16 compute path (v6e/v7x MXU rate); same weights, looser tolerance.
    gen_bf16 = GeneratorPallas(latent_size, hidden_size, num_layers, num_classes,
                               k_param, compute_dtype=jnp.bfloat16)
    out_b, (hT_b, cT_b) = gen_bf16(x, h)
    out_b = jax.block_until_ready(out_b)
    assert out_b.shape == (B, T, num_classes)
    assert jnp.allclose(out_b, out_ref, atol=0.2, rtol=0.1)

    print("KERNEL_OK")
</pallas_src>

<mosaic_0001>
module attributes {stable_mosaic.version = 11 : i64} {
  func.func @kernel(%arg0: memref<8x8x128xf32, #tpu.memory_space<vmem>>, %arg1: memref<2x8x128xf32, #tpu.memory_space<vmem>>, %arg2: memref<2x8x128xf32, #tpu.memory_space<vmem>>, %arg3: memref<128x512xf32, #tpu.memory_space<vmem>>, %arg4: memref<128x512xf32, #tpu.memory_space<vmem>>, %arg5: memref<1x512xf32, #tpu.memory_space<vmem>>, %arg6: memref<128x512xf32, #tpu.memory_space<vmem>>, %arg7: memref<128x512xf32, #tpu.memory_space<vmem>>, %arg8: memref<1x512xf32, #tpu.memory_space<vmem>>, %arg9: memref<128x128xf32, #tpu.memory_space<vmem>>, %arg10: memref<1x128xf32, #tpu.memory_space<vmem>>, %arg11: memref<8x8x128xf32, #tpu.memory_space<vmem>>, %arg12: memref<2x8x128xf32, #tpu.memory_space<vmem>>, %arg13: memref<2x8x128xf32, #tpu.memory_space<vmem>>, %arg14: memref<8x8x128xf32, #tpu.memory_space<vmem>>, %arg15: memref<8x8x128xf32, #tpu.memory_space<vmem>>) attributes {dimension_semantics = [], scalar_prefetch = 0 : i64, scratch_operands = 2 : i64, tpu.core_type = #tpu.core_type<tc>} {
    %c0 = arith.constant 0 : index
    %c0_0 = arith.constant 0 : index
    %c0_1 = arith.constant 0 : index
    %0 = vector.load %arg0[%c0, %c0_0, %c0_1] : memref<8x8x128xf32, #tpu.memory_space<vmem>>, vector<8x8x128xf32>
    %1 = vector.shape_cast %0 : vector<8x8x128xf32> to vector<64x128xf32>
    %c0_2 = arith.constant 0 : index
    %c0_3 = arith.constant 0 : index
    %2 = vector.load %arg3[%c0_2, %c0_3] : memref<128x512xf32, #tpu.memory_space<vmem>>, vector<128x512xf32>
    %c0_4 = arith.constant 0 : index
    %c0_5 = arith.constant 0 : index
    %3 = vector.load %arg4[%c0_4, %c0_5] : memref<128x512xf32, #tpu.memory_space<vmem>>, vector<128x512xf32>
    %c0_6 = arith.constant 0 : index
    %c0_7 = arith.constant 0 : index
    %4 = vector.load %arg5[%c0_6, %c0_7] : memref<1x512xf32, #tpu.memory_space<vmem>>, vector<1x512xf32>
    %cst = arith.constant dense<0.000000e+00> : vector<64x512xf32>
    %5 = tpu.matmul %1, %2, %cst {dimension_numbers = #tpu.dot_dimension_numbers<[1], [0], [0], [1], [0, 0, 1, 1], [], []>} : vector<64x128xf32>, vector<128x512xf32>, vector<64x512xf32> -> vector<64x512xf32>
    %6 = vector.broadcast %4 : vector<1x512xf32> to vector<64x512xf32>
    %7 = arith.addf %5, %6 : vector<64x512xf32>
    %8 = vector.shape_cast %7 : vector<64x512xf32> to vector<8x8x512xf32>
    %c0_8 = arith.constant 0 : index
    %c0_9 = arith.constant 0 : index
    %c0_10 = arith.constant 0 : index
    %9 = vector.load %arg1[%c0_8, %c0_9, %c0_10] : memref<2x8x128xf32, #tpu.memory_space<vmem>>, vector<1x8x128xf32>
    %10 = vector.shape_cast %9 : vector<1x8x128xf32> to vector<8x128xf32>
    %c0_11 = arith.constant 0 : index
    %c0_12 = arith.constant 0 : index
    %c0_13 = arith.constant 0 : index
    %11 = vector.load %arg2[%c0_11, %c0_12, %c0_13] : memref<2x8x128xf32, #tpu.memory_space<vmem>>, vector<1x8x128xf32>
    %12 = vector.shape_cast %11 : vector<1x8x128xf32> to vector<8x128xf32>
    %13 = vector.extract_strided_slice %8 {offsets = [0, 0, 0], sizes = [1, 8, 512], strides = [1, 1, 1]} : vector<8x8x512xf32> to vector<1x8x512xf32>
    %14 = vector.shape_cast %13 : vector<1x8x512xf32> to vector<8x512xf32>
    %cst_14 = arith.constant dense<0.000000e+00> : vector<8x512xf32>
    %15 = tpu.matmul %10, %3, %cst_14 {dimension_numbers = #tpu.dot_dimension_numbers<[1], [0], [0], [1], [0, 0, 1, 1], [], []>} : vector<8x128xf32>, vector<128x512xf32>, vector<8x512xf32> -> vector<8x512xf32>
    %16 = arith.addf %14, %15 : vector<8x512xf32>
    %17 = vector.extract_strided_slice %16 {offsets = [0, 0], sizes = [8, 256], strides = [1, 1]} : vector<8x512xf32> to vector<8x256xf32>
    %18 = arith.negf %17 : vector<8x256xf32>
    %19 = math.exp %18 : vector<8x256xf32>
    %cst_15 = arith.constant 1.000000e+00 : f32
    %20 = vector.broadcast %cst_15 : f32 to vector<8x256xf32>
    %21 = arith.addf %20, %19 : vector<8x256xf32>
    %22 = arith.divf %20, %21 : vector<8x256xf32>
    %23 = vector.extract_strided_slice %22 {offsets = [0, 0], sizes = [8, 128], strides = [1, 1]} : vector<8x256xf32> to vector<8x128xf32>
    %24 = vector.extract_strided_slice %22 {offsets = [0, 128], sizes = [8, 128], strides = [1, 1]} : vector<8x256xf32> to vector<8x128xf32>
    %25 = vector.extract_strided_slice %16 {offsets = [0, 256], sizes = [8, 128], strides = [1, 1]} : vector<8x512xf32> to vector<8x128xf32>
    %26 = math.tanh %25 : vector<8x128xf32>
    %27 = vector.extract_strided_slice %16 {offsets = [0, 384], sizes = [8, 128], strides = [1, 1]} : vector<8x512xf32> to vector<8x128xf32>
    %28 = arith.negf %27 : vector<8x128xf32>
    %29 = math.exp %28 : vector<8x128xf32>
    %cst_16 = arith.constant 1.000000e+00 : f32
    %30 = vector.broadcast %cst_16 : f32 to vector<8x128xf32>
    %31 = arith.addf %30, %29 : vector<8x128xf32>
    %32 = arith.divf %30, %31 : vector<8x128xf32>
    %33 = arith.mulf %24, %12 : vector<8x128xf32>
    %34 = arith.mulf %23, %26 : vector<8x128xf32>
    %35 = arith.addf %33, %34 : vector<8x128xf32>
    %36 = math.tanh %35 : vector<8x128xf32>
    %37 = arith.mulf %32, %36 : vector<8x128xf32>
    %c0_17 = arith.constant 0 : index
    %c0_18 = arith.constant 0 : index
    %c0_19 = arith.constant 0 : index
    %38 = vector.load %arg14[%c0_17, %c0_18, %c0_19] : memref<8x8x128xf32, #tpu.memory_space<vmem>>, vector<1x8x128xf32>
    %39 = vector.shape_cast %38 : vector<1x8x128xf32> to vector<8x128xf32>
    %40 = vector.shape_cast %37 : vector<8x128xf32> to vector<1x8x128xf32>
    tpu.vector_store %arg14[%c0_17, %c0_18, %c0_19], %40 {strides = array<i32>} : memref<8x8x128xf32, #tpu.memory_space<vmem>>, vector<1x8x128xf32>,
    %41 = vector.extract_strided_slice %8 {offsets = [1, 0, 0], sizes = [1, 8, 512], strides = [1, 1, 1]} : vector<8x8x512xf32> to vector<1x8x512xf32>
    %42 = vector.shape_cast %41 : vector<1x8x512xf32> to vector<8x512xf32>
    %cst_20 = arith.constant dense<0.000000e+00> : vector<8x512xf32>
    %43 = tpu.matmul %37, %3, %cst_20 {dimension_numbers = #tpu.dot_dimension_numbers<[1], [0], [0], [1], [0, 0, 1, 1], [], []>} : vector<8x128xf32>, vector<128x512xf32>, vector<8x512xf32> -> vector<8x512xf32>
    %44 = arith.addf %42, %43 : vector<8x512xf32>
    %45 = vector.extract_strided_slice %44 {offsets = [0, 0], sizes = [8, 256], strides = [1, 1]} : vector<8x512xf32> to vector<8x256xf32>
    %46 = arith.negf %45 : vector<8x256xf32>
    %47 = math.exp %46 : vector<8x256xf32>
    %cst_21 = arith.constant 1.000000e+00 : f32
    %48 = vector.broadcast %cst_21 : f32 to vector<8x256xf32>
    %49 = arith.addf %48, %47 : vector<8x256xf32>
    %50 = arith.divf %48, %49 : vector<8x256xf32>
    %51 = vector.extract_strided_slice %50 {offsets = [0, 0], sizes = [8, 128], strides = [1, 1]} : vector<8x256xf32> to vector<8x128xf32>
    %52 = vector.extract_strided_slice %50 {offsets = [0, 128], sizes = [8, 128], strides = [1, 1]} : vector<8x256xf32> to vector<8x128xf32>
    %53 = vector.extract_strided_slice %44 {offsets = [0, 256], sizes = [8, 128], strides = [1, 1]} : vector<8x512xf32> to vector<8x128xf32>
    %54 = math.tanh %53 : vector<8x128xf32>
    %55 = vector.extract_strided_slice %44 {offsets = [0, 384], sizes = [8, 128], strides = [1, 1]} : vector<8x512xf32> to vector<8x128xf32>
    %56 = arith.negf %55 : vector<8x128xf32>
    %57 = math.exp %56 : vector<8x128xf32>
    %cst_22 = arith.constant 1.000000e+00 : f32
    %58 = vector.broadcast %cst_22 : f32 to vector<8x128xf32>
    %59 = arith.addf %58, %57 : vector<8x128xf32>
    %60 = arith.divf %58, %59 : vector<8x128xf32>
    %61 = arith.mulf %52, %35 : vector<8x128xf32>
    %62 = arith.mulf %51, %54 : vector<8x128xf32>
    %63 = arith.addf %61, %62 : vector<8x128xf32>
    %64 = math.tanh %63 : vector<8x128xf32>
    %65 = arith.mulf %60, %64 : vector<8x128xf32>
    %c1 = arith.constant 1 : index
    %c0_23 = arith.constant 0 : index
    %c0_24 = arith.constant 0 : index
    %66 = vector.load %arg14[%c1, %c0_23, %c0_24] : memref<8x8x128xf32, #tpu.memory_space<vmem>>, vector<1x8x128xf32>
    %67 = vector.shape_cast %66 : vector<1x8x128xf32> to vector<8x128xf32>
    %68 = vector.shape_cast %65 : vector<8x128xf32> to vector<1x8x128xf32>
    tpu.vector_store %arg14[%c1, %c0_23, %c0_24], %68 {strides = array<i32>} : memref<8x8x128xf32, #tpu.memory_space<vmem>>, vector<1x8x128xf32>,
    %69 = vector.extract_strided_slice %8 {offsets = [2, 0, 0], sizes = [1, 8, 512], strides = [1, 1, 1]} : vector<8x8x512xf32> to vector<1x8x512xf32>
    %70 = vector.shape_cast %69 : vector<1x8x512xf32> to vector<8x512xf32>
    %cst_25 = arith.constant dense<0.000000e+00> : vector<8x512xf32>
    %71 = tpu.matmul %65, %3, %cst_25 {dimension_numbers = #tpu.dot_dimension_numbers<[1], [0], [0], [1], [0, 0, 1, 1], [], []>} : vector<8x128xf32>, vector<128x512xf32>, vector<8x512xf32> -> vector<8x512xf32>
    %72 = arith.addf %70, %71 : vector<8x512xf32>
    %73 = vector.extract_strided_slice %72 {offsets = [0, 0], sizes = [8, 256], strides = [1, 1]} : vector<8x512xf32> to vector<8x256xf32>
    %74 = arith.negf %73 : vector<8x256xf32>
    %75 = math.exp %74 : vector<8x256xf32>
    %cst_26 = arith.constant 1.000000e+00 : f32
    %76 = vector.broadcast %cst_26 : f32 to vector<8x256xf32>
    %77 = arith.addf %76, %75 : vector<8x256xf32>
    %78 = arith.divf %76, %77 : vector<8x256xf32>
    %79 = vector.extract_strided_slice %78 {offsets = [0, 0], sizes = [8, 128], strides = [1, 1]} : vector<8x256xf32> to vector<8x128xf32>
    %80 = vector.extract_strided_slice %78 {offsets = [0, 128], sizes = [8, 128], strides = [1, 1]} : vector<8x256xf32> to vector<8x128xf32>
    %81 = vector.extract_strided_slice %72 {offsets = [0, 256], sizes = [8, 128], strides = [1, 1]} : vector<8x512xf32> to vector<8x128xf32>
    %82 = math.tanh %81 : vector<8x128xf32>
    %83 = vector.extract_strided_slice %72 {offsets = [0, 384], sizes = [8, 128], strides = [1, 1]} : vector<8x512xf32> to vector<8x128xf32>
    %84 = arith.negf %83 : vector<8x128xf32>
    %85 = math.exp %84 : vector<8x128xf32>
    %cst_27 = arith.constant 1.000000e+00 : f32
    %86 = vector.broadcast %cst_27 : f32 to vector<8x128xf32>
    %87 = arith.addf %86, %85 : vector<8x128xf32>
    %88 = arith.divf %86, %87 : vector<8x128xf32>
    %89 = arith.mulf %80, %63 : vector<8x128xf32>
    %90 = arith.mulf %79, %82 : vector<8x128xf32>
    %91 = arith.addf %89, %90 : vector<8x128xf32>
    %92 = math.tanh %91 : vector<8x128xf32>
    %93 = arith.mulf %88, %92 : vector<8x128xf32>
    %c2 = arith.constant 2 : index
    %c0_28 = arith.constant 0 : index
    %c0_29 = arith.constant 0 : index
    %94 = vector.load %arg14[%c2, %c0_28, %c0_29] : memref<8x8x128xf32, #tpu.memory_space<vmem>>, vector<1x8x128xf32>
    %95 = vector.shape_cast %94 : vector<1x8x128xf32> to vector<8x128xf32>
    %96 = vector.shape_cast %93 : vector<8x128xf32> to vector<1x8x128xf32>
    tpu.vector_store %arg14[%c2, %c0_28, %c0_29], %96 {strides = array<i32>} : memref<8x8x128xf32, #tpu.memory_space<vmem>>, vector<1x8x128xf32>,
    %97 = vector.extract_strided_slice %8 {offsets = [3, 0, 0], sizes = [1, 8, 512], strides = [1, 1, 1]} : vector<8x8x512xf32> to vector<1x8x512xf32>
    %98 = vector.shape_cast %97 : vector<1x8x512xf32> to vector<8x512xf32>
    %cst_30 = arith.constant dense<0.000000e+00> : vector<8x512xf32>
    %99 = tpu.matmul %93, %3, %cst_30 {dimension_numbers = #tpu.dot_dimension_numbers<[1], [0], [0], [1], [0, 0, 1, 1], [], []>} : vector<8x128xf32>, vector<128x512xf32>, vector<8x512xf32> -> vector<8x512xf32>
    %100 = arith.addf %98, %99 : vector<8x512xf32>
    %101 = vector.extract_strided_slice %100 {offsets = [0, 0], sizes = [8, 256], strides = [1, 1]} : vector<8x512xf32> to vector<8x256xf32>
    %102 = arith.negf %101 : vector<8x256xf32>
    %103 = math.exp %102 : vector<8x256xf32>
    %cst_31 = arith.constant 1.000000e+00 : f32
    %104 = vector.broadcast %cst_31 : f32 to vector<8x256xf32>
    %105 = arith.addf %104, %103 : vector<8x256xf32>
    %106 = arith.divf %104, %105 : vector<8x256xf32>
    %107 = vector.extract_strided_slice %106 {offsets = [0, 0], sizes = [8, 128], strides = [1, 1]} : vector<8x256xf32> to vector<8x128xf32>
    %108 = vector.extract_strided_slice %106 {offsets = [0, 128], sizes = [8, 128], strides = [1, 1]} : vector<8x256xf32> to vector<8x128xf32>
    %109 = vector.extract_strided_slice %100 {offsets = [0, 256], sizes = [8, 128], strides = [1, 1]} : vector<8x512xf32> to vector<8x128xf32>
    %110 = math.tanh %109 : vector<8x128xf32>
    %111 = vector.extract_strided_slice %100 {offsets = [0, 384], sizes = [8, 128], strides = [1, 1]} : vector<8x512xf32> to vector<8x128xf32>
    %112 = arith.negf %111 : vector<8x128xf32>
    %113 = math.exp %112 : vector<8x128xf32>
    %cst_32 = arith.constant 1.000000e+00 : f32
    %114 = vector.broadcast %cst_32 : f32 to vector<8x128xf32>
    %115 = arith.addf %114, %113 : vector<8x128xf32>
    %116 = arith.divf %114, %115 : vector<8x128xf32>
    %117 = arith.mulf %108, %91 : vector<8x128xf32>
    %118 = arith.mulf %107, %110 : vector<8x128xf32>
    %119 = arith.addf %117, %118 : vector<8x128xf32>
    %120 = math.tanh %119 : vector<8x128xf32>
    %121 = arith.mulf %116, %120 : vector<8x128xf32>
    %c3 = arith.constant 3 : index
    %c0_33 = arith.constant 0 : index
    %c0_34 = arith.constant 0 : index
    %122 = vector.load %arg14[%c3, %c0_33, %c0_34] : memref<8x8x128xf32, #tpu.memory_space<vmem>>, vector<1x8x128xf32>
    %123 = vector.shape_cast %122 : vector<1x8x128xf32> to vector<8x128xf32>
    %124 = vector.shape_cast %121 : vector<8x128xf32> to vector<1x8x128xf32>
    tpu.vector_store %arg14[%c3, %c0_33, %c0_34], %124 {strides = array<i32>} : memref<8x8x128xf32, #tpu.memory_space<vmem>>, vector<1x8x128xf32>,
    %125 = vector.extract_strided_slice %8 {offsets = [4, 0, 0], sizes = [1, 8, 512], strides = [1, 1, 1]} : vector<8x8x512xf32> to vector<1x8x512xf32>
    %126 = vector.shape_cast %125 : vector<1x8x512xf32> to vector<8x512xf32>
    %cst_35 = arith.constant dense<0.000000e+00> : vector<8x512xf32>
    %127 = tpu.matmul %121, %3, %cst_35 {dimension_numbers = #tpu.dot_dimension_numbers<[1], [0], [0], [1], [0, 0, 1, 1], [], []>} : vector<8x128xf32>, vector<128x512xf32>, vector<8x512xf32> -> vector<8x512xf32>
    %128 = arith.addf %126, %127 : vector<8x512xf32>
    %129 = vector.extract_strided_slice %128 {offsets = [0, 0], sizes = [8, 256], strides = [1, 1]} : vector<8x512xf32> to vector<8x256xf32>
    %130 = arith.negf %129 : vector<8x256xf32>
    %131 = math.exp %130 : vector<8x256xf32>
    %cst_36 = arith.constant 1.000000e+00 : f32
    %132 = vector.broadcast %cst_36 : f32 to vector<8x256xf32>
    %133 = arith.addf %132, %131 : vector<8x256xf32>
    %134 = arith.divf %132, %133 : vector<8x256xf32>
    %135 = vector.extract_strided_slice %134 {offsets = [0, 0], sizes = [8, 128], strides = [1, 1]} : vector<8x256xf32> to vector<8x128xf32>
    %136 = vector.extract_strided_slice %134 {offsets = [0, 128], sizes = [8, 128], strides = [1, 1]} : vector<8x256xf32> to vector<8x128xf32>
    %137 = vector.extract_strided_slice %128 {offsets = [0, 256], sizes = [8, 128], strides = [1, 1]} : vector<8x512xf32> to vector<8x128xf32>
    %138 = math.tanh %137 : vector<8x128xf32>
    %139 = vector.extract_strided_slice %128 {offsets = [0, 384], sizes = [8, 128], strides = [1, 1]} : vector<8x512xf32> to vector<8x128xf32>
    %140 = arith.negf %139 : vector<8x128xf32>
    %141 = math.exp %140 : vector<8x128xf32>
    %cst_37 = arith.constant 1.000000e+00 : f32
    %142 = vector.broadcast %cst_37 : f32 to vector<8x128xf32>
    %143 = arith.addf %142, %141 : vector<8x128xf32>
    %144 = arith.divf %142, %143 : vector<8x128xf32>
    %145 = arith.mulf %136, %119 : vector<8x128xf32>
    %146 = arith.mulf %135, %138 : vector<8x128xf32>
    %147 = arith.addf %145, %146 : vector<8x128xf32>
    %148 = math.tanh %147 : vector<8x128xf32>
    %149 = arith.mulf %144, %148 : vector<8x128xf32>
    %c4 = arith.constant 4 : index
    %c0_38 = arith.constant 0 : index
    %c0_39 = arith.constant 0 : index
    %150 = vector.load %arg14[%c4, %c0_38, %c0_39] : memref<8x8x128xf32, #tpu.memory_space<vmem>>, vector<1x8x128xf32>
    %151 = vector.shape_cast %150 : vector<1x8x128xf32> to vector<8x128xf32>
    %152 = vector.shape_cast %149 : vector<8x128xf32> to vector<1x8x128xf32>
    tpu.vector_store %arg14[%c4, %c0_38, %c0_39], %152 {strides = array<i32>} : memref<8x8x128xf32, #tpu.memory_space<vmem>>, vector<1x8x128xf32>,
    %153 = vector.extract_strided_slice %8 {offsets = [5, 0, 0], sizes = [1, 8, 512], strides = [1, 1, 1]} : vector<8x8x512xf32> to vector<1x8x512xf32>
    %154 = vector.shape_cast %153 : vector<1x8x512xf32> to vector<8x512xf32>
    %cst_40 = arith.constant dense<0.000000e+00> : vector<8x512xf32>
    %155 = tpu.matmul %149, %3, %cst_40 {dimension_numbers = #tpu.dot_dimension_numbers<[1], [0], [0], [1], [0, 0, 1, 1], [], []>} : vector<8x128xf32>, vector<128x512xf32>, vector<8x512xf32> -> vector<8x512xf32>
    %156 = arith.addf %154, %155 : vector<8x512xf32>
    %157 = vector.extract_strided_slice %156 {offsets = [0, 0], sizes = [8, 256], strides = [1, 1]} : vector<8x512xf32> to vector<8x256xf32>
    %158 = arith.negf %157 : vector<8x256xf32>
    %159 = math.exp %158 : vector<8x256xf32>
    %cst_41 = arith.constant 1.000000e+00 : f32
    %160 = vector.broadcast %cst_41 : f32 to vector<8x256xf32>
    %161 = arith.addf %160, %159 : vector<8x256xf32>
    %162 = arith.divf %160, %161 : vector<8x256xf32>
    %163 = vector.extract_strided_slice %162 {offsets = [0, 0], sizes = [8, 128], strides = [1, 1]} : vector<8x256xf32> to vector<8x128xf32>
    %164 = vector.extract_strided_slice %162 {offsets = [0, 128], sizes = [8, 128], strides = [1, 1]} : vector<8x256xf32> to vector<8x128xf32>
    %165 = vector.extract_strided_slice %156 {offsets = [0, 256], sizes = [8, 128], strides = [1, 1]} : vector<8x512xf32> to vector<8x128xf32>
    %166 = math.tanh %165 : vector<8x128xf32>
    %167 = vector.extract_strided_slice %156 {offsets = [0, 384], sizes = [8, 128], strides = [1, 1]} : vector<8x512xf32> to vector<8x128xf32>
    %168 = arith.negf %167 : vector<8x128xf32>
    %169 = math.exp %168 : vector<8x128xf32>
    %cst_42 = arith.constant 1.000000e+00 : f32
    %170 = vector.broadcast %cst_42 : f32 to vector<8x128xf32>
    %171 = arith.addf %170, %169 : vector<8x128xf32>
    %172 = arith.divf %170, %171 : vector<8x128xf32>
    %173 = arith.mulf %164, %147 : vector<8x128xf32>
    %174 = arith.mulf %163, %166 : vector<8x128xf32>
    %175 = arith.addf %173, %174 : vector<8x128xf32>
    %176 = math.tanh %175 : vector<8x128xf32>
    %177 = arith.mulf %172, %176 : vector<8x128xf32>
    %c5 = arith.constant 5 : index
    %c0_43 = arith.constant 0 : index
    %c0_44 = arith.constant 0 : index
    %178 = vector.load %arg14[%c5, %c0_43, %c0_44] : memref<8x8x128xf32, #tpu.memory_space<vmem>>, vector<1x8x128xf32>
    %179 = vector.shape_cast %178 : vector<1x8x128xf32> to vector<8x128xf32>
    %180 = vector.shape_cast %177 : vector<8x128xf32> to vector<1x8x128xf32>
    tpu.vector_store %arg14[%c5, %c0_43, %c0_44], %180 {strides = array<i32>} : memref<8x8x128xf32, #tpu.memory_space<vmem>>, vector<1x8x128xf32>,
    %181 = vector.extract_strided_slice %8 {offsets = [6, 0, 0], sizes = [1, 8, 512], strides = [1, 1, 1]} : vector<8x8x512xf32> to vector<1x8x512xf32>
    %182 = vector.shape_cast %181 : vector<1x8x512xf32> to vector<8x512xf32>
    %cst_45 = arith.constant dense<0.000000e+00> : vector<8x512xf32>
    %183 = tpu.matmul %177, %3, %cst_45 {dimension_numbers = #tpu.dot_dimension_numbers<[1], [0], [0], [1], [0, 0, 1, 1], [], []>} : vector<8x128xf32>, vector<128x512xf32>, vector<8x512xf32> -> vector<8x512xf32>
    %184 = arith.addf %182, %183 : vector<8x512xf32>
    %185 = vector.extract_strided_slice %184 {offsets = [0, 0], sizes = [8, 256], strides = [1, 1]} : vector<8x512xf32> to vector<8x256xf32>
    %186 = arith.negf %185 : vector<8x256xf32>
    %187 = math.exp %186 : vector<8x256xf32>
    %cst_46 = arith.constant 1.000000e+00 : f32
    %188 = vector.broadcast %cst_46 : f32 to vector<8x256xf32>
    %189 = arith.addf %188, %187 : vector<8x256xf32>
    %190 = arith.divf %188, %189 : vector<8x256xf32>
    %191 = vector.extract_strided_slice %190 {offsets = [0, 0], sizes = [8, 128], strides = [1, 1]} : vector<8x256xf32> to vector<8x128xf32>
    %192 = vector.extract_strided_slice %190 {offsets = [0, 128], sizes = [8, 128], strides = [1, 1]} : vector<8x256xf32> to vector<8x128xf32>
    %193 = vector.extract_strided_slice %184 {offsets = [0, 256], sizes = [8, 128], strides = [1, 1]} : vector<8x512xf32> to vector<8x128xf32>
    %194 = math.tanh %193 : vector<8x128xf32>
    %195 = vector.extract_strided_slice %184 {offsets = [0, 384], sizes = [8, 128], strides = [1, 1]} : vector<8x512xf32> to vector<8x128xf32>
    %196 = arith.negf %195 : vector<8x128xf32>
    %197 = math.exp %196 : vector<8x128xf32>
    %cst_47 = arith.constant 1.000000e+00 : f32
    %198 = vector.broadcast %cst_47 : f32 to vector<8x128xf32>
    %199 = arith.addf %198, %197 : vector<8x128xf32>
    %200 = arith.divf %198, %199 : vector<8x128xf32>
    %201 = arith.mulf %192, %175 : vector<8x128xf32>
    %202 = arith.mulf %191, %194 : vector<8x128xf32>
    %203 = arith.addf %201, %202 : vector<8x128xf32>
    %204 = math.tanh %203 : vector<8x128xf32>
    %205 = arith.mulf %200, %204 : vector<8x128xf32>
    %c6 = arith.constant 6 : index
    %c0_48 = arith.constant 0 : index
    %c0_49 = arith.constant 0 : index
    %206 = vector.load %arg14[%c6, %c0_48, %c0_49] : memref<8x8x128xf32, #tpu.memory_space<vmem>>, vector<1x8x128xf32>
    %207 = vector.shape_cast %206 : vector<1x8x128xf32> to vector<8x128xf32>
    %208 = vector.shape_cast %205 : vector<8x128xf32> to vector<1x8x128xf32>
    tpu.vector_store %arg14[%c6, %c0_48, %c0_49], %208 {strides = array<i32>} : memref<8x8x128xf32, #tpu.memory_space<vmem>>, vector<1x8x128xf32>,
    %209 = vector.extract_strided_slice %8 {offsets = [7, 0, 0], sizes = [1, 8, 512], strides = [1, 1, 1]} : vector<8x8x512xf32> to vector<1x8x512xf32>
    %210 = vector.shape_cast %209 : vector<1x8x512xf32> to vector<8x512xf32>
    %cst_50 = arith.constant dense<0.000000e+00> : vector<8x512xf32>
    %211 = tpu.matmul %205, %3, %cst_50 {dimension_numbers = #tpu.dot_dimension_numbers<[1], [0], [0], [1], [0, 0, 1, 1], [], []>} : vector<8x128xf32>, vector<128x512xf32>, vector<8x512xf32> -> vector<8x512xf32>
    %212 = arith.addf %210, %211 : vector<8x512xf32>
    %213 = vector.extract_strided_slice %212 {offsets = [0, 0], sizes = [8, 256], strides = [1, 1]} : vector<8x512xf32> to vector<8x256xf32>
    %214 = arith.negf %213 : vector<8x256xf32>
    %215 = math.exp %214 : vector<8x256xf32>
    %cst_51 = arith.constant 1.000000e+00 : f32
    %216 = vector.broadcast %cst_51 : f32 to vector<8x256xf32>
    %217 = arith.addf %216, %215 : vector<8x256xf32>
    %218 = arith.divf %216, %217 : vector<8x256xf32>
    %219 = vector.extract_strided_slice %218 {offsets = [0, 0], sizes = [8, 128], strides = [1, 1]} : vector<8x256xf32> to vector<8x128xf32>
    %220 = vector.extract_strided_slice %218 {offsets = [0, 128], sizes = [8, 128], strides = [1, 1]} : vector<8x256xf32> to vector<8x128xf32>
    %221 = vector.extract_strided_slice %212 {offsets = [0, 256], sizes = [8, 128], strides = [1, 1]} : vector<8x512xf32> to vector<8x128xf32>
    %222 = math.tanh %221 : vector<8x128xf32>
    %223 = vector.extract_strided_slice %212 {offsets = [0, 384], sizes = [8, 128], strides = [1, 1]} : vector<8x512xf32> to vector<8x128xf32>
    %224 = arith.negf %223 : vector<8x128xf32>
    %225 = math.exp %224 : vector<8x128xf32>
    %cst_52 = arith.constant 1.000000e+00 : f32
    %226 = vector.broadcast %cst_52 : f32 to vector<8x128xf32>
    %227 = arith.addf %226, %225 : vector<8x128xf32>
    %228 = arith.divf %226, %227 : vector<8x128xf32>
    %229 = arith.mulf %220, %203 : vector<8x128xf32>
    %230 = arith.mulf %219, %222 : vector<8x128xf32>
    %231 = arith.addf %229, %230 : vector<8x128xf32>
    %232 = math.tanh %231 : vector<8x128xf32>
    %233 = arith.mulf %228, %232 : vector<8x128xf32>
    %c7 = arith.constant 7 : index
    %c0_53 = arith.constant 0 : index
    %c0_54 = arith.constant 0 : index
    %234 = vector.load %arg14[%c7, %c0_53, %c0_54] : memref<8x8x128xf32, #tpu.memory_space<vmem>>, vector<1x8x128xf32>
    %235 = vector.shape_cast %234 : vector<1x8x128xf32> to vector<8x128xf32>
    %236 = vector.shape_cast %233 : vector<8x128xf32> to vector<1x8x128xf32>
    tpu.vector_store %arg14[%c7, %c0_53, %c0_54], %236 {strides = array<i32>} : memref<8x8x128xf32, #tpu.memory_space<vmem>>, vector<1x8x128xf32>,
    %c0_55 = arith.constant 0 : index
    %c0_56 = arith.constant 0 : index
    %c0_57 = arith.constant 0 : index
    %237 = vector.load %arg12[%c0_55, %c0_56, %c0_57] : memref<2x8x128xf32, #tpu.memory_space<vmem>>, vector<1x8x128xf32>
    %238 = vector.shape_cast %237 : vector<1x8x128xf32> to vector<8x128xf32>
    %239 = vector.shape_cast %233 : vector<8x128xf32> to vector<1x8x128xf32>
    tpu.vector_store %arg12[%c0_55, %c0_56, %c0_57], %239 {strides = array<i32>} : memref<2x8x128xf32, #tpu.memory_space<vmem>>, vector<1x8x128xf32>,
    %c0_58 = arith.constant 0 : index
    %c0_59 = arith.constant 0 : index
    %c0_60 = arith.constant 0 : index
    %240 = vector.load %arg13[%c0_58, %c0_59, %c0_60] : memref<2x8x128xf32, #tpu.memory_space<vmem>>, vector<1x8x128xf32>
    %241 = vector.shape_cast %240 : vector<1x8x128xf32> to vector<8x128xf32>
    %242 = vector.shape_cast %231 : vector<8x128xf32> to vector<1x8x128xf32>
    tpu.vector_store %arg13[%c0_58, %c0_59, %c0_60], %242 {strides = array<i32>} : memref<2x8x128xf32, #tpu.memory_space<vmem>>, vector<1x8x128xf32>,
    %c0_61 = arith.constant 0 : index
    %c0_62 = arith.constant 0 : index
    %c0_63 = arith.constant 0 : index
    %243 = vector.load %arg14[%c0_61, %c0_62, %c0_63] : memref<8x8x128xf32, #tpu.memory_space<vmem>>, vector<8x8x128xf32>
    %244 = vector.shape_cast %243 : vector<8x8x128xf32> to vector<64x128xf32>
    %c0_64 = arith.constant 0 : index
    %c0_65 = arith.constant 0 : index
    %245 = vector.load %arg6[%c0_64, %c0_65] : memref<128x512xf32, #tpu.memory_space<vmem>>, vector<128x512xf32>
    %c0_66 = arith.constant 0 : index
    %c0_67 = arith.constant 0 : index
    %246 = vector.load %arg7[%c0_66, %c0_67] : memref<128x512xf32, #tpu.memory_space<vmem>>, vector<128x512xf32>
    %c0_68 = arith.constant 0 : index
    %c0_69 = arith.constant 0 : index
    %247 = vector.load %arg8[%c0_68, %c0_69] : memref<1x512xf32, #tpu.memory_space<vmem>>, vector<1x512xf32>
    %cst_70 = arith.constant dense<0.000000e+00> : vector<64x512xf32>
    %248 = tpu.matmul %244, %245, %cst_70 {dimension_numbers = #tpu.dot_dimension_numbers<[1], [0], [0], [1], [0, 0, 1, 1], [], []>} : vector<64x128xf32>, vector<128x512xf32>, vector<64x512xf32> -> vector<64x512xf32>
    %249 = vector.broadcast %247 : vector<1x512xf32> to vector<64x512xf32>
    %250 = arith.addf %248, %249 : vector<64x512xf32>
    %251 = vector.shape_cast %250 : vector<64x512xf32> to vector<8x8x512xf32>
    %c1_71 = arith.constant 1 : index
    %c0_72 = arith.constant 0 : index
    %c0_73 = arith.constant 0 : index
    %252 = vector.load %arg1[%c1_71, %c0_72, %c0_73] : memref<2x8x128xf32, #tpu.memory_space<vmem>>, vector<1x8x128xf32>
    %253 = vector.shape_cast %252 : vector<1x8x128xf32> to vector<8x128xf32>
    %c1_74 = arith.constant 1 : index
    %c0_75 = arith.constant 0 : index
    %c0_76 = arith.constant 0 : index
    %254 = vector.load %arg2[%c1_74, %c0_75, %c0_76] : memref<2x8x128xf32, #tpu.memory_space<vmem>>, vector<1x8x128xf32>
    %255 = vector.shape_cast %254 : vector<1x8x128xf32> to vector<8x128xf32>
    %256 = vector.extract_strided_slice %251 {offsets = [0, 0, 0], sizes = [1, 8, 512], strides = [1, 1, 1]} : vector<8x8x512xf32> to vector<1x8x512xf32>
    %257 = vector.shape_cast %256 : vector<1x8x512xf32> to vector<8x512xf32>
    %cst_77 = arith.constant dense<0.000000e+00> : vector<8x512xf32>
    %258 = tpu.matmul %253, %246, %cst_77 {dimension_numbers = #tpu.dot_dimension_numbers<[1], [0], [0], [1], [0, 0, 1, 1], [], []>} : vector<8x128xf32>, vector<128x512xf32>, vector<8x512xf32> -> vector<8x512xf32>
    %259 = arith.addf %257, %258 : vector<8x512xf32>
    %260 = vector.extract_strided_slice %259 {offsets = [0, 0], sizes = [8, 256], strides = [1, 1]} : vector<8x512xf32> to vector<8x256xf32>
    %261 = arith.negf %260 : vector<8x256xf32>
    %262 = math.exp %261 : vector<8x256xf32>
    %cst_78 = arith.constant 1.000000e+00 : f32
    %263 = vector.broadcast %cst_78 : f32 to vector<8x256xf32>
    %264 = arith.addf %263, %262 : vector<8x256xf32>
    %265 = arith.divf %263, %264 : vector<8x256xf32>
    %266 = vector.extract_strided_slice %265 {offsets = [0, 0], sizes = [8, 128], strides = [1, 1]} : vector<8x256xf32> to vector<8x128xf32>
    %267 = vector.extract_strided_slice %265 {offsets = [0, 128], sizes = [8, 128], strides = [1, 1]} : vector<8x256xf32> to vector<8x128xf32>
    %268 = vector.extract_strided_slice %259 {offsets = [0, 256], sizes = [8, 128], strides = [1, 1]} : vector<8x512xf32> to vector<8x128xf32>
    %269 = math.tanh %268 : vector<8x128xf32>
    %270 = vector.extract_strided_slice %259 {offsets = [0, 384], sizes = [8, 128], strides = [1, 1]} : vector<8x512xf32> to vector<8x128xf32>
    %271 = arith.negf %270 : vector<8x128xf32>
    %272 = math.exp %271 : vector<8x128xf32>
    %cst_79 = arith.constant 1.000000e+00 : f32
    %273 = vector.broadcast %cst_79 : f32 to vector<8x128xf32>
    %274 = arith.addf %273, %272 : vector<8x128xf32>
    %275 = arith.divf %273, %274 : vector<8x128xf32>
    %276 = arith.mulf %267, %255 : vector<8x128xf32>
    %277 = arith.mulf %266, %269 : vector<8x128xf32>
    %278 = arith.addf %276, %277 : vector<8x128xf32>
    %279 = math.tanh %278 : vector<8x128xf32>
    %280 = arith.mulf %275, %279 : vector<8x128xf32>
    %c0_80 = arith.constant 0 : index
    %c0_81 = arith.constant 0 : index
    %c0_82 = arith.constant 0 : index
    %281 = vector.load %arg15[%c0_80, %c0_81, %c0_82] : memref<8x8x128xf32, #tpu.memory_space<vmem>>, vector<1x8x128xf32>
    %282 = vector.shape_cast %281 : vector<1x8x128xf32> to vector<8x128xf32>
    %283 = vector.shape_cast %280 : vector<8x128xf32> to vector<1x8x128xf32>
    tpu.vector_store %arg15[%c0_80, %c0_81, %c0_82], %283 {strides = array<i32>} : memref<8x8x128xf32, #tpu.memory_space<vmem>>, vector<1x8x128xf32>,
    %284 = vector.extract_strided_slice %251 {offsets = [1, 0, 0], sizes = [1, 8, 512], strides = [1, 1, 1]} : vector<8x8x512xf32> to vector<1x8x512xf32>
    %285 = vector.shape_cast %284 : vector<1x8x512xf32> to vector<8x512xf32>
    %cst_83 = arith.constant dense<0.000000e+00> : vector<8x512xf32>
    %286 = tpu.matmul %280, %246, %cst_83 {dimension_numbers = #tpu.dot_dimension_numbers<[1], [0], [0], [1], [0, 0, 1, 1], [], []>} : vector<8x128xf32>, vector<128x512xf32>, vector<8x512xf32> -> vector<8x512xf32>
    %287 = arith.addf %285, %286 : vector<8x512xf32>
    %288 = vector.extract_strided_slice %287 {offsets = [0, 0], sizes = [8, 256], strides = [1, 1]} : vector<8x512xf32> to vector<8x256xf32>
    %289 = arith.negf %288 : vector<8x256xf32>
    %290 = math.exp %289 : vector<8x256xf32>
    %cst_84 = arith.constant 1.000000e+00 : f32
    %291 = vector.broadcast %cst_84 : f32 to vector<8x256xf32>
    %292 = arith.addf %291, %290 : vector<8x256xf32>
    %293 = arith.divf %291, %292 : vector<8x256xf32>
    %294 = vector.extract_strided_slice %293 {offsets = [0, 0], sizes = [8, 128], strides = [1, 1]} : vector<8x256xf32> to vector<8x128xf32>
    %295 = vector.extract_strided_slice %293 {offsets = [0, 128], sizes = [8, 128], strides = [1, 1]} : vector<8x256xf32> to vector<8x128xf32>
    %296 = vector.extract_strided_slice %287 {offsets = [0, 256], sizes = [8, 128], strides = [1, 1]} : vector<8x512xf32> to vector<8x128xf32>
    %297 = math.tanh %296 : vector<8x128xf32>
    %298 = vector.extract_strided_slice %287 {offsets = [0, 384], sizes = [8, 128], strides = [1, 1]} : vector<8x512xf32> to vector<8x128xf32>
    %299 = arith.negf %298 : vector<8x128xf32>
    %300 = math.exp %299 : vector<8x128xf32>
    %cst_85 = arith.constant 1.000000e+00 : f32
    %301 = vector.broadcast %cst_85 : f32 to vector<8x128xf32>
    %302 = arith.addf %301, %300 : vector<8x128xf32>
    %303 = arith.divf %301, %302 : vector<8x128xf32>
    %304 = arith.mulf %295, %278 : vector<8x128xf32>
    %305 = arith.mulf %294, %297 : vector<8x128xf32>
    %306 = arith.addf %304, %305 : vector<8x128xf32>
    %307 = math.tanh %306 : vector<8x128xf32>
    %308 = arith.mulf %303, %307 : vector<8x128xf32>
    %c1_86 = arith.constant 1 : index
    %c0_87 = arith.constant 0 : index
    %c0_88 = arith.constant 0 : index
    %309 = vector.load %arg15[%c1_86, %c0_87, %c0_88] : memref<8x8x128xf32, #tpu.memory_space<vmem>>, vector<1x8x128xf32>
    %310 = vector.shape_cast %309 : vector<1x8x128xf32> to vector<8x128xf32>
    %311 = vector.shape_cast %308 : vector<8x128xf32> to vector<1x8x128xf32>
    tpu.vector_store %arg15[%c1_86, %c0_87, %c0_88], %311 {strides = array<i32>} : memref<8x8x128xf32, #tpu.memory_space<vmem>>, vector<1x8x128xf32>,
    %312 = vector.extract_strided_slice %251 {offsets = [2, 0, 0], sizes = [1, 8, 512], strides = [1, 1, 1]} : vector<8x8x512xf32> to vector<1x8x512xf32>
    %313 = vector.shape_cast %312 : vector<1x8x512xf32> to vector<8x512xf32>
    %cst_89 = arith.constant dense<0.000000e+00> : vector<8x512xf32>
    %314 = tpu.matmul %308, %246, %cst_89 {dimension_numbers = #tpu.dot_dimension_numbers<[1], [0], [0], [1], [0, 0, 1, 1], [], []>} : vector<8x128xf32>, vector<128x512xf32>, vector<8x512xf32> -> vector<8x512xf32>
    %315 = arith.addf %313, %314 : vector<8x512xf32>
    %316 = vector.extract_strided_slice %315 {offsets = [0, 0], sizes = [8, 256], strides = [1, 1]} : vector<8x512xf32> to vector<8x256xf32>
    %317 = arith.negf %316 : vector<8x256xf32>
    %318 = math.exp %317 : vector<8x256xf32>
    %cst_90 = arith.constant 1.000000e+00 : f32
    %319 = vector.broadcast %cst_90 : f32 to vector<8x256xf32>
    %320 = arith.addf %319, %318 : vector<8x256xf32>
    %321 = arith.divf %319, %320 : vector<8x256xf32>
    %322 = vector.extract_strided_slice %321 {offsets = [0, 0], sizes = [8, 128], strides = [1, 1]} : vector<8x256xf32> to vector<8x128xf32>
    %323 = vector.extract_strided_slice %321 {offsets = [0, 128], sizes = [8, 128], strides = [1, 1]} : vector<8x256xf32> to vector<8x128xf32>
    %324 = vector.extract_strided_slice %315 {offsets = [0, 256], sizes = [8, 128], strides = [1, 1]} : vector<8x512xf32> to vector<8x128xf32>
    %325 = math.tanh %324 : vector<8x128xf32>
    %326 = vector.extract_strided_slice %315 {offsets = [0, 384], sizes = [8, 128], strides = [1, 1]} : vector<8x512xf32> to vector<8x128xf32>
    %327 = arith.negf %326 : vector<8x128xf32>
    %328 = math.exp %327 : vector<8x128xf32>
    %cst_91 = arith.constant 1.000000e+00 : f32
    %329 = vector.broadcast %cst_91 : f32 to vector<8x128xf32>
    %330 = arith.addf %329, %328 : vector<8x128xf32>
    %331 = arith.divf %329, %330 : vector<8x128xf32>
    %332 = arith.mulf %323, %306 : vector<8x128xf32>
    %333 = arith.mulf %322, %325 : vector<8x128xf32>
    %334 = arith.addf %332, %333 : vector<8x128xf32>
    %335 = math.tanh %334 : vector<8x128xf32>
    %336 = arith.mulf %331, %335 : vector<8x128xf32>
    %c2_92 = arith.constant 2 : index
    %c0_93 = arith.constant 0 : index
    %c0_94 = arith.constant 0 : index
    %337 = vector.load %arg15[%c2_92, %c0_93, %c0_94] : memref<8x8x128xf32, #tpu.memory_space<vmem>>, vector<1x8x128xf32>
    %338 = vector.shape_cast %337 : vector<1x8x128xf32> to vector<8x128xf32>
    %339 = vector.shape_cast %336 : vector<8x128xf32> to vector<1x8x128xf32>
    tpu.vector_store %arg15[%c2_92, %c0_93, %c0_94], %339 {strides = array<i32>} : memref<8x8x128xf32, #tpu.memory_space<vmem>>, vector<1x8x128xf32>,
    %340 = vector.extract_strided_slice %251 {offsets = [3, 0, 0], sizes = [1, 8, 512], strides = [1, 1, 1]} : vector<8x8x512xf32> to vector<1x8x512xf32>
    %341 = vector.shape_cast %340 : vector<1x8x512xf32> to vector<8x512xf32>
    %cst_95 = arith.constant dense<0.000000e+00> : vector<8x512xf32>
    %342 = tpu.matmul %336, %246, %cst_95 {dimension_numbers = #tpu.dot_dimension_numbers<[1], [0], [0], [1], [0, 0, 1, 1], [], []>} : vector<8x128xf32>, vector<128x512xf32>, vector<8x512xf32> -> vector<8x512xf32>
    %343 = arith.addf %341, %342 : vector<8x512xf32>
    %344 = vector.extract_strided_slice %343 {offsets = [0, 0], sizes = [8, 256], strides = [1, 1]} : vector<8x512xf32> to vector<8x256xf32>
    %345 = arith.negf %344 : vector<8x256xf32>
    %346 = math.exp %345 : vector<8x256xf32>
    %cst_96 = arith.constant 1.000000e+00 : f32
    %347 = vector.broadcast %cst_96 : f32 to vector<8x256xf32>
    %348 = arith.addf %347, %346 : vector<8x256xf32>
    %349 = arith.divf %347, %348 : vector<8x256xf32>
    %350 = vector.extract_strided_slice %349 {offsets = [0, 0], sizes = [8, 128], strides = [1, 1]} : vector<8x256xf32> to vector<8x128xf32>
    %351 = vector.extract_strided_slice %349 {offsets = [0, 128], sizes = [8, 128], strides = [1, 1]} : vector<8x256xf32> to vector<8x128xf32>
    %352 = vector.extract_strided_slice %343 {offsets = [0, 256], sizes = [8, 128], strides = [1, 1]} : vector<8x512xf32> to vector<8x128xf32>
    %353 = math.tanh %352 : vector<8x128xf32>
    %354 = vector.extract_strided_slice %343 {offsets = [0, 384], sizes = [8, 128], strides = [1, 1]} : vector<8x512xf32> to vector<8x128xf32>
    %355 = arith.negf %354 : vector<8x128xf32>
    %356 = math.exp %355 : vector<8x128xf32>
    %cst_97 = arith.constant 1.000000e+00 : f32
    %357 = vector.broadcast %cst_97 : f32 to vector<8x128xf32>
    %358 = arith.addf %357, %356 : vector<8x128xf32>
    %359 = arith.divf %357, %358 : vector<8x128xf32>
    %360 = arith.mulf %351, %334 : vector<8x128xf32>
    %361 = arith.mulf %350, %353 : vector<8x128xf32>
    %362 = arith.addf %360, %361 : vector<8x128xf32>
    %363 = math.tanh %362 : vector<8x128xf32>
    %364 = arith.mulf %359, %363 : vector<8x128xf32>
    %c3_98 = arith.constant 3 : index
    %c0_99 = arith.constant 0 : index
    %c0_100 = arith.constant 0 : index
    %365 = vector.load %arg15[%c3_98, %c0_99, %c0_100] : memref<8x8x128xf32, #tpu.memory_space<vmem>>, vector<1x8x128xf32>
    %366 = vector.shape_cast %365 : vector<1x8x128xf32> to vector<8x128xf32>
    %367 = vector.shape_cast %364 : vector<8x128xf32> to vector<1x8x128xf32>
    tpu.vector_store %arg15[%c3_98, %c0_99, %c0_100], %367 {strides = array<i32>} : memref<8x8x128xf32, #tpu.memory_space<vmem>>, vector<1x8x128xf32>,
    %368 = vector.extract_strided_slice %251 {offsets = [4, 0, 0], sizes = [1, 8, 512], strides = [1, 1, 1]} : vector<8x8x512xf32> to vector<1x8x512xf32>
    %369 = vector.shape_cast %368 : vector<1x8x512xf32> to vector<8x512xf32>
    %cst_101 = arith.constant dense<0.000000e+00> : vector<8x512xf32>
    %370 = tpu.matmul %364, %246, %cst_101 {dimension_numbers = #tpu.dot_dimension_numbers<[1], [0], [0], [1], [0, 0, 1, 1], [], []>} : vector<8x128xf32>, vector<128x512xf32>, vector<8x512xf32> -> vector<8x512xf32>
    %371 = arith.addf %369, %370 : vector<8x512xf32>
    %372 = vector.extract_strided_slice %371 {offsets = [0, 0], sizes = [8, 256], strides = [1, 1]} : vector<8x512xf32> to vector<8x256xf32>
    %373 = arith.negf %372 : vector<8x256xf32>
    %374 = math.exp %373 : vector<8x256xf32>
    %cst_102 = arith.constant 1.000000e+00 : f32
    %375 = vector.broadcast %cst_102 : f32 to vector<8x256xf32>
    %376 = arith.addf %375, %374 : vector<8x256xf32>
    %377 = arith.divf %375, %376 : vector<8x256xf32>
    %378 = vector.extract_strided_slice %377 {offsets = [0, 0], sizes = [8, 128], strides = [1, 1]} : vector<8x256xf32> to vector<8x128xf32>
    %379 = vector.extract_strided_slice %377 {offsets = [0, 128], sizes = [8, 128], strides = [1, 1]} : vector<8x256xf32> to vector<8x128xf32>
    %380 = vector.extract_strided_slice %371 {offsets = [0, 256], sizes = [8, 128], strides = [1, 1]} : vector<8x512xf32> to vector<8x128xf32>
    %381 = math.tanh %380 : vector<8x128xf32>
    %382 = vector.extract_strided_slice %371 {offsets = [0, 384], sizes = [8, 128], strides = [1, 1]} : vector<8x512xf32> to vector<8x128xf32>
    %383 = arith.negf %382 : vector<8x128xf32>
    %384 = math.exp %383 : vector<8x128xf32>
    %cst_103 = arith.constant 1.000000e+00 : f32
    %385 = vector.broadcast %cst_103 : f32 to vector<8x128xf32>
    %386 = arith.addf %385, %384 : vector<8x128xf32>
    %387 = arith.divf %385, %386 : vector<8x128xf32>
    %388 = arith.mulf %379, %362 : vector<8x128xf32>
    %389 = arith.mulf %378, %381 : vector<8x128xf32>
    %390 = arith.addf %388, %389 : vector<8x128xf32>
    %391 = math.tanh %390 : vector<8x128xf32>
    %392 = arith.mulf %387, %391 : vector<8x128xf32>
    %c4_104 = arith.constant 4 : index
    %c0_105 = arith.constant 0 : index
    %c0_106 = arith.constant 0 : index
    %393 = vector.load %arg15[%c4_104, %c0_105, %c0_106] : memref<8x8x128xf32, #tpu.memory_space<vmem>>, vector<1x8x128xf32>
    %394 = vector.shape_cast %393 : vector<1x8x128xf32> to vector<8x128xf32>
    %395 = vector.shape_cast %392 : vector<8x128xf32> to vector<1x8x128xf32>
    tpu.vector_store %arg15[%c4_104, %c0_105, %c0_106], %395 {strides = array<i32>} : memref<8x8x128xf32, #tpu.memory_space<vmem>>, vector<1x8x128xf32>,
    %396 = vector.extract_strided_slice %251 {offsets = [5, 0, 0], sizes = [1, 8, 512], strides = [1, 1, 1]} : vector<8x8x512xf32> to vector<1x8x512xf32>
    %397 = vector.shape_cast %396 : vector<1x8x512xf32> to vector<8x512xf32>
    %cst_107 = arith.constant dense<0.000000e+00> : vector<8x512xf32>
    %398 = tpu.matmul %392, %246, %cst_107 {dimension_numbers = #tpu.dot_dimension_numbers<[1], [0], [0], [1], [0, 0, 1, 1], [], []>} : vector<8x128xf32>, vector<128x512xf32>, vector<8x512xf32> -> vector<8x512xf32>
    %399 = arith.addf %397, %398 : vector<8x512xf32>
    %400 = vector.extract_strided_slice %399 {offsets = [0, 0], sizes = [8, 256], strides = [1, 1]} : vector<8x512xf32> to vector<8x256xf32>
    %401 = arith.negf %400 : vector<8x256xf32>
    %402 = math.exp %401 : vector<8x256xf32>
    %cst_108 = arith.constant 1.000000e+00 : f32
    %403 = vector.broadcast %cst_108 : f32 to vector<8x256xf32>
    %404 = arith.addf %403, %402 : vector<8x256xf32>
    %405 = arith.divf %403, %404 : vector<8x256xf32>
    %406 = vector.extract_strided_slice %405 {offsets = [0, 0], sizes = [8, 128], strides = [1, 1]} : vector<8x256xf32> to vector<8x128xf32>
    %407 = vector.extract_strided_slice %405 {offsets = [0, 128], sizes = [8, 128], strides = [1, 1]} : vector<8x256xf32> to vector<8x128xf32>
    %408 = vector.extract_strided_slice %399 {offsets = [0, 256], sizes = [8, 128], strides = [1, 1]} : vector<8x512xf32> to vector<8x128xf32>
    %409 = math.tanh %408 : vector<8x128xf32>
    %410 = vector.extract_strided_slice %399 {offsets = [0, 384], sizes = [8, 128], strides = [1, 1]} : vector<8x512xf32> to vector<8x128xf32>
    %411 = arith.negf %410 : vector<8x128xf32>
    %412 = math.exp %411 : vector<8x128xf32>
    %cst_109 = arith.constant 1.000000e+00 : f32
    %413 = vector.broadcast %cst_109 : f32 to vector<8x128xf32>
    %414 = arith.addf %413, %412 : vector<8x128xf32>
    %415 = arith.divf %413, %414 : vector<8x128xf32>
    %416 = arith.mulf %407, %390 : vector<8x128xf32>
    %417 = arith.mulf %406, %409 : vector<8x128xf32>
    %418 = arith.addf %416, %417 : vector<8x128xf32>
    %419 = math.tanh %418 : vector<8x128xf32>
    %420 = arith.mulf %415, %419 : vector<8x128xf32>
    %c5_110 = arith.constant 5 : index
    %c0_111 = arith.constant 0 : index
    %c0_112 = arith.constant 0 : index
    %421 = vector.load %arg15[%c5_110, %c0_111, %c0_112] : memref<8x8x128xf32, #tpu.memory_space<vmem>>, vector<1x8x128xf32>
    %422 = vector.shape_cast %421 : vector<1x8x128xf32> to vector<8x128xf32>
    %423 = vector.shape_cast %420 : vector<8x128xf32> to vector<1x8x128xf32>
    tpu.vector_store %arg15[%c5_110, %c0_111, %c0_112], %423 {strides = array<i32>} : memref<8x8x128xf32, #tpu.memory_space<vmem>>, vector<1x8x128xf32>,
    %424 = vector.extract_strided_slice %251 {offsets = [6, 0, 0], sizes = [1, 8, 512], strides = [1, 1, 1]} : vector<8x8x512xf32> to vector<1x8x512xf32>
    %425 = vector.shape_cast %424 : vector<1x8x512xf32> to vector<8x512xf32>
    %cst_113 = arith.constant dense<0.000000e+00> : vector<8x512xf32>
    %426 = tpu.matmul %420, %246, %cst_113 {dimension_numbers = #tpu.dot_dimension_numbers<[1], [0], [0], [1], [0, 0, 1, 1], [], []>} : vector<8x128xf32>, vector<128x512xf32>, vector<8x512xf32> -> vector<8x512xf32>
    %427 = arith.addf %425, %426 : vector<8x512xf32>
    %428 = vector.extract_strided_slice %427 {offsets = [0, 0], sizes = [8, 256], strides = [1, 1]} : vector<8x512xf32> to vector<8x256xf32>
    %429 = arith.negf %428 : vector<8x256xf32>
    %430 = math.exp %429 : vector<8x256xf32>
    %cst_114 = arith.constant 1.000000e+00 : f32
    %431 = vector.broadcast %cst_114 : f32 to vector<8x256xf32>
    %432 = arith.addf %431, %430 : vector<8x256xf32>
    %433 = arith.divf %431, %432 : vector<8x256xf32>
    %434 = vector.extract_strided_slice %433 {offsets = [0, 0], sizes = [8, 128], strides = [1, 1]} : vector<8x256xf32> to vector<8x128xf32>
    %435 = vector.extract_strided_slice %433 {offsets = [0, 128], sizes = [8, 128], strides = [1, 1]} : vector<8x256xf32> to vector<8x128xf32>
    %436 = vector.extract_strided_slice %427 {offsets = [0, 256], sizes = [8, 128], strides = [1, 1]} : vector<8x512xf32> to vector<8x128xf32>
    %437 = math.tanh %436 : vector<8x128xf32>
    %438 = vector.extract_strided_slice %427 {offsets = [0, 384], sizes = [8, 128], strides = [1, 1]} : vector<8x512xf32> to vector<8x128xf32>
    %439 = arith.negf %438 : vector<8x128xf32>
    %440 = math.exp %439 : vector<8x128xf32>
    %cst_115 = arith.constant 1.000000e+00 : f32
    %441 = vector.broadcast %cst_115 : f32 to vector<8x128xf32>
    %442 = arith.addf %441, %440 : vector<8x128xf32>
    %443 = arith.divf %441, %442 : vector<8x128xf32>
    %444 = arith.mulf %435, %418 : vector<8x128xf32>
    %445 = arith.mulf %434, %437 : vector<8x128xf32>
    %446 = arith.addf %444, %445 : vector<8x128xf32>
    %447 = math.tanh %446 : vector<8x128xf32>
    %448 = arith.mulf %443, %447 : vector<8x128xf32>
    %c6_116 = arith.constant 6 : index
    %c0_117 = arith.constant 0 : index
    %c0_118 = arith.constant 0 : index
    %449 = vector.load %arg15[%c6_116, %c0_117, %c0_118] : memref<8x8x128xf32, #tpu.memory_space<vmem>>, vector<1x8x128xf32>
    %450 = vector.shape_cast %449 : vector<1x8x128xf32> to vector<8x128xf32>
    %451 = vector.shape_cast %448 : vector<8x128xf32> to vector<1x8x128xf32>
    tpu.vector_store %arg15[%c6_116, %c0_117, %c0_118], %451 {strides = array<i32>} : memref<8x8x128xf32, #tpu.memory_space<vmem>>, vector<1x8x128xf32>,
    %452 = vector.extract_strided_slice %251 {offsets = [7, 0, 0], sizes = [1, 8, 512], strides = [1, 1, 1]} : vector<8x8x512xf32> to vector<1x8x512xf32>
    %453 = vector.shape_cast %452 : vector<1x8x512xf32> to vector<8x512xf32>
    %cst_119 = arith.constant dense<0.000000e+00> : vector<8x512xf32>
    %454 = tpu.matmul %448, %246, %cst_119 {dimension_numbers = #tpu.dot_dimension_numbers<[1], [0], [0], [1], [0, 0, 1, 1], [], []>} : vector<8x128xf32>, vector<128x512xf32>, vector<8x512xf32> -> vector<8x512xf32>
    %455 = arith.addf %453, %454 : vector<8x512xf32>
    %456 = vector.extract_strided_slice %455 {offsets = [0, 0], sizes = [8, 256], strides = [1, 1]} : vector<8x512xf32> to vector<8x256xf32>
    %457 = arith.negf %456 : vector<8x256xf32>
    %458 = math.exp %457 : vector<8x256xf32>
    %cst_120 = arith.constant 1.000000e+00 : f32
    %459 = vector.broadcast %cst_120 : f32 to vector<8x256xf32>
    %460 = arith.addf %459, %458 : vector<8x256xf32>
    %461 = arith.divf %459, %460 : vector<8x256xf32>
    %462 = vector.extract_strided_slice %461 {offsets = [0, 0], sizes = [8, 128], strides = [1, 1]} : vector<8x256xf32> to vector<8x128xf32>
    %463 = vector.extract_strided_slice %461 {offsets = [0, 128], sizes = [8, 128], strides = [1, 1]} : vector<8x256xf32> to vector<8x128xf32>
    %464 = vector.extract_strided_slice %455 {offsets = [0, 256], sizes = [8, 128], strides = [1, 1]} : vector<8x512xf32> to vector<8x128xf32>
    %465 = math.tanh %464 : vector<8x128xf32>
    %466 = vector.extract_strided_slice %455 {offsets = [0, 384], sizes = [8, 128], strides = [1, 1]} : vector<8x512xf32> to vector<8x128xf32>
    %467 = arith.negf %466 : vector<8x128xf32>
    %468 = math.exp %467 : vector<8x128xf32>
    %cst_121 = arith.constant 1.000000e+00 : f32
    %469 = vector.broadcast %cst_121 : f32 to vector<8x128xf32>
    %470 = arith.addf %469, %468 : vector<8x128xf32>
    %471 = arith.divf %469, %470 : vector<8x128xf32>
    %472 = arith.mulf %463, %446 : vector<8x128xf32>
    %473 = arith.mulf %462, %465 : vector<8x128xf32>
    %474 = arith.addf %472, %473 : vector<8x128xf32>
    %475 = math.tanh %474 : vector<8x128xf32>
    %476 = arith.mulf %471, %475 : vector<8x128xf32>
    %c7_122 = arith.constant 7 : index
    %c0_123 = arith.constant 0 : index
    %c0_124 = arith.constant 0 : index
    %477 = vector.load %arg15[%c7_122, %c0_123, %c0_124] : memref<8x8x128xf32, #tpu.memory_space<vmem>>, vector<1x8x128xf32>
    %478 = vector.shape_cast %477 : vector<1x8x128xf32> to vector<8x128xf32>
    %479 = vector.shape_cast %476 : vector<8x128xf32> to vector<1x8x128xf32>
    tpu.vector_store %arg15[%c7_122, %c0_123, %c0_124], %479 {strides = array<i32>} : memref<8x8x128xf32, #tpu.memory_space<vmem>>, vector<1x8x128xf32>,
    %c1_125 = arith.constant 1 : index
    %c0_126 = arith.constant 0 : index
    %c0_127 = arith.constant 0 : index
    %480 = vector.load %arg12[%c1_125, %c0_126, %c0_127] : memref<2x8x128xf32, #tpu.memory_space<vmem>>, vector<1x8x128xf32>
    %481 = vector.shape_cast %480 : vector<1x8x128xf32> to vector<8x128xf32>
    %482 = vector.shape_cast %476 : vector<8x128xf32> to vector<1x8x128xf32>
    tpu.vector_store %arg12[%c1_125, %c0_126, %c0_127], %482 {strides = array<i32>} : memref<2x8x128xf32, #tpu.memory_space<vmem>>, vector<1x8x128xf32>,
    %c1_128 = arith.constant 1 : index
    %c0_129 = arith.constant 0 : index
    %c0_130 = arith.constant 0 : index
    %483 = vector.load %arg13[%c1_128, %c0_129, %c0_130] : memref<2x8x128xf32, #tpu.memory_space<vmem>>, vector<1x8x128xf32>
    %484 = vector.shape_cast %483 : vector<1x8x128xf32> to vector<8x128xf32>
    %485 = vector.shape_cast %474 : vector<8x128xf32> to vector<1x8x128xf32>
    tpu.vector_store %arg13[%c1_128, %c0_129, %c0_130], %485 {strides = array<i32>} : memref<2x8x128xf32, #tpu.memory_space<vmem>>, vector<1x8x128xf32>,
    %c0_131 = arith.constant 0 : index
    %c0_132 = arith.constant 0 : index
    %c0_133 = arith.constant 0 : index
    %486 = vector.load %arg15[%c0_131, %c0_132, %c0_133] : memref<8x8x128xf32, #tpu.memory_space<vmem>>, vector<8x8x128xf32>
    %487 = vector.shape_cast %486 : vector<8x8x128xf32> to vector<64x128xf32>
    %c0_134 = arith.constant 0 : index
    %c0_135 = arith.constant 0 : index
    %488 = vector.load %arg9[%c0_134, %c0_135] : memref<128x128xf32, #tpu.memory_space<vmem>>, vector<128x128xf32>
    %c0_136 = arith.constant 0 : index
    %c0_137 = arith.constant 0 : index
    %489 = vector.load %arg10[%c0_136, %c0_137] : memref<1x128xf32, #tpu.memory_space<vmem>>, vector<1x128xf32>
    %cst_138 = arith.constant dense<0.000000e+00> : vector<64x128xf32>
    %490 = tpu.matmul %487, %488, %cst_138 {dimension_numbers = #tpu.dot_dimension_numbers<[1], [0], [0], [1], [0, 0, 1, 1], [], []>} : vector<64x128xf32>, vector<128x128xf32>, vector<64x128xf32> -> vector<64x128xf32>
    %491 = vector.broadcast %489 : vector<1x128xf32> to vector<64x128xf32>
    %492 = arith.addf %490, %491 : vector<64x128xf32>
    %493 = vector.shape_cast %492 : vector<64x128xf32> to vector<8x8x128xf32>
    %c0_139 = arith.constant 0 : index
    %c0_140 = arith.constant 0 : index
    %c0_141 = arith.constant 0 : index
    %494 = vector.load %arg11[%c0_139, %c0_140, %c0_141] : memref<8x8x128xf32, #tpu.memory_space<vmem>>, vector<8x8x128xf32>
    tpu.vector_store %arg11[%c0_139, %c0_140, %c0_141], %493 {strides = array<i32>} : memref<8x8x128xf32, #tpu.memory_space<vmem>>, vector<8x8x128xf32>,
    return
  }
}

</mosaic_0001>

<llo_original>
// kernel: _forward_impl.1
$region0: #{_forward_impl.1}
  #allocation0 [shape = 'u32[]', space=smem, size = 0x4, offset = 0x4, fixed_abs, tag = 'smem constant byte address 0x4 - core index']
  #allocation1 [shape = 'u32[144,128]{1,0:T(1,128)}', space=vmem, size = 0x12000, scoped, tag = 'internal scratch']
  #allocation2 [shape = 'f32[8,8,128]{2,1,0:T(8,128)}', space=vmem, size = 0x8000, scoped, tag = 'scratch operand']
  #allocation3 [shape = 'f32[8,8,128]{2,1,0:T(8,128)}', space=vmem, size = 0x8000, scoped, tag = 'scratch operand']
  %s0 = inlined_call_operand.vmem [shape: f32[8,8,128], index: 0, kind: input, shape index: {}]
  %s1 = inlined_call_operand.vmem [shape: f32[2,8,128], index: 1, kind: input, shape index: {}]
  %s2 = inlined_call_operand.vmem [shape: f32[2,8,128], index: 2, kind: input, shape index: {}]
  %s3 = inlined_call_operand.hbm [shape: f32[128,512], index: 3, kind: input, shape index: {}]
  %s4 = inlined_call_operand.hbm [shape: f32[128,512], index: 4, kind: input, shape index: {}]
  %s5 = inlined_call_operand.vmem [shape: f32[1,512], index: 5, kind: input, shape index: {}]
  %s6 = inlined_call_operand.hbm [shape: f32[128,512], index: 6, kind: input, shape index: {}]
  %s7 = inlined_call_operand.hbm [shape: f32[128,512], index: 7, kind: input, shape index: {}]
  %s8 = inlined_call_operand.vmem [shape: f32[1,512], index: 8, kind: input, shape index: {}]
  %s9 = inlined_call_operand.vmem [shape: f32[128,128], index: 9, kind: input, shape index: {}]
  %s10 = inlined_call_operand.vmem [shape: f32[1,128], index: 10, kind: input, shape index: {}]
  %s11 = inlined_call_operand.vmem [shape: f32[8,8,128], index: 11, kind: output, shape index: {0}]
  %s12 = inlined_call_operand.vmem [shape: f32[2,8,128], index: 12, kind: output, shape index: {1}]
  %s13 = inlined_call_operand.vmem [shape: f32[2,8,128], index: 13, kind: output, shape index: {2}]
  %14 = xla_tuple %s11, %s12, %s13
  %s15 = sld [smem:[#allocation0]]
  $region86: #{_forward_impl.1} parent=0
    _
  %s17 = ssub.s32 1, %s15
  %s18 = scalar_select 0, %s17, %s15
  $region1: #{_forward_impl.1} parent=0
    #allocation4 [shape = 'u8[262144]{0}', space=vmem, size = 0x40000, scoped, tag = 'input window, operand 3, single buffered']
    #allocation5 [shape = 's32[1]{0}', space=sflag, size = 0x4, scoped, tag = 'scoped memory for _forward_impl.1']
    #allocation6 [shape = 'u8[262144]{0}', space=vmem, size = 0x40000, scoped, tag = 'input window, operand 4, single buffered']
    #allocation7 [shape = 's32[1]{0}', space=sflag, size = 0x4, scoped, tag = 'scoped memory for _forward_impl.1']
    #allocation8 [shape = 'u8[262144]{0}', space=vmem, size = 0x40000, scoped, tag = 'input window, operand 6, single buffered']
    #allocation9 [shape = 'u8[262144]{0}', space=vmem, size = 0x40000, scoped, tag = 'input window, operand 7, single buffered']
    #allocation10 [shape = 's32[1]{0}', space=sflag, size = 0x4, scoped, tag = 'scoped memory for _forward_impl.1']
    %19 = vsyncpa [#allocation5], 0
    %20 = vsyncpa [#allocation7], 0
    %21 = vsyncpa [#allocation10], 0
    // Predicated region
    $region2: #{_forward_impl.1} parent=1 // pred_check
      _
    $region3: #{_forward_impl.1} parent=1 // pred_check_branch
      %23 = sbr.rel (0) target = $region5
    $region4: #{_forward_impl.1} parent=1 // pred_region
      _
    $region5: #{_forward_impl.1} parent=1 // pred_fallthru
      _
    // Predicated region
    $region6: #{_forward_impl.1} parent=1 // pred_check
      _
    $region7: #{_forward_impl.1} parent=1 // pred_check_branch
      %25 = sbr.rel (0) target = $region9
    $region8: #{_forward_impl.1} parent=1 // pred_region
      _
    $region9: #{_forward_impl.1} parent=1 // pred_fallthru
      _
    // Predicated region
    $region10: #{_forward_impl.1} parent=1 // pred_check
      _
    $region11: #{_forward_impl.1} parent=1 // pred_check_branch
      %27 = sbr.rel (0) target = $region13
    $region12: #{_forward_impl.1} parent=1 // pred_region
      _
    $region13: #{_forward_impl.1} parent=1 // pred_fallthru
      _
    // Predicated region
    $region14: #{_forward_impl.1} parent=1 // pred_check
      _
    $region15: #{_forward_impl.1} parent=1 // pred_check_branch
      %29 = sbr.rel (0) target = $region17
    $region16: #{_forward_impl.1} parent=1 // pred_region
      %s31 = ssub.s32 8192, 8192
      %32 = vsyncadd [#allocation5], %s31
      %s33 = sshll.u32 [#allocation4], 4
      %s34 = int_to_ptr.vmem [resolvable:$true] %s33
      %39 = dma.hbm_to_vmem [thread:$0]  %s3, 8192, %s34, [#allocation5], 512, 512, 32
    $region17: #{_forward_impl.1} parent=1 // pred_fallthru
      _
    // Predicated region
    $region18: #{_forward_impl.1} parent=1 // pred_check
      _
    $region19: #{_forward_impl.1} parent=1 // pred_check_branch
      %41 = sbr.rel (0) target = $region21
    $region20: #{_forward_impl.1} parent=1 // pred_region
      %s43 = ssub.s32 8192, 8192
      %44 = vsyncadd [#allocation7], %s43
      %s45 = sshll.u32 [#allocation6], 4
      %s46 = int_to_ptr.vmem [resolvable:$true] %s45
      %51 = dma.hbm_to_vmem [thread:$0]  %s4, 8192, %s46, [#allocation7], 512, 512, 32
    $region21: #{_forward_impl.1} parent=1 // pred_fallthru
      _
    // Predicated region
    $region22: #{_forward_impl.1} parent=1 // pred_check
      _
    $region23: #{_forward_impl.1} parent=1 // pred_check_branch
      %53 = sbr.rel (0) target = $region25
    $region24: #{_forward_impl.1} parent=1 // pred_region
      _
    $region25: #{_forward_impl.1} parent=1 // pred_fallthru
      _
    // Predicated region
    $region26: #{_forward_impl.1} parent=1 // pred_check
      _
    $region27: #{_forward_impl.1} parent=1 // pred_check_branch
      %55 = sbr.rel (0) target = $region29
    $region28: #{_forward_impl.1} parent=1 // pred_region
      %s57 = ssub.s32 8192, 8192
      %58 = vsyncadd [#allocation7], %s57
      %s59 = sshll.u32 [#allocation8], 4
      %s60 = int_to_ptr.vmem [resolvable:$true] %s59
      %65 = dma.hbm_to_vmem [thread:$0]  %s6, 8192, %s60, [#allocation7], 512, 512, 32
    $region29: #{_forward_impl.1} parent=1 // pred_fallthru
      _
    // Predicated region
    $region30: #{_forward_impl.1} parent=1 // pred_check
      _
    $region31: #{_forward_impl.1} parent=1 // pred_check_branch
      %67 = sbr.rel (0) target = $region33
    $region32: #{_forward_impl.1} parent=1 // pred_region
      %s69 = ssub.s32 8192, 8192
      %70 = vsyncadd [#allocation10], %s69
      %s71 = sshll.u32 [#allocation9], 4
      %s72 = int_to_ptr.vmem [resolvable:$true] %s71
      %77 = dma.hbm_to_vmem [thread:$0]  %s7, 8192, %s72, [#allocation10], 512, 512, 32
    $region33: #{_forward_impl.1} parent=1 // pred_fallthru
      _
    // Predicated region
    $region34: #{_forward_impl.1} parent=1 // pred_check
      _
    $region35: #{_forward_impl.1} parent=1 // pred_check_branch
      %79 = sbr.rel (0) target = $region37
    $region36: #{_forward_impl.1} parent=1 // pred_region
      _
    $region37: #{_forward_impl.1} parent=1 // pred_fallthru
      _
    // Predicated region
    $region38: #{_forward_impl.1} parent=1 // pred_check
      _
    $region39: #{_forward_impl.1} parent=1 // pred_check_branch
      %81 = sbr.rel (0) target = $region41
    $region40: #{_forward_impl.1} parent=1 // pred_region
      _
    $region41: #{_forward_impl.1} parent=1 // pred_fallthru
      _
    // Predicated region
    $region42: #{_forward_impl.1} parent=1 // pred_check
      _
    $region43: #{_forward_impl.1} parent=1 // pred_check_branch
      %83 = sbr.rel (0) target = $region45
    $region44: #{_forward_impl.1} parent=1 // pred_region
      _
    $region45: #{_forward_impl.1} parent=1 // pred_fallthru
      _
    // Predicated region
    $region46: #{_forward_impl.1} parent=1 // pred_check
      _
    $region47: #{_forward_impl.1} parent=1 // pred_check_branch
      %85 = sbr.rel (0) target = $region49
    $region48: #{_forward_impl.1} parent=1 // pred_region
      %86 = dma.done [#allocation5], 8192
    $region49: #{_forward_impl.1} parent=1 // pred_fallthru
      _
    // Predicated region
    $region50: #{_forward_impl.1} parent=1 // pred_check
      _
    $region51: #{_forward_impl.1} parent=1 // pred_check_branch
      %88 = sbr.rel (0) target = $region53
    $region52: #{_forward_impl.1} parent=1 // pred_region
      %89 = dma.done [#allocation7], 8192
    $region53: #{_forward_impl.1} parent=1 // pred_fallthru
      _
    // Predicated region
    $region54: #{_forward_impl.1} parent=1 // pred_check
      _
    $region55: #{_forward_impl.1} parent=1 // pred_check_branch
      %91 = sbr.rel (0) target = $region57
    $region56: #{_forward_impl.1} parent=1 // pred_region
      %92 = dma.done [#allocation7], 8192
    $region57: #{_forward_impl.1} parent=1 // pred_fallthru
      _
    // Predicated region
    $region58: #{_forward_impl.1} parent=1 // pred_check
      _
    $region59: #{_forward_impl.1} parent=1 // pred_check_branch
      %94 = sbr.rel (0) target = $region61
    $region60: #{_forward_impl.1} parent=1 // pred_region
      %95 = dma.done [#allocation10], 8192
    $region61: #{_forward_impl.1} parent=1 // pred_fallthru
      _
    %v96 = vld [vmem:[%s0] sm:$0xff]
    %v97 = vld [vmem:[%s0 + $0x8] sm:$0xff]
    %v98 = vld [vmem:[%s0 + $0x10] sm:$0xff]
    %v99 = vld [vmem:[%s0 + $0x18] sm:$0xff]
    %v100 = vld [vmem:[%s0 + $0x20] sm:$0xff]
    %v101 = vld [vmem:[%s0 + $0x28] sm:$0xff]
    %v102 = vld [vmem:[%s0 + $0x30] sm:$0xff]
    %v103 = vld [vmem:[%s0 + $0x38] sm:$0xff]
    %v104 = vld [vmem:[#allocation4] sm:$0xff]
    %v105 = vld [vmem:[#allocation4 + $0x8] sm:$0xff]
    %v106 = vld [vmem:[#allocation4 + $0x10] sm:$0xff]
    %v107 = vld [vmem:[#allocation4 + $0x18] sm:$0xff]
    %v108 = vld [vmem:[#allocation4 + $0x20] sm:$0xff]
    %v109 = vld [vmem:[#allocation4 + $0x28] sm:$0xff]
    %v110 = vld [vmem:[#allocation4 + $0x30] sm:$0xff]
    %v111 = vld [vmem:[#allocation4 + $0x38] sm:$0xff]
    %v112 = vld [vmem:[#allocation4 + $0x40] sm:$0xff]
    %v113 = vld [vmem:[#allocation4 + $0x48] sm:$0xff]
    %v114 = vld [vmem:[#allocation4 + $0x50] sm:$0xff]
    %v115 = vld [vmem:[#allocation4 + $0x58] sm:$0xff]
    %v116 = vld [vmem:[#allocation4 + $0x60] sm:$0xff]
    %v117 = vld [vmem:[#allocation4 + $0x68] sm:$0xff]
    %v118 = vld [vmem:[#allocation4 + $0x70] sm:$0xff]
    %v119 = vld [vmem:[#allocation4 + $0x78] sm:$0xff]
    %v120 = vld [vmem:[#allocation4 + $0x80] sm:$0xff]
    %v121 = vld [vmem:[#allocation4 + $0x88] sm:$0xff]
    %v122 = vld [vmem:[#allocation4 + $0x90] sm:$0xff]
    %v123 = vld [vmem:[#allocation4 + $0x98] sm:$0xff]
    %v124 = vld [vmem:[#allocation4 + $0xa0] sm:$0xff]
    %v125 = vld [vmem:[#allocation4 + $0xa8] sm:$0xff]
    %v126 = vld [vmem:[#allocation4 + $0xb0] sm:$0xff]
    %v127 = vld [vmem:[#allocation4 + $0xb8] sm:$0xff]
    %v128 = vld [vmem:[#allocation4 + $0xc0] sm:$0xff]
    %v129 = vld [vmem:[#allocation4 + $0xc8] sm:$0xff]
    %v130 = vld [vmem:[#allocation4 + $0xd0] sm:$0xff]
    %v131 = vld [vmem:[#allocation4 + $0xd8] sm:$0xff]
    %v132 = vld [vmem:[#allocation4 + $0xe0] sm:$0xff]
    %v133 = vld [vmem:[#allocation4 + $0xe8] sm:$0xff]
    %v134 = vld [vmem:[#allocation4 + $0xf0] sm:$0xff]
    %v135 = vld [vmem:[#allocation4 + $0xf8] sm:$0xff]
    %v136 = vld [vmem:[#allocation4 + $0x100] sm:$0xff]
    %v137 = vld [vmem:[#allocation4 + $0x108] sm:$0xff]
    %v138 = vld [vmem:[#allocation4 + $0x110] sm:$0xff]
    %v139 = vld [vmem:[#allocation4 + $0x118] sm:$0xff]
    %v140 = vld [vmem:[#allocation4 + $0x120] sm:$0xff]
    %v141 = vld [vmem:[#allocation4 + $0x128] sm:$0xff]
    %v142 = vld [vmem:[#allocation4 + $0x130] sm:$0xff]
    %v143 = vld [vmem:[#allocation4 + $0x138] sm:$0xff]
    %v144 = vld [vmem:[#allocation4 + $0x140] sm:$0xff]
    %v145 = vld [vmem:[#allocation4 + $0x148] sm:$0xff]
    %v146 = vld [vmem:[#allocation4 + $0x150] sm:$0xff]
    %v147 = vld [vmem:[#allocation4 + $0x158] sm:$0xff]
    %v148 = vld [vmem:[#allocation4 + $0x160] sm:$0xff]
    %v149 = vld [vmem:[#allocation4 + $0x168] sm:$0xff]
    %v150 = vld [vmem:[#allocation4 + $0x170] sm:$0xff]
    %v151 = vld [vmem:[#allocation4 + $0x178] sm:$0xff]
    %v152 = vld [vmem:[#allocation4 + $0x180] sm:$0xff]
    %v153 = vld [vmem:[#allocation4 + $0x188] sm:$0xff]
    %v154 = vld [vmem:[#allocation4 + $0x190] sm:$0xff]
    %v155 = vld [vmem:[#allocation4 + $0x198] sm:$0xff]
    %v156 = vld [vmem:[#allocation4 + $0x1a0] sm:$0xff]
    %v157 = vld [vmem:[#allocation4 + $0x1a8] sm:$0xff]
    %v158 = vld [vmem:[#allocation4 + $0x1b0] sm:$0xff]
    %v159 = vld [vmem:[#allocation4 + $0x1b8] sm:$0xff]
    %v160 = vld [vmem:[#allocation4 + $0x1c0] sm:$0xff]
    %v161 = vld [vmem:[#allocation4 + $0x1c8] sm:$0xff]
    %v162 = vld [vmem:[#allocation4 + $0x1d0] sm:$0xff]
    %v163 = vld [vmem:[#allocation4 + $0x1d8] sm:$0xff]
    %v164 = vld [vmem:[#allocation4 + $0x1e0] sm:$0xff]
    %v165 = vld [vmem:[#allocation4 + $0x1e8] sm:$0xff]
    %v166 = vld [vmem:[#allocation4 + $0x1f0] sm:$0xff]
    %v167 = vld [vmem:[#allocation4 + $0x1f8] sm:$0xff]
    %v168 = vld [vmem:[#allocation6] sm:$0xff]
    %v169 = vld [vmem:[#allocation6 + $0x8] sm:$0xff]
    %v170 = vld [vmem:[#allocation6 + $0x10] sm:$0xff]
    %v171 = vld [vmem:[#allocation6 + $0x18] sm:$0xff]
    %v172 = vld [vmem:[#allocation6 + $0x20] sm:$0xff]
    %v173 = vld [vmem:[#allocation6 + $0x28] sm:$0xff]
    %v174 = vld [vmem:[#allocation6 + $0x30] sm:$0xff]
    %v175 = vld [vmem:[#allocation6 + $0x38] sm:$0xff]
    %v176 = vld [vmem:[#allocation6 + $0x40] sm:$0xff]
    %v177 = vld [vmem:[#allocation6 + $0x48] sm:$0xff]
    %v178 = vld [vmem:[#allocation6 + $0x50] sm:$0xff]
    %v179 = vld [vmem:[#allocation6 + $0x58] sm:$0xff]
    %v180 = vld [vmem:[#allocation6 + $0x60] sm:$0xff]
    %v181 = vld [vmem:[#allocation6 + $0x68] sm:$0xff]
    %v182 = vld [vmem:[#allocation6 + $0x70] sm:$0xff]
    %v183 = vld [vmem:[#allocation6 + $0x78] sm:$0xff]
    %v184 = vld [vmem:[#allocation6 + $0x80] sm:$0xff]
    %v185 = vld [vmem:[#allocation6 + $0x88] sm:$0xff]
    %v186 = vld [vmem:[#allocation6 + $0x90] sm:$0xff]
    %v187 = vld [vmem:[#allocation6 + $0x98] sm:$0xff]
    %v188 = vld [vmem:[#allocation6 + $0xa0] sm:$0xff]
    %v189 = vld [vmem:[#allocation6 + $0xa8] sm:$0xff]
    %v190 = vld [vmem:[#allocation6 + $0xb0] sm:$0xff]
    %v191 = vld [vmem:[#allocation6 + $0xb8] sm:$0xff]
    %v192 = vld [vmem:[#allocation6 + $0xc0] sm:$0xff]
    %v193 = vld [vmem:[#allocation6 + $0xc8] sm:$0xff]
    %v194 = vld [vmem:[#allocation6 + $0xd0] sm:$0xff]
    %v195 = vld [vmem:[#allocation6 + $0xd8] sm:$0xff]
    %v196 = vld [vmem:[#allocation6 + $0xe0] sm:$0xff]
    %v197 = vld [vmem:[#allocation6 + $0xe8] sm:$0xff]
    %v198 = vld [vmem:[#allocation6 + $0xf0] sm:$0xff]
    %v199 = vld [vmem:[#allocation6 + $0xf8] sm:$0xff]
    %v200 = vld [vmem:[#allocation6 + $0x100] sm:$0xff]
    %v201 = vld [vmem:[#allocation6 + $0x108] sm:$0xff]
    %v202 = vld [vmem:[#allocation6 + $0x110] sm:$0xff]
    %v203 = vld [vmem:[#allocation6 + $0x118] sm:$0xff]
    %v204 = vld [vmem:[#allocation6 + $0x120] sm:$0xff]
    %v205 = vld [vmem:[#allocation6 + $0x128] sm:$0xff]
    %v206 = vld [vmem:[#allocation6 + $0x130] sm:$0xff]
    %v207 = vld [vmem:[#allocation6 + $0x138] sm:$0xff]
    %v208 = vld [vmem:[#allocation6 + $0x140] sm:$0xff]
    %v209 = vld [vmem:[#allocation6 + $0x148] sm:$0xff]
    %v210 = vld [vmem:[#allocation6 + $0x150] sm:$0xff]
    %v211 = vld [vmem:[#allocation6 + $0x158] sm:$0xff]
    %v212 = vld [vmem:[#allocation6 + $0x160] sm:$0xff]
    %v213 = vld [vmem:[#allocation6 + $0x168] sm:$0xff]
    %v214 = vld [vmem:[#allocation6 + $0x170] sm:$0xff]
    %v215 = vld [vmem:[#allocation6 + $0x178] sm:$0xff]
    %v216 = vld [vmem:[#allocation6 + $0x180] sm:$0xff]
    %v217 = vld [vmem:[#allocation6 + $0x188] sm:$0xff]
    %v218 = vld [vmem:[#allocation6 + $0x190] sm:$0xff]
    %v219 = vld [vmem:[#allocation6 + $0x198] sm:$0xff]
    %v220 = vld [vmem:[#allocation6 + $0x1a0] sm:$0xff]
    %v221 = vld [vmem:[#allocation6 + $0x1a8] sm:$0xff]
    %v222 = vld [vmem:[#allocation6 + $0x1b0] sm:$0xff]
    %v223 = vld [vmem:[#allocation6 + $0x1b8] sm:$0xff]
    %v224 = vld [vmem:[#allocation6 + $0x1c0] sm:$0xff]
    %v225 = vld [vmem:[#allocation6 + $0x1c8] sm:$0xff]
    %v226 = vld [vmem:[#allocation6 + $0x1d0] sm:$0xff]
    %v227 = vld [vmem:[#allocation6 + $0x1d8] sm:$0xff]
    %v228 = vld [vmem:[#allocation6 + $0x1e0] sm:$0xff]
    %v229 = vld [vmem:[#allocation6 + $0x1e8] sm:$0xff]
    %v230 = vld [vmem:[#allocation6 + $0x1f0] sm:$0xff]
    %v231 = vld [vmem:[#allocation6 + $0x1f8] sm:$0xff]
    %v232 = vld [vmem:[%s5] sm:$0xf]
    %v234 = vlaneseq
    %v235 = vshrl.u32 %v234, 7
    %v236 = vsub.s32 0, %v235
    %v237 = vrot.slane %v232, %v236
    %v238 = vlaneseq
    %v239 = vshrl.u32 %v238, 7
    %v240 = vsub.s32 1, %v239
    %v241 = vrot.slane %v232, %v240
    %v242 = vlaneseq
    %v243 = vshrl.u32 %v242, 7
    %v244 = vsub.s32 2, %v243
    %v245 = vrot.slane %v232, %v244
    %v246 = vlaneseq
    %v247 = vshrl.u32 %v246, 7
    %v248 = vsub.s32 3, %v247
    %v249 = vrot.slane %v232, %v248
    %254 = vmatprep.subr.mxu0 %v105
    %255 = vmatpush1.msra.mxu0 %v104
    %256 = vmatprep.subr.mxu0 %v109
    %257 = vmatpush1.msra.mxu0 %v108
    %258 = vmatprep.subr.mxu0 %v113
    %259 = vmatpush1.msra.mxu0 %v112
    %260 = vmatprep.subr.mxu0 %v117
    %261 = vmatpush1.msra.mxu0 %v116
    %262 = vmatprep.subr.mxu0 %v121
    %263 = vmatpush1.msra.mxu0 %v120
    %264 = vmatprep.subr.mxu0 %v125
    %265 = vmatpush1.msra.mxu0 %v124
    %266 = vmatprep.subr.mxu0 %v129
    %267 = vmatpush1.msra.mxu0 %v128
    %268 = vmatprep.subr.mxu0 %v133
    %269 = vmatpush1.msra.mxu0 %v132
    %270 = vmatprep.subr.mxu0 %v137
    %271 = vmatpush1.msra.mxu0 %v136
    %272 = vmatprep.subr.mxu0 %v141
    %273 = vmatpush1.msra.mxu0 %v140
    %274 = vmatprep.subr.mxu0 %v145
    %275 = vmatpush1.msra.mxu0 %v144
    %276 = vmatprep.subr.mxu0 %v149
    %277 = vmatpush1.msra.mxu0 %v148
    %278 = vmatprep.subr.mxu0 %v153
    %279 = vmatpush1.msra.mxu0 %v152
    %280 = vmatprep.subr.mxu0 %v157
    %281 = vmatpush1.msra.mxu0 %v156
    %282 = vmatprep.subr.mxu0 %v161
    %283 = vmatpush1.msra.mxu0 %v160
    %284 = vmatprep.subr.mxu0 %v165
    %285 = vmatpush1.msra.mxu0 %v164
    %286 = vmatprep.subr.mxu0 0.0
    %287 = vmatpush1.msra.mxu0 0.0
    %288 = vmatprep.subr.mxu0 0.0
    %289 = vmatpush1.msra.mxu0 0.0
    %290 = vmatprep.subr.mxu0 0.0
    %291 = vmatpush1.msra.mxu0 0.0
    %292 = vmatprep.subr.mxu0 0.0
    %293 = vmatpush1.msra.mxu0 0.0
    %294 = vmatprep.subr.mxu0 0.0
    %295 = vmatpush1.msra.mxu0 0.0
    %296 = vmatprep.subr.mxu0 0.0
    %297 = vmatpush1.msra.mxu0 0.0
    %298 = vmatprep.subr.mxu0 0.0
    %299 = vmatpush1.msra.mxu0 0.0
    %300 = vmatprep.subr.mxu0 0.0
    %301 = vmatpush1.msra.mxu0 0.0
    %302 = vmatprep.subr.mxu0 0.0
    %303 = vmatpush1.msra.mxu0 0.0
    %304 = vmatprep.subr.mxu0 0.0
    %305 = vmatpush1.msra.mxu0 0.0
    %306 = vmatprep.subr.mxu0 0.0
    %307 = vmatpush1.msra.mxu0 0.0
    %308 = vmatprep.subr.mxu0 0.0
    %309 = vmatpush1.msra.mxu0 0.0
    %310 = vmatprep.subr.mxu0 0.0
    %311 = vmatpush1.msra.mxu0 0.0
    %312 = vmatprep.subr.mxu0 0.0
    %313 = vmatpush1.msra.mxu0 0.0
    %314 = vmatprep.subr.mxu0 0.0
    %315 = vmatpush1.msra.mxu0 0.0
    %316 = vmatprep.subr.mxu0 0.0
    %317 = vmatpush1.msra.mxu0 0.0
    %318 = vmatprep.mubr.f32.mxu0 0.0
    %319 = vmatmul.mubr.f32.gmra.mrb[0].mxu0 %v96
    %v320 = vpop.f32.mrb[0].mxu0
    %v321 = vadd.f32 %v237, %v320
    %v322 = vpop.f32.mrb[0].mxu0
    %v323 = vadd.f32 %v241, %v322
    %324 = vmatprep.mubr.f32.mxu0 0.0
    %325 = vmatmul.mubr.f32.gmra.mrb[0].mxu0 %v97
    %v326 = vpop.f32.mrb[0].mxu0
    %v327 = vadd.f32 %v237, %v326
    %v328 = vpop.f32.mrb[0].mxu0
    %v329 = vadd.f32 %v241, %v328
    %330 = vmatprep.mubr.f32.mxu0 0.0
    %331 = vmatmul.mubr.f32.gmra.mrb[0].mxu0 %v98
    %v332 = vpop.f32.mrb[0].mxu0
    %v333 = vadd.f32 %v237, %v332
    %v334 = vpop.f32.mrb[0].mxu0
    %v335 = vadd.f32 %v241, %v334
    %336 = vmatprep.mubr.f32.mxu0 0.0
    %337 = vmatmul.mubr.f32.gmra.mrb[0].mxu0 %v99
    %v338 = vpop.f32.mrb[0].mxu0
    %v339 = vadd.f32 %v237, %v338
    %v340 = vpop.f32.mrb[0].mxu0
    %v341 = vadd.f32 %v241, %v340
    %342 = vmatprep.mubr.f32.mxu0 0.0
    %343 = vmatmul.mubr.f32.gmra.mrb[0].mxu0 %v100
    %v344 = vpop.f32.mrb[0].mxu0
    %v345 = vadd.f32 %v237, %v344
    %v346 = vpop.f32.mrb[0].mxu0
    %v347 = vadd.f32 %v241, %v346
    %348 = vmatprep.mubr.f32.mxu0 0.0
    %349 = vmatmul.mubr.f32.gmra.mrb[0].mxu0 %v101
    %v350 = vpop.f32.mrb[0].mxu0
    %v351 = vadd.f32 %v237, %v350
    %v352 = vpop.f32.mrb[0].mxu0
    %v353 = vadd.f32 %v241, %v352
    %354 = vmatprep.mubr.f32.mxu0 0.0
    %355 = vmatmul.mubr.f32.gmra.mrb[0].mxu0 %v102
    %v356 = vpop.f32.mrb[0].mxu0
    %v357 = vadd.f32 %v237, %v356
    %v358 = vpop.f32.mrb[0].mxu0
    %v359 = vadd.f32 %v241, %v358
    %360 = vmatprep.mubr.f32.mxu0 0.0
    %361 = vmatmul.mubr.f32.gmra.mrb[0].mxu0 %v103
    %v362 = vpop.f32.mrb[0].mxu0
    %v363 = vadd.f32 %v237, %v362
    %v364 = vpop.f32.mrb[0].mxu0
    %v365 = vadd.f32 %v241, %v364
    %366 = vdwg.mxu0
    %367 = vmatprep.subr.mxu0 %v107
    %368 = vmatpush1.msra.mxu0 %v106
    %369 = vmatprep.subr.mxu0 %v111
    %370 = vmatpush1.msra.mxu0 %v110
    %371 = vmatprep.subr.mxu0 %v115
    %372 = vmatpush1.msra.mxu0 %v114
    %373 = vmatprep.subr.mxu0 %v119
    %374 = vmatpush1.msra.mxu0 %v118
    %375 = vmatprep.subr.mxu0 %v123
    %376 = vmatpush1.msra.mxu0 %v122
    %377 = vmatprep.subr.mxu0 %v127
    %378 = vmatpush1.msra.mxu0 %v126
    %379 = vmatprep.subr.mxu0 %v131
    %380 = vmatpush1.msra.mxu0 %v130
    %381 = vmatprep.subr.mxu0 %v135
    %382 = vmatpush1.msra.mxu0 %v134
    %383 = vmatprep.subr.mxu0 %v139
    %384 = vmatpush1.msra.mxu0 %v138
    %385 = vmatprep.subr.mxu0 %v143
    %386 = vmatpush1.msra.mxu0 %v142
    %387 = vmatprep.subr.mxu0 %v147
    %388 = vmatpush1.msra.mxu0 %v146
    %389 = vmatprep.subr.mxu0 %v151
    %390 = vmatpush1.msra.mxu0 %v150
    %391 = vmatprep.subr.mxu0 %v155
    %392 = vmatpush1.msra.mxu0 %v154
    %393 = vmatprep.subr.mxu0 %v159
    %394 = vmatpush1.msra.mxu0 %v158
    %395 = vmatprep.subr.mxu0 %v163
    %396 = vmatpush1.msra.mxu0 %v162
    %397 = vmatprep.subr.mxu0 %v167
    %398 = vmatpush1.msra.mxu0 %v166
    %399 = vmatprep.subr.mxu0 0.0
    %400 = vmatpush1.msra.mxu0 0.0
    %401 = vmatprep.subr.mxu0 0.0
    %402 = vmatpush1.msra.mxu0 0.0
    %403 = vmatprep.subr.mxu0 0.0
    %404 = vmatpush1.msra.mxu0 0.0
    %405 = vmatprep.subr.mxu0 0.0
    %406 = vmatpush1.msra.mxu0 0.0
    %407 = vmatprep.subr.mxu0 0.0
    %408 = vmatpush1.msra.mxu0 0.0
    %409 = vmatprep.subr.mxu0 0.0
    %410 = vmatpush1.msra.mxu0 0.0
    %411 = vmatprep.subr.mxu0 0.0
    %412 = vmatpush1.msra.mxu0 0.0
    %413 = vmatprep.subr.mxu0 0.0
    %414 = vmatpush1.msra.mxu0 0.0
    %415 = vmatprep.subr.mxu0 0.0
    %416 = vmatpush1.msra.mxu0 0.0
    %417 = vmatprep.subr.mxu0 0.0
    %418 = vmatpush1.msra.mxu0 0.0
    %419 = vmatprep.subr.mxu0 0.0
    %420 = vmatpush1.msra.mxu0 0.0
    %421 = vmatprep.subr.mxu0 0.0
    %422 = vmatpush1.msra.mxu0 0.0
    %423 = vmatprep.subr.mxu0 0.0
    %424 = vmatpush1.msra.mxu0 0.0
    %425 = vmatprep.subr.mxu0 0.0
    %426 = vmatpush1.msra.mxu0 0.0
    %427 = vmatprep.subr.mxu0 0.0
    %428 = vmatpush1.msra.mxu0 0.0
    %429 = vmatprep.subr.mxu0 0.0
    %430 = vmatpush1.msra.mxu0 0.0
    %431 = vmatprep.mubr.f32.mxu0 0.0
    %432 = vmatmul.mubr.f32.gmra.mrb[0].mxu0 %v96
    %v433 = vpop.f32.mrb[0].mxu0
    %v434 = vadd.f32 %v245, %v433
    %v435 = vpop.f32.mrb[0].mxu0
    %v436 = vadd.f32 %v249, %v435
    %437 = vmatprep.mubr.f32.mxu0 0.0
    %438 = vmatmul.mubr.f32.gmra.mrb[0].mxu0 %v97
    %v439 = vpop.f32.mrb[0].mxu0
    %v440 = vadd.f32 %v245, %v439
    %v441 = vpop.f32.mrb[0].mxu0
    %v442 = vadd.f32 %v249, %v441
    %443 = vmatprep.mubr.f32.mxu0 0.0
    %444 = vmatmul.mubr.f32.gmra.mrb[0].mxu0 %v98
    %v445 = vpop.f32.mrb[0].mxu0
    %v446 = vadd.f32 %v245, %v445
    %v447 = vpop.f32.mrb[0].mxu0
    %v448 = vadd.f32 %v249, %v447
    %449 = vmatprep.mubr.f32.mxu0 0.0
    %450 = vmatmul.mubr.f32.gmra.mrb[0].mxu0 %v99
    %v451 = vpop.f32.mrb[0].mxu0
    %v452 = vadd.f32 %v245, %v451
    %v453 = vpop.f32.mrb[0].mxu0
    %v454 = vadd.f32 %v249, %v453
    %455 = vmatprep.mubr.f32.mxu0 0.0
    %456 = vmatmul.mubr.f32.gmra.mrb[0].mxu0 %v100
    %v457 = vpop.f32.mrb[0].mxu0
    %v458 = vadd.f32 %v245, %v457
    %v459 = vpop.f32.mrb[0].mxu0
    %v460 = vadd.f32 %v249, %v459
    %461 = vmatprep.mubr.f32.mxu0 0.0
    %462 = vmatmul.mubr.f32.gmra.mrb[0].mxu0 %v101
    %v463 = vpop.f32.mrb[0].mxu0
    %v464 = vadd.f32 %v245, %v463
    %v465 = vpop.f32.mrb[0].mxu0
    %v466 = vadd.f32 %v249, %v465
    %467 = vmatprep.mubr.f32.mxu0 0.0
    %468 = vmatmul.mubr.f32.gmra.mrb[0].mxu0 %v102
    %v469 = vpop.f32.mrb[0].mxu0
    %v470 = vadd.f32 %v245, %v469
    %v471 = vpop.f32.mrb[0].mxu0
    %v472 = vadd.f32 %v249, %v471
    %473 = vmatprep.mubr.f32.mxu0 0.0
    %474 = vmatmul.mubr.f32.gmra.mrb[0].mxu0 %v103
    %v475 = vpop.f32.mrb[0].mxu0
    %v476 = vadd.f32 %v245, %v475
    %v477 = vpop.f32.mrb[0].mxu0
    %v478 = vadd.f32 %v249, %v477
    %479 = vdwg.mxu0
    %v480 = vld [vmem:[%s1] sm:$0xff]
    %v481 = vld [vmem:[%s2] sm:$0xff]
    %482 = vmatprep.subr.mxu0 %v169
    %483 = vmatpush1.msra.mxu0 %v168
    %484 = vmatprep.subr.mxu0 %v173
    %485 = vmatpush1.msra.mxu0 %v172
    %486 = vmatprep.subr.mxu0 %v177
    %487 = vmatpush1.msra.mxu0 %v176
    %488 = vmatprep.subr.mxu0 %v181
    %489 = vmatpush1.msra.mxu0 %v180
    %490 = vmatprep.subr.mxu0 %v185
    %491 = vmatpush1.msra.mxu0 %v184
    %492 = vmatprep.subr.mxu0 %v189
    %493 = vmatpush1.msra.mxu0 %v188
    %494 = vmatprep.subr.mxu0 %v193
    %495 = vmatpush1.msra.mxu0 %v192
    %496 = vmatprep.subr.mxu0 %v197
    %497 = vmatpush1.msra.mxu0 %v196
    %498 = vmatprep.subr.mxu0 %v201
    %499 = vmatpush1.msra.mxu0 %v200
    %500 = vmatprep.subr.mxu0 %v205
    %501 = vmatpush1.msra.mxu0 %v204
    %502 = vmatprep.subr.mxu0 %v209
    %503 = vmatpush1.msra.mxu0 %v208
    %504 = vmatprep.subr.mxu0 %v213
    %505 = vmatpush1.msra.mxu0 %v212
    %506 = vmatprep.subr.mxu0 %v217
    %507 = vmatpush1.msra.mxu0 %v216
    %508 = vmatprep.subr.mxu0 %v221
    %509 = vmatpush1.msra.mxu0 %v220
    %510 = vmatprep.subr.mxu0 %v225
    %511 = vmatpush1.msra.mxu0 %v224
    %512 = vmatprep.subr.mxu0 %v229
    %513 = vmatpush1.msra.mxu0 %v228
    %514 = vmatprep.subr.mxu0 0.0
    %515 = vmatpush1.msra.mxu0 0.0
    %516 = vmatprep.subr.mxu0 0.0
    %517 = vmatpush1.msra.mxu0 0.0
    %518 = vmatprep.subr.mxu0 0.0
    %519 = vmatpush1.msra.mxu0 0.0
    %520 = vmatprep.subr.mxu0 0.0
    %521 = vmatpush1.msra.mxu0 0.0
    %522 = vmatprep.subr.mxu0 0.0
    %523 = vmatpush1.msra.mxu0 0.0
    %524 = vmatprep.subr.mxu0 0.0
    %525 = vmatpush1.msra.mxu0 0.0
    %526 = vmatprep.subr.mxu0 0.0
    %527 = vmatpush1.msra.mxu0 0.0
    %528 = vmatprep.subr.mxu0 0.0
    %529 = vmatpush1.msra.mxu0 0.0
    %530 = vmatprep.subr.mxu0 0.0
    %531 = vmatpush1.msra.mxu0 0.0
    %532 = vmatprep.subr.mxu0 0.0
    %533 = vmatpush1.msra.mxu0 0.0
    %534 = vmatprep.subr.mxu0 0.0
    %535 = vmatpush1.msra.mxu0 0.0
    %536 = vmatprep.subr.mxu0 0.0
    %537 = vmatpush1.msra.mxu0 0.0
    %538 = vmatprep.subr.mxu0 0.0
    %539 = vmatpush1.msra.mxu0 0.0
    %540 = vmatprep.subr.mxu0 0.0
    %541 = vmatpush1.msra.mxu0 0.0
    %542 = vmatprep.subr.mxu0 0.0
    %543 = vmatpush1.msra.mxu0 0.0
    %544 = vmatprep.subr.mxu0 0.0
    %545 = vmatpush1.msra.mxu0 0.0
    %546 = vmatprep.mubr.f32.mxu0 0.0
    %547 = vmatmul.mubr.f32.gmra.mrb[0].mxu0 %v480
    %v548 = vpop.f32.mrb[0].mxu0
    %v549 = vadd.f32 0.0, %v548
    %v550 = vpop.f32.mrb[0].mxu0
    %v551 = vadd.f32 0.0, %v550
    %552 = vdwg.mxu0
    %553 = vmatprep.subr.mxu0 %v171
    %554 = vmatpush1.msra.mxu0 %v170
    %555 = vmatprep.subr.mxu0 %v175
    %556 = vmatpush1.msra.mxu0 %v174
    %557 = vmatprep.subr.mxu0 %v179
    %558 = vmatpush1.msra.mxu0 %v178
    %559 = vmatprep.subr.mxu0 %v183
    %560 = vmatpush1.msra.mxu0 %v182
    %561 = vmatprep.subr.mxu0 %v187
    %562 = vmatpush1.msra.mxu0 %v186
    %563 = vmatprep.subr.mxu0 %v191
    %564 = vmatpush1.msra.mxu0 %v190
    %565 = vmatprep.subr.mxu0 %v195
    %566 = vmatpush1.msra.mxu0 %v194
    %567 = vmatprep.subr.mxu0 %v199
    %568 = vmatpush1.msra.mxu0 %v198
    %569 = vmatprep.subr.mxu0 %v203
    %570 = vmatpush1.msra.mxu0 %v202
    %571 = vmatprep.subr.mxu0 %v207
    %572 = vmatpush1.msra.mxu0 %v206
    %573 = vmatprep.subr.mxu0 %v211
    %574 = vmatpush1.msra.mxu0 %v210
    %575 = vmatprep.subr.mxu0 %v215
    %576 = vmatpush1.msra.mxu0 %v214
    %577 = vmatprep.subr.mxu0 %v219
    %578 = vmatpush1.msra.mxu0 %v218
    %579 = vmatprep.subr.mxu0 %v223
    %580 = vmatpush1.msra.mxu0 %v222
    %581 = vmatprep.subr.mxu0 %v227
    %582 = vmatpush1.msra.mxu0 %v226
    %583 = vmatprep.subr.mxu0 %v231
    %584 = vmatpush1.msra.mxu0 %v230
    %585 = vmatprep.subr.mxu0 0.0
    %586 = vmatpush1.msra.mxu0 0.0
    %587 = vmatprep.subr.mxu0 0.0
    %588 = vmatpush1.msra.mxu0 0.0
    %589 = vmatprep.subr.mxu0 0.0
    %590 = vmatpush1.msra.mxu0 0.0
    %591 = vmatprep.subr.mxu0 0.0
    %592 = vmatpush1.msra.mxu0 0.0
    %593 = vmatprep.subr.mxu0 0.0
    %594 = vmatpush1.msra.mxu0 0.0
    %595 = vmatprep.subr.mxu0 0.0
    %596 = vmatpush1.msra.mxu0 0.0
    %597 = vmatprep.subr.mxu0 0.0
    %598 = vmatpush1.msra.mxu0 0.0
    %599 = vmatprep.subr.mxu0 0.0
    %600 = vmatpush1.msra.mxu0 0.0
    %601 = vmatprep.subr.mxu0 0.0
    %602 = vmatpush1.msra.mxu0 0.0
    %603 = vmatprep.subr.mxu0 0.0
    %604 = vmatpush1.msra.mxu0 0.0
    %605 = vmatprep.subr.mxu0 0.0
    %606 = vmatpush1.msra.mxu0 0.0
    %607 = vmatprep.subr.mxu0 0.0
    %608 = vmatpush1.msra.mxu0 0.0
    %609 = vmatprep.subr.mxu0 0.0
    %610 = vmatpush1.msra.mxu0 0.0
    %611 = vmatprep.subr.mxu0 0.0
    %612 = vmatpush1.msra.mxu0 0.0
    %613 = vmatprep.subr.mxu0 0.0
    %614 = vmatpush1.msra.mxu0 0.0
    %615 = vmatprep.subr.mxu0 0.0
    %616 = vmatpush1.msra.mxu0 0.0
    %617 = vmatprep.mubr.f32.mxu0 0.0
    %618 = vmatmul.mubr.f32.gmra.mrb[0].mxu0 %v480
    %v619 = vpop.f32.mrb[0].mxu0
    %v620 = vadd.f32 0.0, %v619
    %v621 = vpop.f32.mrb[0].mxu0
    %v622 = vadd.f32 0.0, %v621
    %623 = vdwg.mxu0
    %v624 = vadd.f32 %v321, %v549
    %v625 = vadd.f32 %v323, %v551
    %v626 = vadd.f32 %v434, %v620
    %v627 = vadd.f32 %v436, %v622
    %v628 = vxor.u32 %v624, 2147483648
    %v629 = vxor.u32 %v625, 2147483648
    %v630 = vmul.f32 %v628, 1.442695
    %v631 = vpow.pop %v630
    %v632 = vmul.f32 %v629, 1.442695
    %v633 = vpow.pop %v632
    %v634 = vadd.f32 %v631, 1.0
    %v635 = vadd.f32 %v633, 1.0
    %v636 = vrcp.pop %v634
    %v637 = vmul.f32 1.0, %v636
    %v638 = vrcp.pop %v635
    %v639 = vmul.f32 1.0, %v638
    %v640 = vtanh.pop %v626
    %v641 = vxor.u32 %v627, 2147483648
    %v642 = vmul.f32 %v641, 1.442695
    %v643 = vpow.pop %v642
    %v644 = vadd.f32 %v643, 1.0
    %v645 = vrcp.pop %v644
    %v646 = vmul.f32 1.0, %v645
    %v647 = vmul.f32 %v639, %v481
    %v648 = vmul.f32 %v637, %v640
    %v649 = vadd.f32 %v647, %v648
    %v650 = vtanh.pop %v649
    %v651 = vmul.f32 %v646, %v650
    %652 = vst [vmem:[#allocation2] sm:$0xff] %v651
    %653 = vmatprep.subr.mxu0 %v169
    %654 = vmatpush1.msra.mxu0 %v168
    %655 = vmatprep.subr.mxu0 %v173
    %656 = vmatpush1.msra.mxu0 %v172
    %657 = vmatprep.subr.mxu0 %v177
    %658 = vmatpush1.msra.mxu0 %v176
    %659 = vmatprep.subr.mxu0 %v181
    %660 = vmatpush1.msra.mxu0 %v180
    %661 = vmatprep.subr.mxu0 %v185
    %662 = vmatpush1.msra.mxu0 %v184
    %663 = vmatprep.subr.mxu0 %v189
    %664 = vmatpush1.msra.mxu0 %v188
    %665 = vmatprep.subr.mxu0 %v193
    %666 = vmatpush1.msra.mxu0 %v192
    %667 = vmatprep.subr.mxu0 %v197
    %668 = vmatpush1.msra.mxu0 %v196
    %669 = vmatprep.subr.mxu0 %v201
    %670 = vmatpush1.msra.mxu0 %v200
    %671 = vmatprep.subr.mxu0 %v205
    %672 = vmatpush1.msra.mxu0 %v204
    %673 = vmatprep.subr.mxu0 %v209
    %674 = vmatpush1.msra.mxu0 %v208
    %675 = vmatprep.subr.mxu0 %v213
    %676 = vmatpush1.msra.mxu0 %v212
    %677 = vmatprep.subr.mxu0 %v217
    %678 = vmatpush1.msra.mxu0 %v216
    %679 = vmatprep.subr.mxu0 %v221
    %680 = vmatpush1.msra.mxu0 %v220
    %681 = vmatprep.subr.mxu0 %v225
    %682 = vmatpush1.msra.mxu0 %v224
    %683 = vmatprep.subr.mxu0 %v229
    %684 = vmatpush1.msra.mxu0 %v228
    %685 = vmatprep.subr.mxu0 0.0
    %686 = vmatpush1.msra.mxu0 0.0
    %687 = vmatprep.subr.mxu0 0.0
    %688 = vmatpush1.msra.mxu0 0.0
    %689 = vmatprep.subr.mxu0 0.0
    %690 = vmatpush1.msra.mxu0 0.0
    %691 = vmatprep.subr.mxu0 0.0
    %692 = vmatpush1.msra.mxu0 0.0
    %693 = vmatprep.subr.mxu0 0.0
    %694 = vmatpush1.msra.mxu0 0.0
    %695 = vmatprep.subr.mxu0 0.0
    %696 = vmatpush1.msra.mxu0 0.0
    %697 = vmatprep.subr.mxu0 0.0
    %698 = vmatpush1.msra.mxu0 0.0
    %699 = vmatprep.subr.mxu0 0.0
    %700 = vmatpush1.msra.mxu0 0.0
    %701 = vmatprep.subr.mxu0 0.0
    %702 = vmatpush1.msra.mxu0 0.0
    %703 = vmatprep.subr.mxu0 0.0
    %704 = vmatpush1.msra.mxu0 0.0
    %705 = vmatprep.subr.mxu0 0.0
    %706 = vmatpush1.msra.mxu0 0.0
    %707 = vmatprep.subr.mxu0 0.0
    %708 = vmatpush1.msra.mxu0 0.0
    %709 = vmatprep.subr.mxu0 0.0
    %710 = vmatpush1.msra.mxu0 0.0
    %711 = vmatprep.subr.mxu0 0.0
    %712 = vmatpush1.msra.mxu0 0.0
    %713 = vmatprep.subr.mxu0 0.0
    %714 = vmatpush1.msra.mxu0 0.0
    %715 = vmatprep.subr.mxu0 0.0
    %716 = vmatpush1.msra.mxu0 0.0
    %717 = vmatprep.mubr.f32.mxu0 0.0
    %718 = vmatmul.mubr.f32.gmra.mrb[0].mxu0 %v651
    %v719 = vpop.f32.mrb[0].mxu0
    %v720 = vadd.f32 0.0, %v719
    %v721 = vpop.f32.mrb[0].mxu0
    %v722 = vadd.f32 0.0, %v721
    %723 = vdwg.mxu0
    %724 = vmatprep.subr.mxu0 %v171
    %725 = vmatpush1.msra.mxu0 %v170
    %726 = vmatprep.subr.mxu0 %v175
    %727 = vmatpush1.msra.mxu0 %v174
    %728 = vmatprep.subr.mxu0 %v179
    %729 = vmatpush1.msra.mxu0 %v178
    %730 = vmatprep.subr.mxu0 %v183
    %731 = vmatpush1.msra.mxu0 %v182
    %732 = vmatprep.subr.mxu0 %v187
    %733 = vmatpush1.msra.mxu0 %v186
    %734 = vmatprep.subr.mxu0 %v191
    %735 = vmatpush1.msra.mxu0 %v190
    %736 = vmatprep.subr.mxu0 %v195
    %737 = vmatpush1.msra.mxu0 %v194
    %738 = vmatprep.subr.mxu0 %v199
    %739 = vmatpush1.msra.mxu0 %v198
    %740 = vmatprep.subr.mxu0 %v203
    %741 = vmatpush1.msra.mxu0 %v202
    %742 = vmatprep.subr.mxu0 %v207
    %743 = vmatpush1.msra.mxu0 %v206
    %744 = vmatprep.subr.mxu0 %v211
    %745 = vmatpush1.msra.mxu0 %v210
    %746 = vmatprep.subr.mxu0 %v215
    %747 = vmatpush1.msra.mxu0 %v214
    %748 = vmatprep.subr.mxu0 %v219
    %749 = vmatpush1.msra.mxu0 %v218
    %750 = vmatprep.subr.mxu0 %v223
    %751 = vmatpush1.msra.mxu0 %v222
    %752 = vmatprep.subr.mxu0 %v227
    %753 = vmatpush1.msra.mxu0 %v226
    %754 = vmatprep.subr.mxu0 %v231
    %755 = vmatpush1.msra.mxu0 %v230
    %756 = vmatprep.subr.mxu0 0.0
    %757 = vmatpush1.msra.mxu0 0.0
    %758 = vmatprep.subr.mxu0 0.0
    %759 = vmatpush1.msra.mxu0 0.0
    %760 = vmatprep.subr.mxu0 0.0
    %761 = vmatpush1.msra.mxu0 0.0
    %762 = vmatprep.subr.mxu0 0.0
    %763 = vmatpush1.msra.mxu0 0.0
    %764 = vmatprep.subr.mxu0 0.0
    %765 = vmatpush1.msra.mxu0 0.0
    %766 = vmatprep.subr.mxu0 0.0
    %767 = vmatpush1.msra.mxu0 0.0
    %768 = vmatprep.subr.mxu0 0.0
    %769 = vmatpush1.msra.mxu0 0.0
    %770 = vmatprep.subr.mxu0 0.0
    %771 = vmatpush1.msra.mxu0 0.0
    %772 = vmatprep.subr.mxu0 0.0
    %773 = vmatpush1.msra.mxu0 0.0
    %774 = vmatprep.subr.mxu0 0.0
    %775 = vmatpush1.msra.mxu0 0.0
    %776 = vmatprep.subr.mxu0 0.0
    %777 = vmatpush1.msra.mxu0 0.0
    %778 = vmatprep.subr.mxu0 0.0
    %779 = vmatpush1.msra.mxu0 0.0
    %780 = vmatprep.subr.mxu0 0.0
    %781 = vmatpush1.msra.mxu0 0.0
    %782 = vmatprep.subr.mxu0 0.0
    %783 = vmatpush1.msra.mxu0 0.0
    %784 = vmatprep.subr.mxu0 0.0
    %785 = vmatpush1.msra.mxu0 0.0
    %786 = vmatprep.subr.mxu0 0.0
    %787 = vmatpush1.msra.mxu0 0.0
    %788 = vmatprep.mubr.f32.mxu0 0.0
    %789 = vmatmul.mubr.f32.gmra.mrb[0].mxu0 %v651
    %v790 = vpop.f32.mrb[0].mxu0
    %v791 = vadd.f32 0.0, %v790
    %v792 = vpop.f32.mrb[0].mxu0
    %v793 = vadd.f32 0.0, %v792
    %794 = vdwg.mxu0
    %v795 = vadd.f32 %v327, %v720
    %v796 = vadd.f32 %v329, %v722
    %v797 = vadd.f32 %v440, %v791
    %v798 = vadd.f32 %v442, %v793
    %v799 = vxor.u32 %v795, 2147483648
    %v800 = vxor.u32 %v796, 2147483648
    %v801 = vmul.f32 %v799, 1.442695
    %v802 = vpow.pop %v801
    %v803 = vmul.f32 %v800, 1.442695
    %v804 = vpow.pop %v803
    %v805 = vadd.f32 %v802, 1.0
    %v806 = vadd.f32 %v804, 1.0
    %v807 = vrcp.pop %v805
    %v808 = vmul.f32 1.0, %v807
    %v809 = vrcp.pop %v806
    %v810 = vmul.f32 1.0, %v809
    %v811 = vtanh.pop %v797
    %v812 = vxor.u32 %v798, 2147483648
    %v813 = vmul.f32 %v812, 1.442695
    %v814 = vpow.pop %v813
    %v815 = vadd.f32 %v814, 1.0
    %v816 = vrcp.pop %v815
    %v817 = vmul.f32 1.0, %v816
    %v818 = vmul.f32 %v810, %v649
    %v819 = vmul.f32 %v808, %v811
    %v820 = vadd.f32 %v818, %v819
    %v821 = vtanh.pop %v820
    %v822 = vmul.f32 %v817, %v821
    %s823 = scalar_lea.vmem [#allocation2], 8
    %824 = vst [vmem:[%s823] sm:$0xff] %v822
    %825 = vmatprep.subr.mxu0 %v169
    %826 = vmatpush1.msra.mxu0 %v168
    %827 = vmatprep.subr.mxu0 %v173
    %828 = vmatpush1.msra.mxu0 %v172
    %829 = vmatprep.subr.mxu0 %v177
    %830 = vmatpush1.msra.mxu0 %v176
    %831 = vmatprep.subr.mxu0 %v181
    %832 = vmatpush1.msra.mxu0 %v180
    %833 = vmatprep.subr.mxu0 %v185
    %834 = vmatpush1.msra.mxu0 %v184
    %835 = vmatprep.subr.mxu0 %v189
    %836 = vmatpush1.msra.mxu0 %v188
    %837 = vmatprep.subr.mxu0 %v193
    %838 = vmatpush1.msra.mxu0 %v192
    %839 = vmatprep.subr.mxu0 %v197
    %840 = vmatpush1.msra.mxu0 %v196
    %841 = vmatprep.subr.mxu0 %v201
    %842 = vmatpush1.msra.mxu0 %v200
    %843 = vmatprep.subr.mxu0 %v205
    %844 = vmatpush1.msra.mxu0 %v204
    %845 = vmatprep.subr.mxu0 %v209
    %846 = vmatpush1.msra.mxu0 %v208
    %847 = vmatprep.subr.mxu0 %v213
    %848 = vmatpush1.msra.mxu0 %v212
    %849 = vmatprep.subr.mxu0 %v217
    %850 = vmatpush1.msra.mxu0 %v216
    %851 = vmatprep.subr.mxu0 %v221
    %852 = vmatpush1.msra.mxu0 %v220
    %853 = vmatprep.subr.mxu0 %v225
    %854 = vmatpush1.msra.mxu0 %v224
    %855 = vmatprep.subr.mxu0 %v229
    %856 = vmatpush1.msra.mxu0 %v228
    %857 = vmatprep.subr.mxu0 0.0
    %858 = vmatpush1.msra.mxu0 0.0
    %859 = vmatprep.subr.mxu0 0.0
    %860 = vmatpush1.msra.mxu0 0.0
    %861 = vmatprep.subr.mxu0 0.0
    %862 = vmatpush1.msra.mxu0 0.0
    %863 = vmatprep.subr.mxu0 0.0
    %864 = vmatpush1.msra.mxu0 0.0
    %865 = vmatprep.subr.mxu0 0.0
    %866 = vmatpush1.msra.mxu0 0.0
    %867 = vmatprep.subr.mxu0 0.0
    %868 = vmatpush1.msra.mxu0 0.0
    %869 = vmatprep.subr.mxu0 0.0
    %870 = vmatpush1.msra.mxu0 0.0
    %871 = vmatprep.subr.mxu0 0.0
    %872 = vmatpush1.msra.mxu0 0.0
    %873 = vmatprep.subr.mxu0 0.0
    %874 = vmatpush1.msra.mxu0 0.0
    %875 = vmatprep.subr.mxu0 0.0
    %876 = vmatpush1.msra.mxu0 0.0
    %877 = vmatprep.subr.mxu0 0.0
    %878 = vmatpush1.msra.mxu0 0.0
    %879 = vmatprep.subr.mxu0 0.0
    %880 = vmatpush1.msra.mxu0 0.0
    %881 = vmatprep.subr.mxu0 0.0
    %882 = vmatpush1.msra.mxu0 0.0
    %883 = vmatprep.subr.mxu0 0.0
    %884 = vmatpush1.msra.mxu0 0.0
    %885 = vmatprep.subr.mxu0 0.0
    %886 = vmatpush1.msra.mxu0 0.0
    %887 = vmatprep.subr.mxu0 0.0
    %888 = vmatpush1.msra.mxu0 0.0
    %889 = vmatprep.mubr.f32.mxu0 0.0
    %890 = vmatmul.mubr.f32.gmra.mrb[0].mxu0 %v822
    %v891 = vpop.f32.mrb[0].mxu0
    %v892 = vadd.f32 0.0, %v891
    %v893 = vpop.f32.mrb[0].mxu0
    %v894 = vadd.f32 0.0, %v893
    %895 = vdwg.mxu0
    %896 = vmatprep.subr.mxu0 %v171
    %897 = vmatpush1.msra.mxu0 %v170
    %898 = vmatprep.subr.mxu0 %v175
    %899 = vmatpush1.msra.mxu0 %v174
    %900 = vmatprep.subr.mxu0 %v179
    %901 = vmatpush1.msra.mxu0 %v178
    %902 = vmatprep.subr.mxu0 %v183
    %903 = vmatpush1.msra.mxu0 %v182
    %904 = vmatprep.subr.mxu0 %v187
    %905 = vmatpush1.msra.mxu0 %v186
    %906 = vmatprep.subr.mxu0 %v191
    %907 = vmatpush1.msra.mxu0 %v190
    %908 = vmatprep.subr.mxu0 %v195
    %909 = vmatpush1.msra.mxu0 %v194
    %910 = vmatprep.subr.mxu0 %v199
    %911 = vmatpush1.msra.mxu0 %v198
    %912 = vmatprep.subr.mxu0 %v203
    %913 = vmatpush1.msra.mxu0 %v202
    %914 = vmatprep.subr.mxu0 %v207
    %915 = vmatpush1.msra.mxu0 %v206
    %916 = vmatprep.subr.mxu0 %v211
    %917 = vmatpush1.msra.mxu0 %v210
    %918 = vmatprep.subr.mxu0 %v215
    %919 = vmatpush1.msra.mxu0 %v214
    %920 = vmatprep.subr.mxu0 %v219
    %921 = vmatpush1.msra.mxu0 %v218
    %922 = vmatprep.subr.mxu0 %v223
    %923 = vmatpush1.msra.mxu0 %v222
    %924 = vmatprep.subr.mxu0 %v227
    %925 = vmatpush1.msra.mxu0 %v226
    %926 = vmatprep.subr.mxu0 %v231
    %927 = vmatpush1.msra.mxu0 %v230
    %928 = vmatprep.subr.mxu0 0.0
    %929 = vmatpush1.msra.mxu0 0.0
    %930 = vmatprep.subr.mxu0 0.0
    %931 = vmatpush1.msra.mxu0 0.0
    %932 = vmatprep.subr.mxu0 0.0
    %933 = vmatpush1.msra.mxu0 0.0
    %934 = vmatprep.subr.mxu0 0.0
    %935 = vmatpush1.msra.mxu0 0.0
    %936 = vmatprep.subr.mxu0 0.0
    %937 = vmatpush1.msra.mxu0 0.0
    %938 = vmatprep.subr.mxu0 0.0
    %939 = vmatpush1.msra.mxu0 0.0
    %940 = vmatprep.subr.mxu0 0.0
    %941 = vmatpush1.msra.mxu0 0.0
    %942 = vmatprep.subr.mxu0 0.0
    %943 = vmatpush1.msra.mxu0 0.0
    %944 = vmatprep.subr.mxu0 0.0
    %945 = vmatpush1.msra.mxu0 0.0
    %946 = vmatprep.subr.mxu0 0.0
    %947 = vmatpush1.msra.mxu0 0.0
    %948 = vmatprep.subr.mxu0 0.0
    %949 = vmatpush1.msra.mxu0 0.0
    %950 = vmatprep.subr.mxu0 0.0
    %951 = vmatpush1.msra.mxu0 0.0
    %952 = vmatprep.subr.mxu0 0.0
    %953 = vmatpush1.msra.mxu0 0.0
    %954 = vmatprep.subr.mxu0 0.0
    %955 = vmatpush1.msra.mxu0 0.0
    %956 = vmatprep.subr.mxu0 0.0
    %957 = vmatpush1.msra.mxu0 0.0
    %958 = vmatprep.subr.mxu0 0.0
    %959 = vmatpush1.msra.mxu0 0.0
    %960 = vmatprep.mubr.f32.mxu0 0.0
    %961 = vmatmul.mubr.f32.gmra.mrb[0].mxu0 %v822
    %v962 = vpop.f32.mrb[0].mxu0
    %v963 = vadd.f32 0.0, %v962
    %v964 = vpop.f32.mrb[0].mxu0
    %v965 = vadd.f32 0.0, %v964
    %966 = vdwg.mxu0
    %v967 = vadd.f32 %v333, %v892
    %v968 = vadd.f32 %v335, %v894
    %v969 = vadd.f32 %v446, %v963
    %v970 = vadd.f32 %v448, %v965
    %v971 = vxor.u32 %v967, 2147483648
    %v972 = vxor.u32 %v968, 2147483648
    %v973 = vmul.f32 %v971, 1.442695
    %v974 = vpow.pop %v973
    %v975 = vmul.f32 %v972, 1.442695
    %v976 = vpow.pop %v975
    %v977 = vadd.f32 %v974, 1.0
    %v978 = vadd.f32 %v976, 1.0
    %v979 = vrcp.pop %v977
    %v980 = vmul.f32 1.0, %v979
    %v981 = vrcp.pop %v978
    %v982 = vmul.f32 1.0, %v981
    %v983 = vtanh.pop %v969
    %v984 = vxor.u32 %v970, 2147483648
    %v985 = vmul.f32 %v984, 1.442695
    %v986 = vpow.pop %v985
    %v987 = vadd.f32 %v986, 1.0
    %v988 = vrcp.pop %v987
    %v989 = vmul.f32 1.0, %v988
    %v990 = vmul.f32 %v982, %v820
    %v991 = vmul.f32 %v980, %v983
    %v992 = vadd.f32 %v990, %v991
    %v993 = vtanh.pop %v992
    %v994 = vmul.f32 %v989, %v993
    %s995 = scalar_lea.vmem [#allocation2], 16
    %996 = vst [vmem:[%s995] sm:$0xff] %v994
    %997 = vmatprep.subr.mxu0 %v169
    %998 = vmatpush1.msra.mxu0 %v168
    %999 = vmatprep.subr.mxu0 %v173
    %1000 = vmatpush1.msra.mxu0 %v172
    %1001 = vmatprep.subr.mxu0 %v177
    %1002 = vmatpush1.msra.mxu0 %v176
    %1003 = vmatprep.subr.mxu0 %v181
    %1004 = vmatpush1.msra.mxu0 %v180
    %1005 = vmatprep.subr.mxu0 %v185
    %1006 = vmatpush1.msra.mxu0 %v184
    %1007 = vmatprep.subr.mxu0 %v189
    %1008 = vmatpush1.msra.mxu0 %v188
    %1009 = vmatprep.subr.mxu0 %v193
    %1010 = vmatpush1.msra.mxu0 %v192
    %1011 = vmatprep.subr.mxu0 %v197
    %1012 = vmatpush1.msra.mxu0 %v196
    %1013 = vmatprep.subr.mxu0 %v201
    %1014 = vmatpush1.msra.mxu0 %v200
    %1015 = vmatprep.subr.mxu0 %v205
    %1016 = vmatpush1.msra.mxu0 %v204
    %1017 = vmatprep.subr.mxu0 %v209
    %1018 = vmatpush1.msra.mxu0 %v208
    %1019 = vmatprep.subr.mxu0 %v213
    %1020 = vmatpush1.msra.mxu0 %v212
    %1021 = vmatprep.subr.mxu0 %v217
    %1022 = vmatpush1.msra.mxu0 %v216
    %1023 = vmatprep.subr.mxu0 %v221
    %1024 = vmatpush1.msra.mxu0 %v220
    %1025 = vmatprep.subr.mxu0 %v225
    %1026 = vmatpush1.msra.mxu0 %v224
    %1027 = vmatprep.subr.mxu0 %v229
    %1028 = vmatpush1.msra.mxu0 %v228
    %1029 = vmatprep.subr.mxu0 0.0
    %1030 = vmatpush1.msra.mxu0 0.0
    %1031 = vmatprep.subr.mxu0 0.0
    %1032 = vmatpush1.msra.mxu0 0.0
    %1033 = vmatprep.subr.mxu0 0.0
    %1034 = vmatpush1.msra.mxu0 0.0
    %1035 = vmatprep.subr.mxu0 0.0
    %1036 = vmatpush1.msra.mxu0 0.0
    %1037 = vmatprep.subr.mxu0 0.0
    %1038 = vmatpush1.msra.mxu0 0.0
    %1039 = vmatprep.subr.mxu0 0.0
    %1040 = vmatpush1.msra.mxu0 0.0
    %1041 = vmatprep.subr.mxu0 0.0
    %1042 = vmatpush1.msra.mxu0 0.0
    %1043 = vmatprep.subr.mxu0 0.0
    %1044 = vmatpush1.msra.mxu0 0.0
    %1045 = vmatprep.subr.mxu0 0.0
    %1046 = vmatpush1.msra.mxu0 0.0
    %1047 = vmatprep.subr.mxu0 0.0
    %1048 = vmatpush1.msra.mxu0 0.0
    %1049 = vmatprep.subr.mxu0 0.0
    %1050 = vmatpush1.msra.mxu0 0.0
    %1051 = vmatprep.subr.mxu0 0.0
    %1052 = vmatpush1.msra.mxu0 0.0
    %1053 = vmatprep.subr.mxu0 0.0
    %1054 = vmatpush1.msra.mxu0 0.0
    %1055 = vmatprep.subr.mxu0 0.0
    %1056 = vmatpush1.msra.mxu0 0.0
    %1057 = vmatprep.subr.mxu0 0.0
    %1058 = vmatpush1.msra.mxu0 0.0
    %1059 = vmatprep.subr.mxu0 0.0
    %1060 = vmatpush1.msra.mxu0 0.0
    %1061 = vmatprep.mubr.f32.mxu0 0.0
    %1062 = vmatmul.mubr.f32.gmra.mrb[0].mxu0 %v994
    %v1063 = vpop.f32.mrb[0].mxu0
    %v1064 = vadd.f32 0.0, %v1063
    %v1065 = vpop.f32.mrb[0].mxu0
    %v1066 = vadd.f32 0.0, %v1065
    %1067 = vdwg.mxu0
    %1068 = vmatprep.subr.mxu0 %v171
    %1069 = vmatpush1.msra.mxu0 %v170
    %1070 = vmatprep.subr.mxu0 %v175
    %1071 = vmatpush1.msra.mxu0 %v174
    %1072 = vmatprep.subr.mxu0 %v179
    %1073 = vmatpush1.msra.mxu0 %v178
    %1074 = vmatprep.subr.mxu0 %v183
    %1075 = vmatpush1.msra.mxu0 %v182
    %1076 = vmatprep.subr.mxu0 %v187
    %1077 = vmatpush1.msra.mxu0 %v186
    %1078 = vmatprep.subr.mxu0 %v191
    %1079 = vmatpush1.msra.mxu0 %v190
    %1080 = vmatprep.subr.mxu0 %v195
    %1081 = vmatpush1.msra.mxu0 %v194
    %1082 = vmatprep.subr.mxu0 %v199
    %1083 = vmatpush1.msra.mxu0 %v198
    %1084 = vmatprep.subr.mxu0 %v203
    %1085 = vmatpush1.msra.mxu0 %v202
    %1086 = vmatprep.subr.mxu0 %v207
    %1087 = vmatpush1.msra.mxu0 %v206
    %1088 = vmatprep.subr.mxu0 %v211
    %1089 = vmatpush1.msra.mxu0 %v210
    %1090 = vmatprep.subr.mxu0 %v215
    %1091 = vmatpush1.msra.mxu0 %v214
    %1092 = vmatprep.subr.mxu0 %v219
    %1093 = vmatpush1.msra.mxu0 %v218
    %1094 = vmatprep.subr.mxu0 %v223
    %1095 = vmatpush1.msra.mxu0 %v222
    %1096 = vmatprep.subr.mxu0 %v227
    %1097 = vmatpush1.msra.mxu0 %v226
    %1098 = vmatprep.subr.mxu0 %v231
    %1099 = vmatpush1.msra.mxu0 %v230
    %1100 = vmatprep.subr.mxu0 0.0
    %1101 = vmatpush1.msra.mxu0 0.0
    %1102 = vmatprep.subr.mxu0 0.0
    %1103 = vmatpush1.msra.mxu0 0.0
    %1104 = vmatprep.subr.mxu0 0.0
    %1105 = vmatpush1.msra.mxu0 0.0
    %1106 = vmatprep.subr.mxu0 0.0
    %1107 = vmatpush1.msra.mxu0 0.0
    %1108 = vmatprep.subr.mxu0 0.0
    %1109 = vmatpush1.msra.mxu0 0.0
    %1110 = vmatprep.subr.mxu0 0.0
    %1111 = vmatpush1.msra.mxu0 0.0
    %1112 = vmatprep.subr.mxu0 0.0
    %1113 = vmatpush1.msra.mxu0 0.0
    %1114 = vmatprep.subr.mxu0 0.0
    %1115 = vmatpush1.msra.mxu0 0.0
    %1116 = vmatprep.subr.mxu0 0.0
    %1117 = vmatpush1.msra.mxu0 0.0
    %1118 = vmatprep.subr.mxu0 0.0
    %1119 = vmatpush1.msra.mxu0 0.0
    %1120 = vmatprep.subr.mxu0 0.0
    %1121 = vmatpush1.msra.mxu0 0.0
    %1122 = vmatprep.subr.mxu0 0.0
    %1123 = vmatpush1.msra.mxu0 0.0
    %1124 = vmatprep.subr.mxu0 0.0
    %1125 = vmatpush1.msra.mxu0 0.0
    %1126 = vmatprep.subr.mxu0 0.0
    %1127 = vmatpush1.msra.mxu0 0.0
    %1128 = vmatprep.subr.mxu0 0.0
    %1129 = vmatpush1.msra.mxu0 0.0
    %1130 = vmatprep.subr.mxu0 0.0
    %1131 = vmatpush1.msra.mxu0 0.0
    %1132 = vmatprep.mubr.f32.mxu0 0.0
    %1133 = vmatmul.mubr.f32.gmra.mrb[0].mxu0 %v994
    %v1134 = vpop.f32.mrb[0].mxu0
    %v1135 = vadd.f32 0.0, %v1134
    %v1136 = vpop.f32.mrb[0].mxu0
    %v1137 = vadd.f32 0.0, %v1136
    %1138 = vdwg.mxu0
    %v1139 = vadd.f32 %v339, %v1064
    %v1140 = vadd.f32 %v341, %v1066
    %v1141 = vadd.f32 %v452, %v1135
    %v1142 = vadd.f32 %v454, %v1137
    %v1143 = vxor.u32 %v1139, 2147483648
    %v1144 = vxor.u32 %v1140, 2147483648
    %v1145 = vmul.f32 %v1143, 1.442695
    %v1146 = vpow.pop %v1145
    %v1147 = vmul.f32 %v1144, 1.442695
    %v1148 = vpow.pop %v1147
    %v1149 = vadd.f32 %v1146, 1.0
    %v1150 = vadd.f32 %v1148, 1.0
    %v1151 = vrcp.pop %v1149
    %v1152 = vmul.f32 1.0, %v1151
    %v1153 = vrcp.pop %v1150
    %v1154 = vmul.f32 1.0, %v1153
    %v1155 = vtanh.pop %v1141
    %v1156 = vxor.u32 %v1142, 2147483648
    %v1157 = vmul.f32 %v1156, 1.442695
    %v1158 = vpow.pop %v1157
    %v1159 = vadd.f32 %v1158, 1.0
    %v1160 = vrcp.pop %v1159
    %v1161 = vmul.f32 1.0, %v1160
    %v1162 = vmul.f32 %v1154, %v992
    %v1163 = vmul.f32 %v1152, %v1155
    %v1164 = vadd.f32 %v1162, %v1163
    %v1165 = vtanh.pop %v1164
    %v1166 = vmul.f32 %v1161, %v1165
    %s1167 = scalar_lea.vmem [#allocation2], 24
    %1168 = vst [vmem:[%s1167] sm:$0xff] %v1166
    %1169 = vmatprep.subr.mxu0 %v169
    %1170 = vmatpush1.msra.mxu0 %v168
    %1171 = vmatprep.subr.mxu0 %v173
    %1172 = vmatpush1.msra.mxu0 %v172
    %1173 = vmatprep.subr.mxu0 %v177
    %1174 = vmatpush1.msra.mxu0 %v176
    %1175 = vmatprep.subr.mxu0 %v181
    %1176 = vmatpush1.msra.mxu0 %v180
    %1177 = vmatprep.subr.mxu0 %v185
    %1178 = vmatpush1.msra.mxu0 %v184
    %1179 = vmatprep.subr.mxu0 %v189
    %1180 = vmatpush1.msra.mxu0 %v188
    %1181 = vmatprep.subr.mxu0 %v193
    %1182 = vmatpush1.msra.mxu0 %v192
    %1183 = vmatprep.subr.mxu0 %v197
    %1184 = vmatpush1.msra.mxu0 %v196
    %1185 = vmatprep.subr.mxu0 %v201
    %1186 = vmatpush1.msra.mxu0 %v200
    %1187 = vmatprep.subr.mxu0 %v205
    %1188 = vmatpush1.msra.mxu0 %v204
    %1189 = vmatprep.subr.mxu0 %v209
    %1190 = vmatpush1.msra.mxu0 %v208
    %1191 = vmatprep.subr.mxu0 %v213
    %1192 = vmatpush1.msra.mxu0 %v212
    %1193 = vmatprep.subr.mxu0 %v217
    %1194 = vmatpush1.msra.mxu0 %v216
    %1195 = vmatprep.subr.mxu0 %v221
    %1196 = vmatpush1.msra.mxu0 %v220
    %1197 = vmatprep.subr.mxu0 %v225
    %1198 = vmatpush1.msra.mxu0 %v224
    %1199 = vmatprep.subr.mxu0 %v229
    %1200 = vmatpush1.msra.mxu0 %v228
    %1201 = vmatprep.subr.mxu0 0.0
    %1202 = vmatpush1.msra.mxu0 0.0
    %1203 = vmatprep.subr.mxu0 0.0
    %1204 = vmatpush1.msra.mxu0 0.0
    %1205 = vmatprep.subr.mxu0 0.0
    %1206 = vmatpush1.msra.mxu0 0.0
    %1207 = vmatprep.subr.mxu0 0.0
    %1208 = vmatpush1.msra.mxu0 0.0
    %1209 = vmatprep.subr.mxu0 0.0
    %1210 = vmatpush1.msra.mxu0 0.0
    %1211 = vmatprep.subr.mxu0 0.0
    %1212 = vmatpush1.msra.mxu0 0.0
    %1213 = vmatprep.subr.mxu0 0.0
    %1214 = vmatpush1.msra.mxu0 0.0
    %1215 = vmatprep.subr.mxu0 0.0
    %1216 = vmatpush1.msra.mxu0 0.0
    %1217 = vmatprep.subr.mxu0 0.0
    %1218 = vmatpush1.msra.mxu0 0.0
    %1219 = vmatprep.subr.mxu0 0.0
    %1220 = vmatpush1.msra.mxu0 0.0
    %1221 = vmatprep.subr.mxu0 0.0
    %1222 = vmatpush1.msra.mxu0 0.0
    %1223 = vmatprep.subr.mxu0 0.0
    %1224 = vmatpush1.msra.mxu0 0.0
    %1225 = vmatprep.subr.mxu0 0.0
    %1226 = vmatpush1.msra.mxu0 0.0
    %1227 = vmatprep.subr.mxu0 0.0
    %1228 = vmatpush1.msra.mxu0 0.0
    %1229 = vmatprep.subr.mxu0 0.0
    %1230 = vmatpush1.msra.mxu0 0.0
    %1231 = vmatprep.subr.mxu0 0.0
    %1232 = vmatpush1.msra.mxu0 0.0
    %1233 = vmatprep.mubr.f32.mxu0 0.0
    %1234 = vmatmul.mubr.f32.gmra.mrb[0].mxu0 %v1166
    %v1235 = vpop.f32.mrb[0].mxu0
    %v1236 = vadd.f32 0.0, %v1235
    %v1237 = vpop.f32.mrb[0].mxu0
    %v1238 = vadd.f32 0.0, %v1237
    %1239 = vdwg.mxu0
    %1240 = vmatprep.subr.mxu0 %v171
    %1241 = vmatpush1.msra.mxu0 %v170
    %1242 = vmatprep.subr.mxu0 %v175
    %1243 = vmatpush1.msra.mxu0 %v174
    %1244 = vmatprep.subr.mxu0 %v179
    %1245 = vmatpush1.msra.mxu0 %v178
    %1246 = vmatprep.subr.mxu0 %v183
    %1247 = vmatpush1.msra.mxu0 %v182
    %1248 = vmatprep.subr.mxu0 %v187
    %1249 = vmatpush1.msra.mxu0 %v186
    %1250 = vmatprep.subr.mxu0 %v191
    %1251 = vmatpush1.msra.mxu0 %v190
    %1252 = vmatprep.subr.mxu0 %v195
    %1253 = vmatpush1.msra.mxu0 %v194
    %1254 = vmatprep.subr.mxu0 %v199
    %1255 = vmatpush1.msra.mxu0 %v198
    %1256 = vmatprep.subr.mxu0 %v203
    %1257 = vmatpush1.msra.mxu0 %v202
    %1258 = vmatprep.subr.mxu0 %v207
    %1259 = vmatpush1.msra.mxu0 %v206
    %1260 = vmatprep.subr.mxu0 %v211
    %1261 = vmatpush1.msra.mxu0 %v210
    %1262 = vmatprep.subr.mxu0 %v215
    %1263 = vmatpush1.msra.mxu0 %v214
    %1264 = vmatprep.subr.mxu0 %v219
    %1265 = vmatpush1.msra.mxu0 %v218
    %1266 = vmatprep.subr.mxu0 %v223
    %1267 = vmatpush1.msra.mxu0 %v222
    %1268 = vmatprep.subr.mxu0 %v227
    %1269 = vmatpush1.msra.mxu0 %v226
    %1270 = vmatprep.subr.mxu0 %v231
    %1271 = vmatpush1.msra.mxu0 %v230
    %1272 = vmatprep.subr.mxu0 0.0
    %1273 = vmatpush1.msra.mxu0 0.0
    %1274 = vmatprep.subr.mxu0 0.0
    %1275 = vmatpush1.msra.mxu0 0.0
    %1276 = vmatprep.subr.mxu0 0.0
    %1277 = vmatpush1.msra.mxu0 0.0
    %1278 = vmatprep.subr.mxu0 0.0
    %1279 = vmatpush1.msra.mxu0 0.0
    %1280 = vmatprep.subr.mxu0 0.0
    %1281 = vmatpush1.msra.mxu0 0.0
    %1282 = vmatprep.subr.mxu0 0.0
    %1283 = vmatpush1.msra.mxu0 0.0
    %1284 = vmatprep.subr.mxu0 0.0
    %1285 = vmatpush1.msra.mxu0 0.0
    %1286 = vmatprep.subr.mxu0 0.0
    %1287 = vmatpush1.msra.mxu0 0.0
    %1288 = vmatprep.subr.mxu0 0.0
    %1289 = vmatpush1.msra.mxu0 0.0
    %1290 = vmatprep.subr.mxu0 0.0
    %1291 = vmatpush1.msra.mxu0 0.0
    %1292 = vmatprep.subr.mxu0 0.0
    %1293 = vmatpush1.msra.mxu0 0.0
    %1294 = vmatprep.subr.mxu0 0.0
    %1295 = vmatpush1.msra.mxu0 0.0
    %1296 = vmatprep.subr.mxu0 0.0
    %1297 = vmatpush1.msra.mxu0 0.0
    %1298 = vmatprep.subr.mxu0 0.0
    %1299 = vmatpush1.msra.mxu0 0.0
    %1300 = vmatprep.subr.mxu0 0.0
    %1301 = vmatpush1.msra.mxu0 0.0
    %1302 = vmatprep.subr.mxu0 0.0
    %1303 = vmatpush1.msra.mxu0 0.0
    %1304 = vmatprep.mubr.f32.mxu0 0.0
    %1305 = vmatmul.mubr.f32.gmra.mrb[0].mxu0 %v1166
    %v1306 = vpop.f32.mrb[0].mxu0
    %v1307 = vadd.f32 0.0, %v1306
    %v1308 = vpop.f32.mrb[0].mxu0
    %v1309 = vadd.f32 0.0, %v1308
    %1310 = vdwg.mxu0
    %v1311 = vadd.f32 %v345, %v1236
    %v1312 = vadd.f32 %v347, %v1238
    %v1313 = vadd.f32 %v458, %v1307
    %v1314 = vadd.f32 %v460, %v1309
    %v1315 = vxor.u32 %v1311, 2147483648
    %v1316 = vxor.u32 %v1312, 2147483648
    %v1317 = vmul.f32 %v1315, 1.442695
    %v1318 = vpow.pop %v1317
    %v1319 = vmul.f32 %v1316, 1.442695
    %v1320 = vpow.pop %v1319
    %v1321 = vadd.f32 %v1318, 1.0
    %v1322 = vadd.f32 %v1320, 1.0
    %v1323 = vrcp.pop %v1321
    %v1324 = vmul.f32 1.0, %v1323
    %v1325 = vrcp.pop %v1322
    %v1326 = vmul.f32 1.0, %v1325
    %v1327 = vtanh.pop %v1313
    %v1328 = vxor.u32 %v1314, 2147483648
    %v1329 = vmul.f32 %v1328, 1.442695
    %v1330 = vpow.pop %v1329
    %v1331 = vadd.f32 %v1330, 1.0
    %v1332 = vrcp.pop %v1331
    %v1333 = vmul.f32 1.0, %v1332
    %v1334 = vmul.f32 %v1326, %v1164
    %v1335 = vmul.f32 %v1324, %v1327
    %v1336 = vadd.f32 %v1334, %v1335
    %v1337 = vtanh.pop %v1336
    %v1338 = vmul.f32 %v1333, %v1337
    %s1339 = scalar_lea.vmem [#allocation2], 32
    %1340 = vst [vmem:[%s1339] sm:$0xff] %v1338
    %1341 = vmatprep.subr.mxu0 %v169
    %1342 = vmatpush1.msra.mxu0 %v168
    %1343 = vmatprep.subr.mxu0 %v173
    %1344 = vmatpush1.msra.mxu0 %v172
    %1345 = vmatprep.subr.mxu0 %v177
    %1346 = vmatpush1.msra.mxu0 %v176
    %1347 = vmatprep.subr.mxu0 %v181
    %1348 = vmatpush1.msra.mxu0 %v180
    %1349 = vmatprep.subr.mxu0 %v185
    %1350 = vmatpush1.msra.mxu0 %v184
    %1351 = vmatprep.subr.mxu0 %v189
    %1352 = vmatpush1.msra.mxu0 %v188
    %1353 = vmatprep.subr.mxu0 %v193
    %1354 = vmatpush1.msra.mxu0 %v192
    %1355 = vmatprep.subr.mxu0 %v197
    %1356 = vmatpush1.msra.mxu0 %v196
    %1357 = vmatprep.subr.mxu0 %v201
    %1358 = vmatpush1.msra.mxu0 %v200
    %1359 = vmatprep.subr.mxu0 %v205
    %1360 = vmatpush1.msra.mxu0 %v204
    %1361 = vmatprep.subr.mxu0 %v209
    %1362 = vmatpush1.msra.mxu0 %v208
    %1363 = vmatprep.subr.mxu0 %v213
    %1364 = vmatpush1.msra.mxu0 %v212
    %1365 = vmatprep.subr.mxu0 %v217
    %1366 = vmatpush1.msra.mxu0 %v216
    %1367 = vmatprep.subr.mxu0 %v221
    %1368 = vmatpush1.msra.mxu0 %v220
    %1369 = vmatprep.subr.mxu0 %v225
    %1370 = vmatpush1.msra.mxu0 %v224
    %1371 = vmatprep.subr.mxu0 %v229
    %1372 = vmatpush1.msra.mxu0 %v228
    %1373 = vmatprep.subr.mxu0 0.0
    %1374 = vmatpush1.msra.mxu0 0.0
    %1375 = vmatprep.subr.mxu0 0.0
    %1376 = vmatpush1.msra.mxu0 0.0
    %1377 = vmatprep.subr.mxu0 0.0
    %1378 = vmatpush1.msra.mxu0 0.0
    %1379 = vmatprep.subr.mxu0 0.0
    %1380 = vmatpush1.msra.mxu0 0.0
    %1381 = vmatprep.subr.mxu0 0.0
    %1382 = vmatpush1.msra.mxu0 0.0
    %1383 = vmatprep.subr.mxu0 0.0
    %1384 = vmatpush1.msra.mxu0 0.0
    %1385 = vmatprep.subr.mxu0 0.0
    %1386 = vmatpush1.msra.mxu0 0.0
    %1387 = vmatprep.subr.mxu0 0.0
    %1388 = vmatpush1.msra.mxu0 0.0
    %1389 = vmatprep.subr.mxu0 0.0
    %1390 = vmatpush1.msra.mxu0 0.0
    %1391 = vmatprep.subr.mxu0 0.0
    %1392 = vmatpush1.msra.mxu0 0.0
    %1393 = vmatprep.subr.mxu0 0.0
    %1394 = vmatpush1.msra.mxu0 0.0
    %1395 = vmatprep.subr.mxu0 0.0
    %1396 = vmatpush1.msra.mxu0 0.0
    %1397 = vmatprep.subr.mxu0 0.0
    %1398 = vmatpush1.msra.mxu0 0.0
    %1399 = vmatprep.subr.mxu0 0.0
    %1400 = vmatpush1.msra.mxu0 0.0
    %1401 = vmatprep.subr.mxu0 0.0
    %1402 = vmatpush1.msra.mxu0 0.0
    %1403 = vmatprep.subr.mxu0 0.0
    %1404 = vmatpush1.msra.mxu0 0.0
    %1405 = vmatprep.mubr.f32.mxu0 0.0
    %1406 = vmatmul.mubr.f32.gmra.mrb[0].mxu0 %v1338
    %v1407 = vpop.f32.mrb[0].mxu0
    %v1408 = vadd.f32 0.0, %v1407
    %v1409 = vpop.f32.mrb[0].mxu0
    %v1410 = vadd.f32 0.0, %v1409
    %1411 = vdwg.mxu0
    %1412 = vmatprep.subr.mxu0 %v171
    %1413 = vmatpush1.msra.mxu0 %v170
    %1414 = vmatprep.subr.mxu0 %v175
    %1415 = vmatpush1.msra.mxu0 %v174
    %1416 = vmatprep.subr.mxu0 %v179
    %1417 = vmatpush1.msra.mxu0 %v178
    %1418 = vmatprep.subr.mxu0 %v183
    %1419 = vmatpush1.msra.mxu0 %v182
    %1420 = vmatprep.subr.mxu0 %v187
    %1421 = vmatpush1.msra.mxu0 %v186
    %1422 = vmatprep.subr.mxu0 %v191
    %1423 = vmatpush1.msra.mxu0 %v190
    %1424 = vmatprep.subr.mxu0 %v195
    %1425 = vmatpush1.msra.mxu0 %v194
    %1426 = vmatprep.subr.mxu0 %v199
    %1427 = vmatpush1.msra.mxu0 %v198
    %1428 = vmatprep.subr.mxu0 %v203
    %1429 = vmatpush1.msra.mxu0 %v202
    %1430 = vmatprep.subr.mxu0 %v207
    %1431 = vmatpush1.msra.mxu0 %v206
    %1432 = vmatprep.subr.mxu0 %v211
    %1433 = vmatpush1.msra.mxu0 %v210
    %1434 = vmatprep.subr.mxu0 %v215
    %1435 = vmatpush1.msra.mxu0 %v214
    %1436 = vmatprep.subr.mxu0 %v219
    %1437 = vmatpush1.msra.mxu0 %v218
    %1438 = vmatprep.subr.mxu0 %v223
    %1439 = vmatpush1.msra.mxu0 %v222
    %1440 = vmatprep.subr.mxu0 %v227
    %1441 = vmatpush1.msra.mxu0 %v226
    %1442 = vmatprep.subr.mxu0 %v231
    %1443 = vmatpush1.msra.mxu0 %v230
    %1444 = vmatprep.subr.mxu0 0.0
    %1445 = vmatpush1.msra.mxu0 0.0
    %1446 = vmatprep.subr.mxu0 0.0
    %1447 = vmatpush1.msra.mxu0 0.0
    %1448 = vmatprep.subr.mxu0 0.0
    %1449 = vmatpush1.msra.mxu0 0.0
    %1450 = vmatprep.subr.mxu0 0.0
    %1451 = vmatpush1.msra.mxu0 0.0
    %1452 = vmatprep.subr.mxu0 0.0
    %1453 = vmatpush1.msra.mxu0 0.0
    %1454 = vmatprep.subr.mxu0 0.0
    %1455 = vmatpush1.msra.mxu0 0.0
    %1456 = vmatprep.subr.mxu0 0.0
    %1457 = vmatpush1.msra.mxu0 0.0
    %1458 = vmatprep.subr.mxu0 0.0
    %1459 = vmatpush1.msra.mxu0 0.0
    %1460 = vmatprep.subr.mxu0 0.0
    %1461 = vmatpush1.msra.mxu0 0.0
    %1462 = vmatprep.subr.mxu0 0.0
    %1463 = vmatpush1.msra.mxu0 0.0
    %1464 = vmatprep.subr.mxu0 0.0
    %1465 = vmatpush1.msra.mxu0 0.0
    %1466 = vmatprep.subr.mxu0 0.0
    %1467 = vmatpush1.msra.mxu0 0.0
    %1468 = vmatprep.subr.mxu0 0.0
    %1469 = vmatpush1.msra.mxu0 0.0
    %1470 = vmatprep.subr.mxu0 0.0
    %1471 = vmatpush1.msra.mxu0 0.0
    %1472 = vmatprep.subr.mxu0 0.0
    %1473 = vmatpush1.msra.mxu0 0.0
    %1474 = vmatprep.subr.mxu0 0.0
    %1475 = vmatpush1.msra.mxu0 0.0
    %1476 = vmatprep.mubr.f32.mxu0 0.0
    %1477 = vmatmul.mubr.f32.gmra.mrb[0].mxu0 %v1338
    %v1478 = vpop.f32.mrb[0].mxu0
    %v1479 = vadd.f32 0.0, %v1478
    %v1480 = vpop.f32.mrb[0].mxu0
    %v1481 = vadd.f32 0.0, %v1480
    %1482 = vdwg.mxu0
    %v1483 = vadd.f32 %v351, %v1408
    %v1484 = vadd.f32 %v353, %v1410
    %v1485 = vadd.f32 %v464, %v1479
    %v1486 = vadd.f32 %v466, %v1481
    %v1487 = vxor.u32 %v1483, 2147483648
    %v1488 = vxor.u32 %v1484, 2147483648
    %v1489 = vmul.f32 %v1487, 1.442695
    %v1490 = vpow.pop %v1489
    %v1491 = vmul.f32 %v1488, 1.442695
    %v1492 = vpow.pop %v1491
    %v1493 = vadd.f32 %v1490, 1.0
    %v1494 = vadd.f32 %v1492, 1.0
    %v1495 = vrcp.pop %v1493
    %v1496 = vmul.f32 1.0, %v1495
    %v1497 = vrcp.pop %v1494
    %v1498 = vmul.f32 1.0, %v1497
    %v1499 = vtanh.pop %v1485
    %v1500 = vxor.u32 %v1486, 2147483648
    %v1501 = vmul.f32 %v1500, 1.442695
    %v1502 = vpow.pop %v1501
    %v1503 = vadd.f32 %v1502, 1.0
    %v1504 = vrcp.pop %v1503
    %v1505 = vmul.f32 1.0, %v1504
    %v1506 = vmul.f32 %v1498, %v1336
    %v1507 = vmul.f32 %v1496, %v1499
    %v1508 = vadd.f32 %v1506, %v1507
    %v1509 = vtanh.pop %v1508
    %v1510 = vmul.f32 %v1505, %v1509
    %s1511 = scalar_lea.vmem [#allocation2], 40
    %1512 = vst [vmem:[%s1511] sm:$0xff] %v1510
    %1513 = vmatprep.subr.mxu0 %v169
    %1514 = vmatpush1.msra.mxu0 %v168
    %1515 = vmatprep.subr.mxu0 %v173
    %1516 = vmatpush1.msra.mxu0 %v172
    %1517 = vmatprep.subr.mxu0 %v177
    %1518 = vmatpush1.msra.mxu0 %v176
    %1519 = vmatprep.subr.mxu0 %v181
    %1520 = vmatpush1.msra.mxu0 %v180
    %1521 = vmatprep.subr.mxu0 %v185
    %1522 = vmatpush1.msra.mxu0 %v184
    %1523 = vmatprep.subr.mxu0 %v189
    %1524 = vmatpush1.msra.mxu0 %v188
    %1525 = vmatprep.subr.mxu0 %v193
    %1526 = vmatpush1.msra.mxu0 %v192
    %1527 = vmatprep.subr.mxu0 %v197
    %1528 = vmatpush1.msra.mxu0 %v196
    %1529 = vmatprep.subr.mxu0 %v201
    %1530 = vmatpush1.msra.mxu0 %v200
    %1531 = vmatprep.subr.mxu0 %v205
    %1532 = vmatpush1.msra.mxu0 %v204
    %1533 = vmatprep.subr.mxu0 %v209
    %1534 = vmatpush1.msra.mxu0 %v208
    %1535 = vmatprep.subr.mxu0 %v213
    %1536 = vmatpush1.msra.mxu0 %v212
    %1537 = vmatprep.subr.mxu0 %v217
    %1538 = vmatpush1.msra.mxu0 %v216
    %1539 = vmatprep.subr.mxu0 %v221
    %1540 = vmatpush1.msra.mxu0 %v220
    %1541 = vmatprep.subr.mxu0 %v225
    %1542 = vmatpush1.msra.mxu0 %v224
    %1543 = vmatprep.subr.mxu0 %v229
    %1544 = vmatpush1.msra.mxu0 %v228
    %1545 = vmatprep.subr.mxu0 0.0
    %1546 = vmatpush1.msra.mxu0 0.0
    %1547 = vmatprep.subr.mxu0 0.0
    %1548 = vmatpush1.msra.mxu0 0.0
    %1549 = vmatprep.subr.mxu0 0.0
    %1550 = vmatpush1.msra.mxu0 0.0
    %1551 = vmatprep.subr.mxu0 0.0
    %1552 = vmatpush1.msra.mxu0 0.0
    %1553 = vmatprep.subr.mxu0 0.0
    %1554 = vmatpush1.msra.mxu0 0.0
    %1555 = vmatprep.subr.mxu0 0.0
    %1556 = vmatpush1.msra.mxu0 0.0
    %1557 = vmatprep.subr.mxu0 0.0
    %1558 = vmatpush1.msra.mxu0 0.0
    %1559 = vmatprep.subr.mxu0 0.0
    %1560 = vmatpush1.msra.mxu0 0.0
    %1561 = vmatprep.subr.mxu0 0.0
    %1562 = vmatpush1.msra.mxu0 0.0
    %1563 = vmatprep.subr.mxu0 0.0
    %1564 = vmatpush1.msra.mxu0 0.0
    %1565 = vmatprep.subr.mxu0 0.0
    %1566 = vmatpush1.msra.mxu0 0.0
    %1567 = vmatprep.subr.mxu0 0.0
    %1568 = vmatpush1.msra.mxu0 0.0
    %1569 = vmatprep.subr.mxu0 0.0
    %1570 = vmatpush1.msra.mxu0 0.0
    %1571 = vmatprep.subr.mxu0 0.0
    %1572 = vmatpush1.msra.mxu0 0.0
    %1573 = vmatprep.subr.mxu0 0.0
    %1574 = vmatpush1.msra.mxu0 0.0
    %1575 = vmatprep.subr.mxu0 0.0
    %1576 = vmatpush1.msra.mxu0 0.0
    %1577 = vmatprep.mubr.f32.mxu0 0.0
    %1578 = vmatmul.mubr.f32.gmra.mrb[0].mxu0 %v1510
    %v1579 = vpop.f32.mrb[0].mxu0
    %v1580 = vadd.f32 0.0, %v1579
    %v1581 = vpop.f32.mrb[0].mxu0
    %v1582 = vadd.f32 0.0, %v1581
    %1583 = vdwg.mxu0
    %1584 = vmatprep.subr.mxu0 %v171
    %1585 = vmatpush1.msra.mxu0 %v170
    %1586 = vmatprep.subr.mxu0 %v175
    %1587 = vmatpush1.msra.mxu0 %v174
    %1588 = vmatprep.subr.mxu0 %v179
    %1589 = vmatpush1.msra.mxu0 %v178
    %1590 = vmatprep.subr.mxu0 %v183
    %1591 = vmatpush1.msra.mxu0 %v182
    %1592 = vmatprep.subr.mxu0 %v187
    %1593 = vmatpush1.msra.mxu0 %v186
    %1594 = vmatprep.subr.mxu0 %v191
    %1595 = vmatpush1.msra.mxu0 %v190
    %1596 = vmatprep.subr.mxu0 %v195
    %1597 = vmatpush1.msra.mxu0 %v194
    %1598 = vmatprep.subr.mxu0 %v199
    %1599 = vmatpush1.msra.mxu0 %v198
    %1600 = vmatprep.subr.mxu0 %v203
    %1601 = vmatpush1.msra.mxu0 %v202
    %1602 = vmatprep.subr.mxu0 %v207
    %1603 = vmatpush1.msra.mxu0 %v206
    %1604 = vmatprep.subr.mxu0 %v211
    %1605 = vmatpush1.msra.mxu0 %v210
    %1606 = vmatprep.subr.mxu0 %v215
    %1607 = vmatpush1.msra.mxu0 %v214
    %1608 = vmatprep.subr.mxu0 %v219
    %1609 = vmatpush1.msra.mxu0 %v218
    %1610 = vmatprep.subr.mxu0 %v223
    %1611 = vmatpush1.msra.mxu0 %v222
    %1612 = vmatprep.subr.mxu0 %v227
    %1613 = vmatpush1.msra.mxu0 %v226
    %1614 = vmatprep.subr.mxu0 %v231
    %1615 = vmatpush1.msra.mxu0 %v230
    %1616 = vmatprep.subr.mxu0 0.0
    %1617 = vmatpush1.msra.mxu0 0.0
    %1618 = vmatprep.subr.mxu0 0.0
    %1619 = vmatpush1.msra.mxu0 0.0
    %1620 = vmatprep.subr.mxu0 0.0
    %1621 = vmatpush1.msra.mxu0 0.0
    %1622 = vmatprep.subr.mxu0 0.0
    %1623 = vmatpush1.msra.mxu0 0.0
    %1624 = vmatprep.subr.mxu0 0.0
    %1625 = vmatpush1.msra.mxu0 0.0
    %1626 = vmatprep.subr.mxu0 0.0
    %1627 = vmatpush1.msra.mxu0 0.0
    %1628 = vmatprep.subr.mxu0 0.0
    %1629 = vmatpush1.msra.mxu0 0.0
    %1630 = vmatprep.subr.mxu0 0.0
    %1631 = vmatpush1.msra.mxu0 0.0
    %1632 = vmatprep.subr.mxu0 0.0
    %1633 = vmatpush1.msra.mxu0 0.0
    %1634 = vmatprep.subr.mxu0 0.0
    %1635 = vmatpush1.msra.mxu0 0.0
    %1636 = vmatprep.subr.mxu0 0.0
    %1637 = vmatpush1.msra.mxu0 0.0
    %1638 = vmatprep.subr.mxu0 0.0
    %1639 = vmatpush1.msra.mxu0 0.0
    %1640 = vmatprep.subr.mxu0 0.0
    %1641 = vmatpush1.msra.mxu0 0.0
    %1642 = vmatprep.subr.mxu0 0.0
    %1643 = vmatpush1.msra.mxu0 0.0
    %1644 = vmatprep.subr.mxu0 0.0
    %1645 = vmatpush1.msra.mxu0 0.0
    %1646 = vmatprep.subr.mxu0 0.0
    %1647 = vmatpush1.msra.mxu0 0.0
    %1648 = vmatprep.mubr.f32.mxu0 0.0
    %1649 = vmatmul.mubr.f32.gmra.mrb[0].mxu0 %v1510
    %v1650 = vpop.f32.mrb[0].mxu0
    %v1651 = vadd.f32 0.0, %v1650
    %v1652 = vpop.f32.mrb[0].mxu0
    %v1653 = vadd.f32 0.0, %v1652
    %1654 = vdwg.mxu0
    %v1655 = vadd.f32 %v357, %v1580
    %v1656 = vadd.f32 %v359, %v1582
    %v1657 = vadd.f32 %v470, %v1651
    %v1658 = vadd.f32 %v472, %v1653
    %v1659 = vxor.u32 %v1655, 2147483648
    %v1660 = vxor.u32 %v1656, 2147483648
    %v1661 = vmul.f32 %v1659, 1.442695
    %v1662 = vpow.pop %v1661
    %v1663 = vmul.f32 %v1660, 1.442695
    %v1664 = vpow.pop %v1663
    %v1665 = vadd.f32 %v1662, 1.0
    %v1666 = vadd.f32 %v1664, 1.0
    %v1667 = vrcp.pop %v1665
    %v1668 = vmul.f32 1.0, %v1667
    %v1669 = vrcp.pop %v1666
    %v1670 = vmul.f32 1.0, %v1669
    %v1671 = vtanh.pop %v1657
    %v1672 = vxor.u32 %v1658, 2147483648
    %v1673 = vmul.f32 %v1672, 1.442695
    %v1674 = vpow.pop %v1673
    %v1675 = vadd.f32 %v1674, 1.0
    %v1676 = vrcp.pop %v1675
    %v1677 = vmul.f32 1.0, %v1676
    %v1678 = vmul.f32 %v1670, %v1508
    %v1679 = vmul.f32 %v1668, %v1671
    %v1680 = vadd.f32 %v1678, %v1679
    %v1681 = vtanh.pop %v1680
    %v1682 = vmul.f32 %v1677, %v1681
    %s1683 = scalar_lea.vmem [#allocation2], 48
    %1684 = vst [vmem:[%s1683] sm:$0xff] %v1682
    %1685 = vmatprep.subr.mxu0 %v169
    %1686 = vmatpush1.msra.mxu0 %v168
    %1687 = vmatprep.subr.mxu0 %v173
    %1688 = vmatpush1.msra.mxu0 %v172
    %1689 = vmatprep.subr.mxu0 %v177
    %1690 = vmatpush1.msra.mxu0 %v176
    %1691 = vmatprep.subr.mxu0 %v181
    %1692 = vmatpush1.msra.mxu0 %v180
    %1693 = vmatprep.subr.mxu0 %v185
    %1694 = vmatpush1.msra.mxu0 %v184
    %1695 = vmatprep.subr.mxu0 %v189
    %1696 = vmatpush1.msra.mxu0 %v188
    %1697 = vmatprep.subr.mxu0 %v193
    %1698 = vmatpush1.msra.mxu0 %v192
    %1699 = vmatprep.subr.mxu0 %v197
    %1700 = vmatpush1.msra.mxu0 %v196
    %1701 = vmatprep.subr.mxu0 %v201
    %1702 = vmatpush1.msra.mxu0 %v200
    %1703 = vmatprep.subr.mxu0 %v205
    %1704 = vmatpush1.msra.mxu0 %v204
    %1705 = vmatprep.subr.mxu0 %v209
    %1706 = vmatpush1.msra.mxu0 %v208
    %1707 = vmatprep.subr.mxu0 %v213
    %1708 = vmatpush1.msra.mxu0 %v212
    %1709 = vmatprep.subr.mxu0 %v217
    %1710 = vmatpush1.msra.mxu0 %v216
    %1711 = vmatprep.subr.mxu0 %v221
    %1712 = vmatpush1.msra.mxu0 %v220
    %1713 = vmatprep.subr.mxu0 %v225
    %1714 = vmatpush1.msra.mxu0 %v224
    %1715 = vmatprep.subr.mxu0 %v229
    %1716 = vmatpush1.msra.mxu0 %v228
    %1717 = vmatprep.subr.mxu0 0.0
    %1718 = vmatpush1.msra.mxu0 0.0
    %1719 = vmatprep.subr.mxu0 0.0
    %1720 = vmatpush1.msra.mxu0 0.0
    %1721 = vmatprep.subr.mxu0 0.0
    %1722 = vmatpush1.msra.mxu0 0.0
    %1723 = vmatprep.subr.mxu0 0.0
    %1724 = vmatpush1.msra.mxu0 0.0
    %1725 = vmatprep.subr.mxu0 0.0
    %1726 = vmatpush1.msra.mxu0 0.0
    %1727 = vmatprep.subr.mxu0 0.0
    %1728 = vmatpush1.msra.mxu0 0.0
    %1729 = vmatprep.subr.mxu0 0.0
    %1730 = vmatpush1.msra.mxu0 0.0
    %1731 = vmatprep.subr.mxu0 0.0
    %1732 = vmatpush1.msra.mxu0 0.0
    %1733 = vmatprep.subr.mxu0 0.0
    %1734 = vmatpush1.msra.mxu0 0.0
    %1735 = vmatprep.subr.mxu0 0.0
    %1736 = vmatpush1.msra.mxu0 0.0
    %1737 = vmatprep.subr.mxu0 0.0
    %1738 = vmatpush1.msra.mxu0 0.0
    %1739 = vmatprep.subr.mxu0 0.0
    %1740 = vmatpush1.msra.mxu0 0.0
    %1741 = vmatprep.subr.mxu0 0.0
    %1742 = vmatpush1.msra.mxu0 0.0
    %1743 = vmatprep.subr.mxu0 0.0
    %1744 = vmatpush1.msra.mxu0 0.0
    %1745 = vmatprep.subr.mxu0 0.0
    %1746 = vmatpush1.msra.mxu0 0.0
    %1747 = vmatprep.subr.mxu0 0.0
    %1748 = vmatpush1.msra.mxu0 0.0
    %1749 = vmatprep.mubr.f32.mxu0 0.0
    %1750 = vmatmul.mubr.f32.gmra.mrb[0].mxu0 %v1682
    %v1751 = vpop.f32.mrb[0].mxu0
    %v1752 = vadd.f32 0.0, %v1751
    %v1753 = vpop.f32.mrb[0].mxu0
    %v1754 = vadd.f32 0.0, %v1753
    %1755 = vdwg.mxu0
    %1756 = vmatprep.subr.mxu0 %v171
    %1757 = vmatpush1.msra.mxu0 %v170
    %1758 = vmatprep.subr.mxu0 %v175
    %1759 = vmatpush1.msra.mxu0 %v174
    %1760 = vmatprep.subr.mxu0 %v179
    %1761 = vmatpush1.msra.mxu0 %v178
    %1762 = vmatprep.subr.mxu0 %v183
    %1763 = vmatpush1.msra.mxu0 %v182
    %1764 = vmatprep.subr.mxu0 %v187
    %1765 = vmatpush1.msra.mxu0 %v186
    %1766 = vmatprep.subr.mxu0 %v191
    %1767 = vmatpush1.msra.mxu0 %v190
    %1768 = vmatprep.subr.mxu0 %v195
    %1769 = vmatpush1.msra.mxu0 %v194
    %1770 = vmatprep.subr.mxu0 %v199
    %1771 = vmatpush1.msra.mxu0 %v198
    %1772 = vmatprep.subr.mxu0 %v203
    %1773 = vmatpush1.msra.mxu0 %v202
    %1774 = vmatprep.subr.mxu0 %v207
    %1775 = vmatpush1.msra.mxu0 %v206
    %1776 = vmatprep.subr.mxu0 %v211
    %1777 = vmatpush1.msra.mxu0 %v210
    %1778 = vmatprep.subr.mxu0 %v215
    %1779 = vmatpush1.msra.mxu0 %v214
    %1780 = vmatprep.subr.mxu0 %v219
    %1781 = vmatpush1.msra.mxu0 %v218
    %1782 = vmatprep.subr.mxu0 %v223
    %1783 = vmatpush1.msra.mxu0 %v222
    %1784 = vmatprep.subr.mxu0 %v227
    %1785 = vmatpush1.msra.mxu0 %v226
    %1786 = vmatprep.subr.mxu0 %v231
    %1787 = vmatpush1.msra.mxu0 %v230
    %1788 = vmatprep.subr.mxu0 0.0
    %1789 = vmatpush1.msra.mxu0 0.0
    %1790 = vmatprep.subr.mxu0 0.0
    %1791 = vmatpush1.msra.mxu0 0.0
    %1792 = vmatprep.subr.mxu0 0.0
    %1793 = vmatpush1.msra.mxu0 0.0
    %1794 = vmatprep.subr.mxu0 0.0
    %1795 = vmatpush1.msra.mxu0 0.0
    %1796 = vmatprep.subr.mxu0 0.0
    %1797 = vmatpush1.msra.mxu0 0.0
    %1798 = vmatprep.subr.mxu0 0.0
    %1799 = vmatpush1.msra.mxu0 0.0
    %1800 = vmatprep.subr.mxu0 0.0
    %1801 = vmatpush1.msra.mxu0 0.0
    %1802 = vmatprep.subr.mxu0 0.0
    %1803 = vmatpush1.msra.mxu0 0.0
    %1804 = vmatprep.subr.mxu0 0.0
    %1805 = vmatpush1.msra.mxu0 0.0
    %1806 = vmatprep.subr.mxu0 0.0
    %1807 = vmatpush1.msra.mxu0 0.0
    %1808 = vmatprep.subr.mxu0 0.0
    %1809 = vmatpush1.msra.mxu0 0.0
    %1810 = vmatprep.subr.mxu0 0.0
    %1811 = vmatpush1.msra.mxu0 0.0
    %1812 = vmatprep.subr.mxu0 0.0
    %1813 = vmatpush1.msra.mxu0 0.0
    %1814 = vmatprep.subr.mxu0 0.0
    %1815 = vmatpush1.msra.mxu0 0.0
    %1816 = vmatprep.subr.mxu0 0.0
    %1817 = vmatpush1.msra.mxu0 0.0
    %1818 = vmatprep.subr.mxu0 0.0
    %1819 = vmatpush1.msra.mxu0 0.0
    %1820 = vmatprep.mubr.f32.mxu0 0.0
    %1821 = vmatmul.mubr.f32.gmra.mrb[0].mxu0 %v1682
    %v1822 = vpop.f32.mrb[0].mxu0
    %v1823 = vadd.f32 0.0, %v1822
    %v1824 = vpop.f32.mrb[0].mxu0
    %v1825 = vadd.f32 0.0, %v1824
    %1826 = vdwg.mxu0
    %v1827 = vadd.f32 %v363, %v1752
    %v1828 = vadd.f32 %v365, %v1754
    %v1829 = vadd.f32 %v476, %v1823
    %v1830 = vadd.f32 %v478, %v1825
    %v1831 = vxor.u32 %v1827, 2147483648
    %v1832 = vxor.u32 %v1828, 2147483648
    %v1833 = vmul.f32 %v1831, 1.442695
    %v1834 = vpow.pop %v1833
    %v1835 = vmul.f32 %v1832, 1.442695
    %v1836 = vpow.pop %v1835
    %v1837 = vadd.f32 %v1834, 1.0
    %v1838 = vadd.f32 %v1836, 1.0
    %v1839 = vrcp.pop %v1837
    %v1840 = vmul.f32 1.0, %v1839
    %v1841 = vrcp.pop %v1838
    %v1842 = vmul.f32 1.0, %v1841
    %v1843 = vtanh.pop %v1829
    %v1844 = vxor.u32 %v1830, 2147483648
    %v1845 = vmul.f32 %v1844, 1.442695
    %v1846 = vpow.pop %v1845
    %v1847 = vadd.f32 %v1846, 1.0
    %v1848 = vrcp.pop %v1847
    %v1849 = vmul.f32 1.0, %v1848
    %v1850 = vmul.f32 %v1842, %v1680
    %v1851 = vmul.f32 %v1840, %v1843
    %v1852 = vadd.f32 %v1850, %v1851
    %v1853 = vtanh.pop %v1852
    %v1854 = vmul.f32 %v1849, %v1853
    %s1855 = scalar_lea.vmem [#allocation2], 56
    %1856 = vst [vmem:[%s1855] sm:$0xff] %v1854
    %1857 = vst [vmem:[%s12] sm:$0xff] %v1854
    %1858 = vst [vmem:[%s13] sm:$0xff] %v1852
    %v1859 = vld [vmem:[#allocation2] sm:$0xff]
    %v1860 = vld [vmem:[#allocation2 + $0x8] sm:$0xff]
    %v1861 = vld [vmem:[#allocation2 + $0x10] sm:$0xff]
    %v1862 = vld [vmem:[#allocation2 + $0x18] sm:$0xff]
    %v1863 = vld [vmem:[#allocation2 + $0x20] sm:$0xff]
    %v1864 = vld [vmem:[#allocation2 + $0x28] sm:$0xff]
    %v1865 = vld [vmem:[#allocation2 + $0x30] sm:$0xff]
    %v1866 = vld [vmem:[#allocation2 + $0x38] sm:$0xff]
    %v1867 = vld [vmem:[#allocation8] sm:$0xff]
    %v1868 = vld [vmem:[#allocation8 + $0x8] sm:$0xff]
    %v1869 = vld [vmem:[#allocation8 + $0x10] sm:$0xff]
    %v1870 = vld [vmem:[#allocation8 + $0x18] sm:$0xff]
    %v1871 = vld [vmem:[#allocation8 + $0x20] sm:$0xff]
    %v1872 = vld [vmem:[#allocation8 + $0x28] sm:$0xff]
    %v1873 = vld [vmem:[#allocation8 + $0x30] sm:$0xff]
    %v1874 = vld [vmem:[#allocation8 + $0x38] sm:$0xff]
    %v1875 = vld [vmem:[#allocation8 + $0x40] sm:$0xff]
    %v1876 = vld [vmem:[#allocation8 + $0x48] sm:$0xff]
    %v1877 = vld [vmem:[#allocation8 + $0x50] sm:$0xff]
    %v1878 = vld [vmem:[#allocation8 + $0x58] sm:$0xff]
    %v1879 = vld [vmem:[#allocation8 + $0x60] sm:$0xff]
    %v1880 = vld [vmem:[#allocation8 + $0x68] sm:$0xff]
    %v1881 = vld [vmem:[#allocation8 + $0x70] sm:$0xff]
    %v1882 = vld [vmem:[#allocation8 + $0x78] sm:$0xff]
    %v1883 = vld [vmem:[#allocation8 + $0x80] sm:$0xff]
    %v1884 = vld [vmem:[#allocation8 + $0x88] sm:$0xff]
    %v1885 = vld [vmem:[#allocation8 + $0x90] sm:$0xff]
    %v1886 = vld [vmem:[#allocation8 + $0x98] sm:$0xff]
    %v1887 = vld [vmem:[#allocation8 + $0xa0] sm:$0xff]
    %v1888 = vld [vmem:[#allocation8 + $0xa8] sm:$0xff]
    %v1889 = vld [vmem:[#allocation8 + $0xb0] sm:$0xff]
    %v1890 = vld [vmem:[#allocation8 + $0xb8] sm:$0xff]
    %v1891 = vld [vmem:[#allocation8 + $0xc0] sm:$0xff]
    %v1892 = vld [vmem:[#allocation8 + $0xc8] sm:$0xff]
    %v1893 = vld [vmem:[#allocation8 + $0xd0] sm:$0xff]
    %v1894 = vld [vmem:[#allocation8 + $0xd8] sm:$0xff]
    %v1895 = vld [vmem:[#allocation8 + $0xe0] sm:$0xff]
    %v1896 = vld [vmem:[#allocation8 + $0xe8] sm:$0xff]
    %v1897 = vld [vmem:[#allocation8 + $0xf0] sm:$0xff]
    %v1898 = vld [vmem:[#allocation8 + $0xf8] sm:$0xff]
    %v1899 = vld [vmem:[#allocation8 + $0x100] sm:$0xff]
    %v1900 = vld [vmem:[#allocation8 + $0x108] sm:$0xff]
    %v1901 = vld [vmem:[#allocation8 + $0x110] sm:$0xff]
    %v1902 = vld [vmem:[#allocation8 + $0x118] sm:$0xff]
    %v1903 = vld [vmem:[#allocation8 + $0x120] sm:$0xff]
    %v1904 = vld [vmem:[#allocation8 + $0x128] sm:$0xff]
    %v1905 = vld [vmem:[#allocation8 + $0x130] sm:$0xff]
    %v1906 = vld [vmem:[#allocation8 + $0x138] sm:$0xff]
    %v1907 = vld [vmem:[#allocation8 + $0x140] sm:$0xff]
    %v1908 = vld [vmem:[#allocation8 + $0x148] sm:$0xff]
    %v1909 = vld [vmem:[#allocation8 + $0x150] sm:$0xff]
    %v1910 = vld [vmem:[#allocation8 + $0x158] sm:$0xff]
    %v1911 = vld [vmem:[#allocation8 + $0x160] sm:$0xff]
    %v1912 = vld [vmem:[#allocation8 + $0x168] sm:$0xff]
    %v1913 = vld [vmem:[#allocation8 + $0x170] sm:$0xff]
    %v1914 = vld [vmem:[#allocation8 + $0x178] sm:$0xff]
    %v1915 = vld [vmem:[#allocation8 + $0x180] sm:$0xff]
    %v1916 = vld [vmem:[#allocation8 + $0x188] sm:$0xff]
    %v1917 = vld [vmem:[#allocation8 + $0x190] sm:$0xff]
    %v1918 = vld [vmem:[#allocation8 + $0x198] sm:$0xff]
    %v1919 = vld [vmem:[#allocation8 + $0x1a0] sm:$0xff]
    %v1920 = vld [vmem:[#allocation8 + $0x1a8] sm:$0xff]
    %v1921 = vld [vmem:[#allocation8 + $0x1b0] sm:$0xff]
    %v1922 = vld [vmem:[#allocation8 + $0x1b8] sm:$0xff]
    %v1923 = vld [vmem:[#allocation8 + $0x1c0] sm:$0xff]
    %v1924 = vld [vmem:[#allocation8 + $0x1c8] sm:$0xff]
    %v1925 = vld [vmem:[#allocation8 + $0x1d0] sm:$0xff]
    %v1926 = vld [vmem:[#allocation8 + $0x1d8] sm:$0xff]
    %v1927 = vld [vmem:[#allocation8 + $0x1e0] sm:$0xff]
    %v1928 = vld [vmem:[#allocation8 + $0x1e8] sm:$0xff]
    %v1929 = vld [vmem:[#allocation8 + $0x1f0] sm:$0xff]
    %v1930 = vld [vmem:[#allocation8 + $0x1f8] sm:$0xff]
    %v1931 = vld [vmem:[#allocation9] sm:$0xff]
    %v1932 = vld [vmem:[#allocation9 + $0x8] sm:$0xff]
    %v1933 = vld [vmem:[#allocation9 + $0x10] sm:$0xff]
    %v1934 = vld [vmem:[#allocation9 + $0x18] sm:$0xff]
    %v1935 = vld [vmem:[#allocation9 + $0x20] sm:$0xff]
    %v1936 = vld [vmem:[#allocation9 + $0x28] sm:$0xff]
    %v1937 = vld [vmem:[#allocation9 + $0x30] sm:$0xff]
    %v1938 = vld [vmem:[#allocation9 + $0x38] sm:$0xff]
    %v1939 = vld [vmem:[#allocation9 + $0x40] sm:$0xff]
    %v1940 = vld [vmem:[#allocation9 + $0x48] sm:$0xff]
    %v1941 = vld [vmem:[#allocation9 + $0x50] sm:$0xff]
    %v1942 = vld [vmem:[#allocation9 + $0x58] sm:$0xff]
    %v1943 = vld [vmem:[#allocation9 + $0x60] sm:$0xff]
    %v1944 = vld [vmem:[#allocation9 + $0x68] sm:$0xff]
    %v1945 = vld [vmem:[#allocation9 + $0x70] sm:$0xff]
    %v1946 = vld [vmem:[#allocation9 + $0x78] sm:$0xff]
    %v1947 = vld [vmem:[#allocation9 + $0x80] sm:$0xff]
    %v1948 = vld [vmem:[#allocation9 + $0x88] sm:$0xff]
    %v1949 = vld [vmem:[#allocation9 + $0x90] sm:$0xff]
    %v1950 = vld [vmem:[#allocation9 + $0x98] sm:$0xff]
    %v1951 = vld [vmem:[#allocation9 + $0xa0] sm:$0xff]
    %v1952 = vld [vmem:[#allocation9 + $0xa8] sm:$0xff]
    %v1953 = vld [vmem:[#allocation9 + $0xb0] sm:$0xff]
    %v1954 = vld [vmem:[#allocation9 + $0xb8] sm:$0xff]
    %v1955 = vld [vmem:[#allocation9 + $0xc0] sm:$0xff]
    %v1956 = vld [vmem:[#allocation9 + $0xc8] sm:$0xff]
    %v1957 = vld [vmem:[#allocation9 + $0xd0] sm:$0xff]
    %v1958 = vld [vmem:[#allocation9 + $0xd8] sm:$0xff]
    %v1959 = vld [vmem:[#allocation9 + $0xe0] sm:$0xff]
    %v1960 = vld [vmem:[#allocation9 + $0xe8] sm:$0xff]
    %v1961 = vld [vmem:[#allocation9 + $0xf0] sm:$0xff]
    %v1962 = vld [vmem:[#allocation9 + $0xf8] sm:$0xff]
    %v1963 = vld [vmem:[#allocation9 + $0x100] sm:$0xff]
    %v1964 = vld [vmem:[#allocation9 + $0x108] sm:$0xff]
    %v1965 = vld [vmem:[#allocation9 + $0x110] sm:$0xff]
    %v1966 = vld [vmem:[#allocation9 + $0x118] sm:$0xff]
    %v1967 = vld [vmem:[#allocation9 + $0x120] sm:$0xff]
    %v1968 = vld [vmem:[#allocation9 + $0x128] sm:$0xff]
    %v1969 = vld [vmem:[#allocation9 + $0x130] sm:$0xff]
    %v1970 = vld [vmem:[#allocation9 + $0x138] sm:$0xff]
    %v1971 = vld [vmem:[#allocation9 + $0x140] sm:$0xff]
    %v1972 = vld [vmem:[#allocation9 + $0x148] sm:$0xff]
    %v1973 = vld [vmem:[#allocation9 + $0x150] sm:$0xff]
    %v1974 = vld [vmem:[#allocation9 + $0x158] sm:$0xff]
    %v1975 = vld [vmem:[#allocation9 + $0x160] sm:$0xff]
    %v1976 = vld [vmem:[#allocation9 + $0x168] sm:$0xff]
    %v1977 = vld [vmem:[#allocation9 + $0x170] sm:$0xff]
    %v1978 = vld [vmem:[#allocation9 + $0x178] sm:$0xff]
    %v1979 = vld [vmem:[#allocation9 + $0x180] sm:$0xff]
    %v1980 = vld [vmem:[#allocation9 + $0x188] sm:$0xff]
    %v1981 = vld [vmem:[#allocation9 + $0x190] sm:$0xff]
    %v1982 = vld [vmem:[#allocation9 + $0x198] sm:$0xff]
    %v1983 = vld [vmem:[#allocation9 + $0x1a0] sm:$0xff]
    %v1984 = vld [vmem:[#allocation9 + $0x1a8] sm:$0xff]
    %v1985 = vld [vmem:[#allocation9 + $0x1b0] sm:$0xff]
    %v1986 = vld [vmem:[#allocation9 + $0x1b8] sm:$0xff]
    %v1987 = vld [vmem:[#allocation9 + $0x1c0] sm:$0xff]
    %v1988 = vld [vmem:[#allocation9 + $0x1c8] sm:$0xff]
    %v1989 = vld [vmem:[#allocation9 + $0x1d0] sm:$0xff]
    %v1990 = vld [vmem:[#allocation9 + $0x1d8] sm:$0xff]
    %v1991 = vld [vmem:[#allocation9 + $0x1e0] sm:$0xff]
    %v1992 = vld [vmem:[#allocation9 + $0x1e8] sm:$0xff]
    %v1993 = vld [vmem:[#allocation9 + $0x1f0] sm:$0xff]
    %v1994 = vld [vmem:[#allocation9 + $0x1f8] sm:$0xff]
    %v1995 = vld [vmem:[%s8] sm:$0xf]
    %v1997 = vlaneseq
    %v1998 = vshrl.u32 %v1997, 7
    %v1999 = vsub.s32 0, %v1998
    %v2000 = vrot.slane %v1995, %v1999
    %v2001 = vlaneseq
    %v2002 = vshrl.u32 %v2001, 7
    %v2003 = vsub.s32 1, %v2002
    %v2004 = vrot.slane %v1995, %v2003
    %v2005 = vlaneseq
    %v2006 = vshrl.u32 %v2005, 7
    %v2007 = vsub.s32 2, %v2006
    %v2008 = vrot.slane %v1995, %v2007
    %v2009 = vlaneseq
    %v2010 = vshrl.u32 %v2009, 7
    %v2011 = vsub.s32 3, %v2010
    %v2012 = vrot.slane %v1995, %v2011
    %2017 = vmatprep.subr.mxu0 %v1868
    %2018 = vmatpush1.msra.mxu0 %v1867
    %2019 = vmatprep.subr.mxu0 %v1872
    %2020 = vmatpush1.msra.mxu0 %v1871
    %2021 = vmatprep.subr.mxu0 %v1876
    %2022 = vmatpush1.msra.mxu0 %v1875
    %2023 = vmatprep.subr.mxu0 %v1880
    %2024 = vmatpush1.msra.mxu0 %v1879
    %2025 = vmatprep.subr.mxu0 %v1884
    %2026 = vmatpush1.msra.mxu0 %v1883
    %2027 = vmatprep.subr.mxu0 %v1888
    %2028 = vmatpush1.msra.mxu0 %v1887
    %2029 = vmatprep.subr.mxu0 %v1892
    %2030 = vmatpush1.msra.mxu0 %v1891
    %2031 = vmatprep.subr.mxu0 %v1896
    %2032 = vmatpush1.msra.mxu0 %v1895
    %2033 = vmatprep.subr.mxu0 %v1900
    %2034 = vmatpush1.msra.mxu0 %v1899
    %2035 = vmatprep.subr.mxu0 %v1904
    %2036 = vmatpush1.msra.mxu0 %v1903
    %2037 = vmatprep.subr.mxu0 %v1908
    %2038 = vmatpush1.msra.mxu0 %v1907
    %2039 = vmatprep.subr.mxu0 %v1912
    %2040 = vmatpush1.msra.mxu0 %v1911
    %2041 = vmatprep.subr.mxu0 %v1916
    %2042 = vmatpush1.msra.mxu0 %v1915
    %2043 = vmatprep.subr.mxu0 %v1920
    %2044 = vmatpush1.msra.mxu0 %v1919
    %2045 = vmatprep.subr.mxu0 %v1924
    %2046 = vmatpush1.msra.mxu0 %v1923
    %2047 = vmatprep.subr.mxu0 %v1928
    %2048 = vmatpush1.msra.mxu0 %v1927
    %2049 = vmatprep.subr.mxu0 0.0
    %2050 = vmatpush1.msra.mxu0 0.0
    %2051 = vmatprep.subr.mxu0 0.0
    %2052 = vmatpush1.msra.mxu0 0.0
    %2053 = vmatprep.subr.mxu0 0.0
    %2054 = vmatpush1.msra.mxu0 0.0
    %2055 = vmatprep.subr.mxu0 0.0
    %2056 = vmatpush1.msra.mxu0 0.0
    %2057 = vmatprep.subr.mxu0 0.0
    %2058 = vmatpush1.msra.mxu0 0.0
    %2059 = vmatprep.subr.mxu0 0.0
    %2060 = vmatpush1.msra.mxu0 0.0
    %2061 = vmatprep.subr.mxu0 0.0
    %2062 = vmatpush1.msra.mxu0 0.0
    %2063 = vmatprep.subr.mxu0 0.0
    %2064 = vmatpush1.msra.mxu0 0.0
    %2065 = vmatprep.subr.mxu0 0.0
    %2066 = vmatpush1.msra.mxu0 0.0
    %2067 = vmatprep.subr.mxu0 0.0
    %2068 = vmatpush1.msra.mxu0 0.0
    %2069 = vmatprep.subr.mxu0 0.0
    %2070 = vmatpush1.msra.mxu0 0.0
    %2071 = vmatprep.subr.mxu0 0.0
    %2072 = vmatpush1.msra.mxu0 0.0
    %2073 = vmatprep.subr.mxu0 0.0
    %2074 = vmatpush1.msra.mxu0 0.0
    %2075 = vmatprep.subr.mxu0 0.0
    %2076 = vmatpush1.msra.mxu0 0.0
    %2077 = vmatprep.subr.mxu0 0.0
    %2078 = vmatpush1.msra.mxu0 0.0
    %2079 = vmatprep.subr.mxu0 0.0
    %2080 = vmatpush1.msra.mxu0 0.0
    %2081 = vmatprep.mubr.f32.mxu0 0.0
    %2082 = vmatmul.mubr.f32.gmra.mrb[0].mxu0 %v1859
    %v2083 = vpop.f32.mrb[0].mxu0
    %v2084 = vadd.f32 %v2000, %v2083
    %v2085 = vpop.f32.mrb[0].mxu0
    %v2086 = vadd.f32 %v2004, %v2085
    %2087 = vmatprep.mubr.f32.mxu0 0.0
    %2088 = vmatmul.mubr.f32.gmra.mrb[0].mxu0 %v1860
    %v2089 = vpop.f32.mrb[0].mxu0
    %v2090 = vadd.f32 %v2000, %v2089
    %v2091 = vpop.f32.mrb[0].mxu0
    %v2092 = vadd.f32 %v2004, %v2091
    %2093 = vmatprep.mubr.f32.mxu0 0.0
    %2094 = vmatmul.mubr.f32.gmra.mrb[0].mxu0 %v1861
    %v2095 = vpop.f32.mrb[0].mxu0
    %v2096 = vadd.f32 %v2000, %v2095
    %v2097 = vpop.f32.mrb[0].mxu0
    %v2098 = vadd.f32 %v2004, %v2097
    %2099 = vmatprep.mubr.f32.mxu0 0.0
    %2100 = vmatmul.mubr.f32.gmra.mrb[0].mxu0 %v1862
    %v2101 = vpop.f32.mrb[0].mxu0
    %v2102 = vadd.f32 %v2000, %v2101
    %v2103 = vpop.f32.mrb[0].mxu0
    %v2104 = vadd.f32 %v2004, %v2103
    %2105 = vmatprep.mubr.f32.mxu0 0.0
    %2106 = vmatmul.mubr.f32.gmra.mrb[0].mxu0 %v1863
    %v2107 = vpop.f32.mrb[0].mxu0
    %v2108 = vadd.f32 %v2000, %v2107
    %v2109 = vpop.f32.mrb[0].mxu0
    %v2110 = vadd.f32 %v2004, %v2109
    %2111 = vmatprep.mubr.f32.mxu0 0.0
    %2112 = vmatmul.mubr.f32.gmra.mrb[0].mxu0 %v1864
    %v2113 = vpop.f32.mrb[0].mxu0
    %v2114 = vadd.f32 %v2000, %v2113
    %v2115 = vpop.f32.mrb[0].mxu0
    %v2116 = vadd.f32 %v2004, %v2115
    %2117 = vmatprep.mubr.f32.mxu0 0.0
    %2118 = vmatmul.mubr.f32.gmra.mrb[0].mxu0 %v1865
    %v2119 = vpop.f32.mrb[0].mxu0
    %v2120 = vadd.f32 %v2000, %v2119
    %v2121 = vpop.f32.mrb[0].mxu0
    %v2122 = vadd.f32 %v2004, %v2121
    %2123 = vmatprep.mubr.f32.mxu0 0.0
    %2124 = vmatmul.mubr.f32.gmra.mrb[0].mxu0 %v1866
    %v2125 = vpop.f32.mrb[0].mxu0
    %v2126 = vadd.f32 %v2000, %v2125
    %v2127 = vpop.f32.mrb[0].mxu0
    %v2128 = vadd.f32 %v2004, %v2127
    %2129 = vdwg.mxu0
    %2130 = vmatprep.subr.mxu0 %v1870
    %2131 = vmatpush1.msra.mxu0 %v1869
    %2132 = vmatprep.subr.mxu0 %v1874
    %2133 = vmatpush1.msra.mxu0 %v1873
    %2134 = vmatprep.subr.mxu0 %v1878
    %2135 = vmatpush1.msra.mxu0 %v1877
    %2136 = vmatprep.subr.mxu0 %v1882
    %2137 = vmatpush1.msra.mxu0 %v1881
    %2138 = vmatprep.subr.mxu0 %v1886
    %2139 = vmatpush1.msra.mxu0 %v1885
    %2140 = vmatprep.subr.mxu0 %v1890
    %2141 = vmatpush1.msra.mxu0 %v1889
    %2142 = vmatprep.subr.mxu0 %v1894
    %2143 = vmatpush1.msra.mxu0 %v1893
    %2144 = vmatprep.subr.mxu0 %v1898
    %2145 = vmatpush1.msra.mxu0 %v1897
    %2146 = vmatprep.subr.mxu0 %v1902
    %2147 = vmatpush1.msra.mxu0 %v1901
    %2148 = vmatprep.subr.mxu0 %v1906
    %2149 = vmatpush1.msra.mxu0 %v1905
    %2150 = vmatprep.subr.mxu0 %v1910
    %2151 = vmatpush1.msra.mxu0 %v1909
    %2152 = vmatprep.subr.mxu0 %v1914
    %2153 = vmatpush1.msra.mxu0 %v1913
    %2154 = vmatprep.subr.mxu0 %v1918
    %2155 = vmatpush1.msra.mxu0 %v1917
    %2156 = vmatprep.subr.mxu0 %v1922
    %2157 = vmatpush1.msra.mxu0 %v1921
    %2158 = vmatprep.subr.mxu0 %v1926
    %2159 = vmatpush1.msra.mxu0 %v1925
    %2160 = vmatprep.subr.mxu0 %v1930
    %2161 = vmatpush1.msra.mxu0 %v1929
    %2162 = vmatprep.subr.mxu0 0.0
    %2163 = vmatpush1.msra.mxu0 0.0
    %2164 = vmatprep.subr.mxu0 0.0
    %2165 = vmatpush1.msra.mxu0 0.0
    %2166 = vmatprep.subr.mxu0 0.0
    %2167 = vmatpush1.msra.mxu0 0.0
    %2168 = vmatprep.subr.mxu0 0.0
    %2169 = vmatpush1.msra.mxu0 0.0
    %2170 = vmatprep.subr.mxu0 0.0
    %2171 = vmatpush1.msra.mxu0 0.0
    %2172 = vmatprep.subr.mxu0 0.0
    %2173 = vmatpush1.msra.mxu0 0.0
    %2174 = vmatprep.subr.mxu0 0.0
    %2175 = vmatpush1.msra.mxu0 0.0
    %2176 = vmatprep.subr.mxu0 0.0
    %2177 = vmatpush1.msra.mxu0 0.0
    %2178 = vmatprep.subr.mxu0 0.0
    %2179 = vmatpush1.msra.mxu0 0.0
    %2180 = vmatprep.subr.mxu0 0.0
    %2181 = vmatpush1.msra.mxu0 0.0
    %2182 = vmatprep.subr.mxu0 0.0
    %2183 = vmatpush1.msra.mxu0 0.0
    %2184 = vmatprep.subr.mxu0 0.0
    %2185 = vmatpush1.msra.mxu0 0.0
    %2186 = vmatprep.subr.mxu0 0.0
    %2187 = vmatpush1.msra.mxu0 0.0
    %2188 = vmatprep.subr.mxu0 0.0
    %2189 = vmatpush1.msra.mxu0 0.0
    %2190 = vmatprep.subr.mxu0 0.0
    %2191 = vmatpush1.msra.mxu0 0.0
    %2192 = vmatprep.subr.mxu0 0.0
    %2193 = vmatpush1.msra.mxu0 0.0
    %2194 = vmatprep.mubr.f32.mxu0 0.0
    %2195 = vmatmul.mubr.f32.gmra.mrb[0].mxu0 %v1859
    %v2196 = vpop.f32.mrb[0].mxu0
    %v2197 = vadd.f32 %v2008, %v2196
    %v2198 = vpop.f32.mrb[0].mxu0
    %v2199 = vadd.f32 %v2012, %v2198
    %2200 = vmatprep.mubr.f32.mxu0 0.0
    %2201 = vmatmul.mubr.f32.gmra.mrb[0].mxu0 %v1860
    %v2202 = vpop.f32.mrb[0].mxu0
    %v2203 = vadd.f32 %v2008, %v2202
    %v2204 = vpop.f32.mrb[0].mxu0
    %v2205 = vadd.f32 %v2012, %v2204
    %2206 = vmatprep.mubr.f32.mxu0 0.0
    %2207 = vmatmul.mubr.f32.gmra.mrb[0].mxu0 %v1861
    %v2208 = vpop.f32.mrb[0].mxu0
    %v2209 = vadd.f32 %v2008, %v2208
    %v2210 = vpop.f32.mrb[0].mxu0
    %v2211 = vadd.f32 %v2012, %v2210
    %2212 = vmatprep.mubr.f32.mxu0 0.0
    %2213 = vmatmul.mubr.f32.gmra.mrb[0].mxu0 %v1862
    %v2214 = vpop.f32.mrb[0].mxu0
    %v2215 = vadd.f32 %v2008, %v2214
    %v2216 = vpop.f32.mrb[0].mxu0
    %v2217 = vadd.f32 %v2012, %v2216
    %2218 = vmatprep.mubr.f32.mxu0 0.0
    %2219 = vmatmul.mubr.f32.gmra.mrb[0].mxu0 %v1863
    %v2220 = vpop.f32.mrb[0].mxu0
    %v2221 = vadd.f32 %v2008, %v2220
    %v2222 = vpop.f32.mrb[0].mxu0
    %v2223 = vadd.f32 %v2012, %v2222
    %2224 = vmatprep.mubr.f32.mxu0 0.0
    %2225 = vmatmul.mubr.f32.gmra.mrb[0].mxu0 %v1864
    %v2226 = vpop.f32.mrb[0].mxu0
    %v2227 = vadd.f32 %v2008, %v2226
    %v2228 = vpop.f32.mrb[0].mxu0
    %v2229 = vadd.f32 %v2012, %v2228
    %2230 = vmatprep.mubr.f32.mxu0 0.0
    %2231 = vmatmul.mubr.f32.gmra.mrb[0].mxu0 %v1865
    %v2232 = vpop.f32.mrb[0].mxu0
    %v2233 = vadd.f32 %v2008, %v2232
    %v2234 = vpop.f32.mrb[0].mxu0
    %v2235 = vadd.f32 %v2012, %v2234
    %2236 = vmatprep.mubr.f32.mxu0 0.0
    %2237 = vmatmul.mubr.f32.gmra.mrb[0].mxu0 %v1866
    %v2238 = vpop.f32.mrb[0].mxu0
    %v2239 = vadd.f32 %v2008, %v2238
    %v2240 = vpop.f32.mrb[0].mxu0
    %v2241 = vadd.f32 %v2012, %v2240
    %2242 = vdwg.mxu0
    %s2243 = scalar_lea.vmem %s1, 8
    %v2244 = vld [vmem:[%s2243] sm:$0xff]
    %s2245 = scalar_lea.vmem %s2, 8
    %v2246 = vld [vmem:[%s2245] sm:$0xff]
    %2247 = vmatprep.subr.mxu0 %v1932
    %2248 = vmatpush1.msra.mxu0 %v1931
    %2249 = vmatprep.subr.mxu0 %v1936
    %2250 = vmatpush1.msra.mxu0 %v1935
    %2251 = vmatprep.subr.mxu0 %v1940
    %2252 = vmatpush1.msra.mxu0 %v1939
    %2253 = vmatprep.subr.mxu0 %v1944
    %2254 = vmatpush1.msra.mxu0 %v1943
    %2255 = vmatprep.subr.mxu0 %v1948
    %2256 = vmatpush1.msra.mxu0 %v1947
    %2257 = vmatprep.subr.mxu0 %v1952
    %2258 = vmatpush1.msra.mxu0 %v1951
    %2259 = vmatprep.subr.mxu0 %v1956
    %2260 = vmatpush1.msra.mxu0 %v1955
    %2261 = vmatprep.subr.mxu0 %v1960
    %2262 = vmatpush1.msra.mxu0 %v1959
    %2263 = vmatprep.subr.mxu0 %v1964
    %2264 = vmatpush1.msra.mxu0 %v1963
    %2265 = vmatprep.subr.mxu0 %v1968
    %2266 = vmatpush1.msra.mxu0 %v1967
    %2267 = vmatprep.subr.mxu0 %v1972
    %2268 = vmatpush1.msra.mxu0 %v1971
    %2269 = vmatprep.subr.mxu0 %v1976
    %2270 = vmatpush1.msra.mxu0 %v1975
    %2271 = vmatprep.subr.mxu0 %v1980
    %2272 = vmatpush1.msra.mxu0 %v1979
    %2273 = vmatprep.subr.mxu0 %v1984
    %2274 = vmatpush1.msra.mxu0 %v1983
    %2275 = vmatprep.subr.mxu0 %v1988
    %2276 = vmatpush1.msra.mxu0 %v1987
    %2277 = vmatprep.subr.mxu0 %v1992
    %2278 = vmatpush1.msra.mxu0 %v1991
    %2279 = vmatprep.subr.mxu0 0.0
    %2280 = vmatpush1.msra.mxu0 0.0
    %2281 = vmatprep.subr.mxu0 0.0
    %2282 = vmatpush1.msra.mxu0 0.0
    %2283 = vmatprep.subr.mxu0 0.0
    %2284 = vmatpush1.msra.mxu0 0.0
    %2285 = vmatprep.subr.mxu0 0.0
    %2286 = vmatpush1.msra.mxu0 0.0
    %2287 = vmatprep.subr.mxu0 0.0
    %2288 = vmatpush1.msra.mxu0 0.0
    %2289 = vmatprep.subr.mxu0 0.0
    %2290 = vmatpush1.msra.mxu0 0.0
    %2291 = vmatprep.subr.mxu0 0.0
    %2292 = vmatpush1.msra.mxu0 0.0
    %2293 = vmatprep.subr.mxu0 0.0
    %2294 = vmatpush1.msra.mxu0 0.0
    %2295 = vmatprep.subr.mxu0 0.0
    %2296 = vmatpush1.msra.mxu0 0.0
    %2297 = vmatprep.subr.mxu0 0.0
    %2298 = vmatpush1.msra.mxu0 0.0
    %2299 = vmatprep.subr.mxu0 0.0
    %2300 = vmatpush1.msra.mxu0 0.0
    %2301 = vmatprep.subr.mxu0 0.0
    %2302 = vmatpush1.msra.mxu0 0.0
    %2303 = vmatprep.subr.mxu0 0.0
    %2304 = vmatpush1.msra.mxu0 0.0
    %2305 = vmatprep.subr.mxu0 0.0
    %2306 = vmatpush1.msra.mxu0 0.0
    %2307 = vmatprep.subr.mxu0 0.0
    %2308 = vmatpush1.msra.mxu0 0.0
    %2309 = vmatprep.subr.mxu0 0.0
    %2310 = vmatpush1.msra.mxu0 0.0
    %2311 = vmatprep.mubr.f32.mxu0 0.0
    %2312 = vmatmul.mubr.f32.gmra.mrb[0].mxu0 %v2244
    %v2313 = vpop.f32.mrb[0].mxu0
    %v2314 = vadd.f32 0.0, %v2313
    %v2315 = vpop.f32.mrb[0].mxu0
    %v2316 = vadd.f32 0.0, %v2315
    %2317 = vdwg.mxu0
    %2318 = vmatprep.subr.mxu0 %v1934
    %2319 = vmatpush1.msra.mxu0 %v1933
    %2320 = vmatprep.subr.mxu0 %v1938
    %2321 = vmatpush1.msra.mxu0 %v1937
    %2322 = vmatprep.subr.mxu0 %v1942
    %2323 = vmatpush1.msra.mxu0 %v1941
    %2324 = vmatprep.subr.mxu0 %v1946
    %2325 = vmatpush1.msra.mxu0 %v1945
    %2326 = vmatprep.subr.mxu0 %v1950
    %2327 = vmatpush1.msra.mxu0 %v1949
    %2328 = vmatprep.subr.mxu0 %v1954
    %2329 = vmatpush1.msra.mxu0 %v1953
    %2330 = vmatprep.subr.mxu0 %v1958
    %2331 = vmatpush1.msra.mxu0 %v1957
    %2332 = vmatprep.subr.mxu0 %v1962
    %2333 = vmatpush1.msra.mxu0 %v1961
    %2334 = vmatprep.subr.mxu0 %v1966
    %2335 = vmatpush1.msra.mxu0 %v1965
    %2336 = vmatprep.subr.mxu0 %v1970
    %2337 = vmatpush1.msra.mxu0 %v1969
    %2338 = vmatprep.subr.mxu0 %v1974
    %2339 = vmatpush1.msra.mxu0 %v1973
    %2340 = vmatprep.subr.mxu0 %v1978
    %2341 = vmatpush1.msra.mxu0 %v1977
    %2342 = vmatprep.subr.mxu0 %v1982
    %2343 = vmatpush1.msra.mxu0 %v1981
    %2344 = vmatprep.subr.mxu0 %v1986
    %2345 = vmatpush1.msra.mxu0 %v1985
    %2346 = vmatprep.subr.mxu0 %v1990
    %2347 = vmatpush1.msra.mxu0 %v1989
    %2348 = vmatprep.subr.mxu0 %v1994
    %2349 = vmatpush1.msra.mxu0 %v1993
    %2350 = vmatprep.subr.mxu0 0.0
    %2351 = vmatpush1.msra.mxu0 0.0
    %2352 = vmatprep.subr.mxu0 0.0
    %2353 = vmatpush1.msra.mxu0 0.0
    %2354 = vmatprep.subr.mxu0 0.0
    %2355 = vmatpush1.msra.mxu0 0.0
    %2356 = vmatprep.subr.mxu0 0.0
    %2357 = vmatpush1.msra.mxu0 0.0
    %2358 = vmatprep.subr.mxu0 0.0
    %2359 = vmatpush1.msra.mxu0 0.0
    %2360 = vmatprep.subr.mxu0 0.0
    %2361 = vmatpush1.msra.mxu0 0.0
    %2362 = vmatprep.subr.mxu0 0.0
    %2363 = vmatpush1.msra.mxu0 0.0
    %2364 = vmatprep.subr.mxu0 0.0
    %2365 = vmatpush1.msra.mxu0 0.0
    %2366 = vmatprep.subr.mxu0 0.0
    %2367 = vmatpush1.msra.mxu0 0.0
    %2368 = vmatprep.subr.mxu0 0.0
    %2369 = vmatpush1.msra.mxu0 0.0
    %2370 = vmatprep.subr.mxu0 0.0
    %2371 = vmatpush1.msra.mxu0 0.0
    %2372 = vmatprep.subr.mxu0 0.0
    %2373 = vmatpush1.msra.mxu0 0.0
    %2374 = vmatprep.subr.mxu0 0.0
    %2375 = vmatpush1.msra.mxu0 0.0
    %2376 = vmatprep.subr.mxu0 0.0
    %2377 = vmatpush1.msra.mxu0 0.0
    %2378 = vmatprep.subr.mxu0 0.0
    %2379 = vmatpush1.msra.mxu0 0.0
    %2380 = vmatprep.subr.mxu0 0.0
    %2381 = vmatpush1.msra.mxu0 0.0
    %2382 = vmatprep.mubr.f32.mxu0 0.0
    %2383 = vmatmul.mubr.f32.gmra.mrb[0].mxu0 %v2244
    %v2384 = vpop.f32.mrb[0].mxu0
    %v2385 = vadd.f32 0.0, %v2384
    %v2386 = vpop.f32.mrb[0].mxu0
    %v2387 = vadd.f32 0.0, %v2386
    %2388 = vdwg.mxu0
    %v2389 = vadd.f32 %v2084, %v2314
    %v2390 = vadd.f32 %v2086, %v2316
    %v2391 = vadd.f32 %v2197, %v2385
    %v2392 = vadd.f32 %v2199, %v2387
    %v2393 = vxor.u32 %v2389, 2147483648
    %v2394 = vxor.u32 %v2390, 2147483648
    %v2395 = vmul.f32 %v2393, 1.442695
    %v2396 = vpow.pop %v2395
    %v2397 = vmul.f32 %v2394, 1.442695
    %v2398 = vpow.pop %v2397
    %v2399 = vadd.f32 %v2396, 1.0
    %v2400 = vadd.f32 %v2398, 1.0
    %v2401 = vrcp.pop %v2399
    %v2402 = vmul.f32 1.0, %v2401
    %v2403 = vrcp.pop %v2400
    %v2404 = vmul.f32 1.0, %v2403
    %v2405 = vtanh.pop %v2391
    %v2406 = vxor.u32 %v2392, 2147483648
    %v2407 = vmul.f32 %v2406, 1.442695
    %v2408 = vpow.pop %v2407
    %v2409 = vadd.f32 %v2408, 1.0
    %v2410 = vrcp.pop %v2409
    %v2411 = vmul.f32 1.0, %v2410
    %v2412 = vmul.f32 %v2404, %v2246
    %v2413 = vmul.f32 %v2402, %v2405
    %v2414 = vadd.f32 %v2412, %v2413
    %v2415 = vtanh.pop %v2414
    %v2416 = vmul.f32 %v2411, %v2415
    %2417 = vst [vmem:[#allocation3] sm:$0xff] %v2416
    %2418 = vmatprep.subr.mxu0 %v1932
    %2419 = vmatpush1.msra.mxu0 %v1931
    %2420 = vmatprep.subr.mxu0 %v1936
    %2421 = vmatpush1.msra.mxu0 %v1935
    %2422 = vmatprep.subr.mxu0 %v1940
    %2423 = vmatpush1.msra.mxu0 %v1939
    %2424 = vmatprep.subr.mxu0 %v1944
    %2425 = vmatpush1.msra.mxu0 %v1943
    %2426 = vmatprep.subr.mxu0 %v1948
    %2427 = vmatpush1.msra.mxu0 %v1947
    %2428 = vmatprep.subr.mxu0 %v1952
    %2429 = vmatpush1.msra.mxu0 %v1951
    %2430 = vmatprep.subr.mxu0 %v1956
    %2431 = vmatpush1.msra.mxu0 %v1955
    %2432 = vmatprep.subr.mxu0 %v1960
    %2433 = vmatpush1.msra.mxu0 %v1959
    %2434 = vmatprep.subr.mxu0 %v1964
    %2435 = vmatpush1.msra.mxu0 %v1963
    %2436 = vmatprep.subr.mxu0 %v1968
    %2437 = vmatpush1.msra.mxu0 %v1967
    %2438 = vmatprep.subr.mxu0 %v1972
    %2439 = vmatpush1.msra.mxu0 %v1971
    %2440 = vmatprep.subr.mxu0 %v1976
    %2441 = vmatpush1.msra.mxu0 %v1975
    %2442 = vmatprep.subr.mxu0 %v1980
    %2443 = vmatpush1.msra.mxu0 %v1979
    %2444 = vmatprep.subr.mxu0 %v1984
    %2445 = vmatpush1.msra.mxu0 %v1983
    %2446 = vmatprep.subr.mxu0 %v1988
    %2447 = vmatpush1.msra.mxu0 %v1987
    %2448 = vmatprep.subr.mxu0 %v1992
    %2449 = vmatpush1.msra.mxu0 %v1991
    %2450 = vmatprep.subr.mxu0 0.0
    %2451 = vmatpush1.msra.mxu0 0.0
    %2452 = vmatprep.subr.mxu0 0.0
    %2453 = vmatpush1.msra.mxu0 0.0
    %2454 = vmatprep.subr.mxu0 0.0
    %2455 = vmatpush1.msra.mxu0 0.0
    %2456 = vmatprep.subr.mxu0 0.0
    %2457 = vmatpush1.msra.mxu0 0.0
    %2458 = vmatprep.subr.mxu0 0.0
    %2459 = vmatpush1.msra.mxu0 0.0
    %2460 = vmatprep.subr.mxu0 0.0
    %2461 = vmatpush1.msra.mxu0 0.0
    %2462 = vmatprep.subr.mxu0 0.0
    %2463 = vmatpush1.msra.mxu0 0.0
    %2464 = vmatprep.subr.mxu0 0.0
    %2465 = vmatpush1.msra.mxu0 0.0
    %2466 = vmatprep.subr.mxu0 0.0
    %2467 = vmatpush1.msra.mxu0 0.0
    %2468 = vmatprep.subr.mxu0 0.0
    %2469 = vmatpush1.msra.mxu0 0.0
    %2470 = vmatprep.subr.mxu0 0.0
    %2471 = vmatpush1.msra.mxu0 0.0
    %2472 = vmatprep.subr.mxu0 0.0
    %2473 = vmatpush1.msra.mxu0 0.0
    %2474 = vmatprep.subr.mxu0 0.0
    %2475 = vmatpush1.msra.mxu0 0.0
    %2476 = vmatprep.subr.mxu0 0.0
    %2477 = vmatpush1.msra.mxu0 0.0
    %2478 = vmatprep.subr.mxu0 0.0
    %2479 = vmatpush1.msra.mxu0 0.0
    %2480 = vmatprep.subr.mxu0 0.0
    %2481 = vmatpush1.msra.mxu0 0.0
    %2482 = vmatprep.mubr.f32.mxu0 0.0
    %2483 = vmatmul.mubr.f32.gmra.mrb[0].mxu0 %v2416
    %v2484 = vpop.f32.mrb[0].mxu0
    %v2485 = vadd.f32 0.0, %v2484
    %v2486 = vpop.f32.mrb[0].mxu0
    %v2487 = vadd.f32 0.0, %v2486
    %2488 = vdwg.mxu0
    %2489 = vmatprep.subr.mxu0 %v1934
    %2490 = vmatpush1.msra.mxu0 %v1933
    %2491 = vmatprep.subr.mxu0 %v1938
    %2492 = vmatpush1.msra.mxu0 %v1937
    %2493 = vmatprep.subr.mxu0 %v1942
    %2494 = vmatpush1.msra.mxu0 %v1941
    %2495 = vmatprep.subr.mxu0 %v1946
    %2496 = vmatpush1.msra.mxu0 %v1945
    %2497 = vmatprep.subr.mxu0 %v1950
    %2498 = vmatpush1.msra.mxu0 %v1949
    %2499 = vmatprep.subr.mxu0 %v1954
    %2500 = vmatpush1.msra.mxu0 %v1953
    %2501 = vmatprep.subr.mxu0 %v1958
    %2502 = vmatpush1.msra.mxu0 %v1957
    %2503 = vmatprep.subr.mxu0 %v1962
    %2504 = vmatpush1.msra.mxu0 %v1961
    %2505 = vmatprep.subr.mxu0 %v1966
    %2506 = vmatpush1.msra.mxu0 %v1965
    %2507 = vmatprep.subr.mxu0 %v1970
    %2508 = vmatpush1.msra.mxu0 %v1969
    %2509 = vmatprep.subr.mxu0 %v1974
    %2510 = vmatpush1.msra.mxu0 %v1973
    %2511 = vmatprep.subr.mxu0 %v1978
    %2512 = vmatpush1.msra.mxu0 %v1977
    %2513 = vmatprep.subr.mxu0 %v1982
    %2514 = vmatpush1.msra.mxu0 %v1981
    %2515 = vmatprep.subr.mxu0 %v1986
    %2516 = vmatpush1.msra.mxu0 %v1985
    %2517 = vmatprep.subr.mxu0 %v1990
    %2518 = vmatpush1.msra.mxu0 %v1989
    %2519 = vmatprep.subr.mxu0 %v1994
    %2520 = vmatpush1.msra.mxu0 %v1993
    %2521 = vmatprep.subr.mxu0 0.0
    %2522 = vmatpush1.msra.mxu0 0.0
    %2523 = vmatprep.subr.mxu0 0.0
    %2524 = vmatpush1.msra.mxu0 0.0
    %2525 = vmatprep.subr.mxu0 0.0
    %2526 = vmatpush1.msra.mxu0 0.0
    %2527 = vmatprep.subr.mxu0 0.0
    %2528 = vmatpush1.msra.mxu0 0.0
    %2529 = vmatprep.subr.mxu0 0.0
    %2530 = vmatpush1.msra.mxu0 0.0
    %2531 = vmatprep.subr.mxu0 0.0
    %2532 = vmatpush1.msra.mxu0 0.0
    %2533 = vmatprep.subr.mxu0 0.0
    %2534 = vmatpush1.msra.mxu0 0.0
    %2535 = vmatprep.subr.mxu0 0.0
    %2536 = vmatpush1.msra.mxu0 0.0
    %2537 = vmatprep.subr.mxu0 0.0
    %2538 = vmatpush1.msra.mxu0 0.0
    %2539 = vmatprep.subr.mxu0 0.0
    %2540 = vmatpush1.msra.mxu0 0.0
    %2541 = vmatprep.subr.mxu0 0.0
    %2542 = vmatpush1.msra.mxu0 0.0
    %2543 = vmatprep.subr.mxu0 0.0
    %2544 = vmatpush1.msra.mxu0 0.0
    %2545 = vmatprep.subr.mxu0 0.0
    %2546 = vmatpush1.msra.mxu0 0.0
    %2547 = vmatprep.subr.mxu0 0.0
    %2548 = vmatpush1.msra.mxu0 0.0
    %2549 = vmatprep.subr.mxu0 0.0
    %2550 = vmatpush1.msra.mxu0 0.0
    %2551 = vmatprep.subr.mxu0 0.0
    %2552 = vmatpush1.msra.mxu0 0.0
    %2553 = vmatprep.mubr.f32.mxu0 0.0
    %2554 = vmatmul.mubr.f32.gmra.mrb[0].mxu0 %v2416
    %v2555 = vpop.f32.mrb[0].mxu0
    %v2556 = vadd.f32 0.0, %v2555
    %v2557 = vpop.f32.mrb[0].mxu0
    %v2558 = vadd.f32 0.0, %v2557
    %2559 = vdwg.mxu0
    %v2560 = vadd.f32 %v2090, %v2485
    %v2561 = vadd.f32 %v2092, %v2487
    %v2562 = vadd.f32 %v2203, %v2556
    %v2563 = vadd.f32 %v2205, %v2558
    %v2564 = vxor.u32 %v2560, 2147483648
    %v2565 = vxor.u32 %v2561, 2147483648
    %v2566 = vmul.f32 %v2564, 1.442695
    %v2567 = vpow.pop %v2566
    %v2568 = vmul.f32 %v2565, 1.442695
    %v2569 = vpow.pop %v2568
    %v2570 = vadd.f32 %v2567, 1.0
    %v2571 = vadd.f32 %v2569, 1.0
    %v2572 = vrcp.pop %v2570
    %v2573 = vmul.f32 1.0, %v2572
    %v2574 = vrcp.pop %v2571
    %v2575 = vmul.f32 1.0, %v2574
    %v2576 = vtanh.pop %v2562
    %v2577 = vxor.u32 %v2563, 2147483648
    %v2578 = vmul.f32 %v2577, 1.442695
    %v2579 = vpow.pop %v2578
    %v2580 = vadd.f32 %v2579, 1.0
    %v2581 = vrcp.pop %v2580
    %v2582 = vmul.f32 1.0, %v2581
    %v2583 = vmul.f32 %v2575, %v2414
    %v2584 = vmul.f32 %v2573, %v2576
    %v2585 = vadd.f32 %v2583, %v2584
    %v2586 = vtanh.pop %v2585
    %v2587 = vmul.f32 %v2582, %v2586
    %s2588 = scalar_lea.vmem [#allocation3], 8
    %2589 = vst [vmem:[%s2588] sm:$0xff] %v2587
    %2590 = vmatprep.subr.mxu0 %v1932
    %2591 = vmatpush1.msra.mxu0 %v1931
    %2592 = vmatprep.subr.mxu0 %v1936
    %2593 = vmatpush1.msra.mxu0 %v1935
    %2594 = vmatprep.subr.mxu0 %v1940
    %2595 = vmatpush1.msra.mxu0 %v1939
    %2596 = vmatprep.subr.mxu0 %v1944
    %2597 = vmatpush1.msra.mxu0 %v1943
    %2598 = vmatprep.subr.mxu0 %v1948
    %2599 = vmatpush1.msra.mxu0 %v1947
    %2600 = vmatprep.subr.mxu0 %v1952
    %2601 = vmatpush1.msra.mxu0 %v1951
    %2602 = vmatprep.subr.mxu0 %v1956
    %2603 = vmatpush1.msra.mxu0 %v1955
    %2604 = vmatprep.subr.mxu0 %v1960
    %2605 = vmatpush1.msra.mxu0 %v1959
    %2606 = vmatprep.subr.mxu0 %v1964
    %2607 = vmatpush1.msra.mxu0 %v1963
    %2608 = vmatprep.subr.mxu0 %v1968
    %2609 = vmatpush1.msra.mxu0 %v1967
    %2610 = vmatprep.subr.mxu0 %v1972
    %2611 = vmatpush1.msra.mxu0 %v1971
    %2612 = vmatprep.subr.mxu0 %v1976
    %2613 = vmatpush1.msra.mxu0 %v1975
    %2614 = vmatprep.subr.mxu0 %v1980
    %2615 = vmatpush1.msra.mxu0 %v1979
    %2616 = vmatprep.subr.mxu0 %v1984
    %2617 = vmatpush1.msra.mxu0 %v1983
    %2618 = vmatprep.subr.mxu0 %v1988
    %2619 = vmatpush1.msra.mxu0 %v1987
    %2620 = vmatprep.subr.mxu0 %v1992
    %2621 = vmatpush1.msra.mxu0 %v1991
    %2622 = vmatprep.subr.mxu0 0.0
    %2623 = vmatpush1.msra.mxu0 0.0
    %2624 = vmatprep.subr.mxu0 0.0
    %2625 = vmatpush1.msra.mxu0 0.0
    %2626 = vmatprep.subr.mxu0 0.0
    %2627 = vmatpush1.msra.mxu0 0.0
    %2628 = vmatprep.subr.mxu0 0.0
    %2629 = vmatpush1.msra.mxu0 0.0
    %2630 = vmatprep.subr.mxu0 0.0
    %2631 = vmatpush1.msra.mxu0 0.0
    %2632 = vmatprep.subr.mxu0 0.0
    %2633 = vmatpush1.msra.mxu0 0.0
    %2634 = vmatprep.subr.mxu0 0.0
    %2635 = vmatpush1.msra.mxu0 0.0
    %2636 = vmatprep.subr.mxu0 0.0
    %2637 = vmatpush1.msra.mxu0 0.0
    %2638 = vmatprep.subr.mxu0 0.0
    %2639 = vmatpush1.msra.mxu0 0.0
    %2640 = vmatprep.subr.mxu0 0.0
    %2641 = vmatpush1.msra.mxu0 0.0
    %2642 = vmatprep.subr.mxu0 0.0
    %2643 = vmatpush1.msra.mxu0 0.0
    %2644 = vmatprep.subr.mxu0 0.0
    %2645 = vmatpush1.msra.mxu0 0.0
    %2646 = vmatprep.subr.mxu0 0.0
    %2647 = vmatpush1.msra.mxu0 0.0
    %2648 = vmatprep.subr.mxu0 0.0
    %2649 = vmatpush1.msra.mxu0 0.0
    %2650 = vmatprep.subr.mxu0 0.0
    %2651 = vmatpush1.msra.mxu0 0.0
    %2652 = vmatprep.subr.mxu0 0.0
    %2653 = vmatpush1.msra.mxu0 0.0
    %2654 = vmatprep.mubr.f32.mxu0 0.0
    %2655 = vmatmul.mubr.f32.gmra.mrb[0].mxu0 %v2587
    %v2656 = vpop.f32.mrb[0].mxu0
    %v2657 = vadd.f32 0.0, %v2656
    %v2658 = vpop.f32.mrb[0].mxu0
    %v2659 = vadd.f32 0.0, %v2658
    %2660 = vdwg.mxu0
    %2661 = vmatprep.subr.mxu0 %v1934
    %2662 = vmatpush1.msra.mxu0 %v1933
    %2663 = vmatprep.subr.mxu0 %v1938
    %2664 = vmatpush1.msra.mxu0 %v1937
    %2665 = vmatprep.subr.mxu0 %v1942
    %2666 = vmatpush1.msra.mxu0 %v1941
    %2667 = vmatprep.subr.mxu0 %v1946
    %2668 = vmatpush1.msra.mxu0 %v1945
    %2669 = vmatprep.subr.mxu0 %v1950
    %2670 = vmatpush1.msra.mxu0 %v1949
    %2671 = vmatprep.subr.mxu0 %v1954
    %2672 = vmatpush1.msra.mxu0 %v1953
    %2673 = vmatprep.subr.mxu0 %v1958
    %2674 = vmatpush1.msra.mxu0 %v1957
    %2675 = vmatprep.subr.mxu0 %v1962
    %2676 = vmatpush1.msra.mxu0 %v1961
    %2677 = vmatprep.subr.mxu0 %v1966
    %2678 = vmatpush1.msra.mxu0 %v1965
    %2679 = vmatprep.subr.mxu0 %v1970
    %2680 = vmatpush1.msra.mxu0 %v1969
    %2681 = vmatprep.subr.mxu0 %v1974
    %2682 = vmatpush1.msra.mxu0 %v1973
    %2683 = vmatprep.subr.mxu0 %v1978
    %2684 = vmatpush1.msra.mxu0 %v1977
    %2685 = vmatprep.subr.mxu0 %v1982
    %2686 = vmatpush1.msra.mxu0 %v1981
    %2687 = vmatprep.subr.mxu0 %v1986
    %2688 = vmatpush1.msra.mxu0 %v1985
    %2689 = vmatprep.subr.mxu0 %v1990
    %2690 = vmatpush1.msra.mxu0 %v1989
    %2691 = vmatprep.subr.mxu0 %v1994
    %2692 = vmatpush1.msra.mxu0 %v1993
    %2693 = vmatprep.subr.mxu0 0.0
    %2694 = vmatpush1.msra.mxu0 0.0
    %2695 = vmatprep.subr.mxu0 0.0
    %2696 = vmatpush1.msra.mxu0 0.0
    %2697 = vmatprep.subr.mxu0 0.0
    %2698 = vmatpush1.msra.mxu0 0.0
    %2699 = vmatprep.subr.mxu0 0.0
    %2700 = vmatpush1.msra.mxu0 0.0
    %2701 = vmatprep.subr.mxu0 0.0
    %2702 = vmatpush1.msra.mxu0 0.0
    %2703 = vmatprep.subr.mxu0 0.0
    %2704 = vmatpush1.msra.mxu0 0.0
    %2705 = vmatprep.subr.mxu0 0.0
    %2706 = vmatpush1.msra.mxu0 0.0
    %2707 = vmatprep.subr.mxu0 0.0
    %2708 = vmatpush1.msra.mxu0 0.0
    %2709 = vmatprep.subr.mxu0 0.0
    %2710 = vmatpush1.msra.mxu0 0.0
    %2711 = vmatprep.subr.mxu0 0.0
    %2712 = vmatpush1.msra.mxu0 0.0
    %2713 = vmatprep.subr.mxu0 0.0
    %2714 = vmatpush1.msra.mxu0 0.0
    %2715 = vmatprep.subr.mxu0 0.0
    %2716 = vmatpush1.msra.mxu0 0.0
    %2717 = vmatprep.subr.mxu0 0.0
    %2718 = vmatpush1.msra.mxu0 0.0
    %2719 = vmatprep.subr.mxu0 0.0
    %2720 = vmatpush1.msra.mxu0 0.0
    %2721 = vmatprep.subr.mxu0 0.0
    %2722 = vmatpush1.msra.mxu0 0.0
    %2723 = vmatprep.subr.mxu0 0.0
    %2724 = vmatpush1.msra.mxu0 0.0
    %2725 = vmatprep.mubr.f32.mxu0 0.0
    %2726 = vmatmul.mubr.f32.gmra.mrb[0].mxu0 %v2587
    %v2727 = vpop.f32.mrb[0].mxu0
    %v2728 = vadd.f32 0.0, %v2727
    %v2729 = vpop.f32.mrb[0].mxu0
    %v2730 = vadd.f32 0.0, %v2729
    %2731 = vdwg.mxu0
    %v2732 = vadd.f32 %v2096, %v2657
    %v2733 = vadd.f32 %v2098, %v2659
    %v2734 = vadd.f32 %v2209, %v2728
    %v2735 = vadd.f32 %v2211, %v2730
    %v2736 = vxor.u32 %v2732, 2147483648
    %v2737 = vxor.u32 %v2733, 2147483648
    %v2738 = vmul.f32 %v2736, 1.442695
    %v2739 = vpow.pop %v2738
    %v2740 = vmul.f32 %v2737, 1.442695
    %v2741 = vpow.pop %v2740
    %v2742 = vadd.f32 %v2739, 1.0
    %v2743 = vadd.f32 %v2741, 1.0
    %v2744 = vrcp.pop %v2742
    %v2745 = vmul.f32 1.0, %v2744
    %v2746 = vrcp.pop %v2743
    %v2747 = vmul.f32 1.0, %v2746
    %v2748 = vtanh.pop %v2734
    %v2749 = vxor.u32 %v2735, 2147483648
    %v2750 = vmul.f32 %v2749, 1.442695
    %v2751 = vpow.pop %v2750
    %v2752 = vadd.f32 %v2751, 1.0
    %v2753 = vrcp.pop %v2752
    %v2754 = vmul.f32 1.0, %v2753
    %v2755 = vmul.f32 %v2747, %v2585
    %v2756 = vmul.f32 %v2745, %v2748
    %v2757 = vadd.f32 %v2755, %v2756
    %v2758 = vtanh.pop %v2757
    %v2759 = vmul.f32 %v2754, %v2758
    %s2760 = scalar_lea.vmem [#allocation3], 16
    %2761 = vst [vmem:[%s2760] sm:$0xff] %v2759
    %2762 = vmatprep.subr.mxu0 %v1932
    %2763 = vmatpush1.msra.mxu0 %v1931
    %2764 = vmatprep.subr.mxu0 %v1936
    %2765 = vmatpush1.msra.mxu0 %v1935
    %2766 = vmatprep.subr.mxu0 %v1940
    %2767 = vmatpush1.msra.mxu0 %v1939
    %2768 = vmatprep.subr.mxu0 %v1944
    %2769 = vmatpush1.msra.mxu0 %v1943
    %2770 = vmatprep.subr.mxu0 %v1948
    %2771 = vmatpush1.msra.mxu0 %v1947
    %2772 = vmatprep.subr.mxu0 %v1952
    %2773 = vmatpush1.msra.mxu0 %v1951
    %2774 = vmatprep.subr.mxu0 %v1956
    %2775 = vmatpush1.msra.mxu0 %v1955
    %2776 = vmatprep.subr.mxu0 %v1960
    %2777 = vmatpush1.msra.mxu0 %v1959
    %2778 = vmatprep.subr.mxu0 %v1964
    %2779 = vmatpush1.msra.mxu0 %v1963
    %2780 = vmatprep.subr.mxu0 %v1968
    %2781 = vmatpush1.msra.mxu0 %v1967
    %2782 = vmatprep.subr.mxu0 %v1972
    %2783 = vmatpush1.msra.mxu0 %v1971
    %2784 = vmatprep.subr.mxu0 %v1976
    %2785 = vmatpush1.msra.mxu0 %v1975
    %2786 = vmatprep.subr.mxu0 %v1980
    %2787 = vmatpush1.msra.mxu0 %v1979
    %2788 = vmatprep.subr.mxu0 %v1984
    %2789 = vmatpush1.msra.mxu0 %v1983
    %2790 = vmatprep.subr.mxu0 %v1988
    %2791 = vmatpush1.msra.mxu0 %v1987
    %2792 = vmatprep.subr.mxu0 %v1992
    %2793 = vmatpush1.msra.mxu0 %v1991
    %2794 = vmatprep.subr.mxu0 0.0
    %2795 = vmatpush1.msra.mxu0 0.0
    %2796 = vmatprep.subr.mxu0 0.0
    %2797 = vmatpush1.msra.mxu0 0.0
    %2798 = vmatprep.subr.mxu0 0.0
    %2799 = vmatpush1.msra.mxu0 0.0
    %2800 = vmatprep.subr.mxu0 0.0
    %2801 = vmatpush1.msra.mxu0 0.0
    %2802 = vmatprep.subr.mxu0 0.0
    %2803 = vmatpush1.msra.mxu0 0.0
    %2804 = vmatprep.subr.mxu0 0.0
    %2805 = vmatpush1.msra.mxu0 0.0
    %2806 = vmatprep.subr.mxu0 0.0
    %2807 = vmatpush1.msra.mxu0 0.0
    %2808 = vmatprep.subr.mxu0 0.0
    %2809 = vmatpush1.msra.mxu0 0.0
    %2810 = vmatprep.subr.mxu0 0.0
    %2811 = vmatpush1.msra.mxu0 0.0
    %2812 = vmatprep.subr.mxu0 0.0
    %2813 = vmatpush1.msra.mxu0 0.0
    %2814 = vmatprep.subr.mxu0 0.0
    %2815 = vmatpush1.msra.mxu0 0.0
    %2816 = vmatprep.subr.mxu0 0.0
    %2817 = vmatpush1.msra.mxu0 0.0
    %2818 = vmatprep.subr.mxu0 0.0
    %2819 = vmatpush1.msra.mxu0 0.0
    %2820 = vmatprep.subr.mxu0 0.0
    %2821 = vmatpush1.msra.mxu0 0.0
    %2822 = vmatprep.subr.mxu0 0.0
    %2823 = vmatpush1.msra.mxu0 0.0
    %2824 = vmatprep.subr.mxu0 0.0
    %2825 = vmatpush1.msra.mxu0 0.0
    %2826 = vmatprep.mubr.f32.mxu0 0.0
    %2827 = vmatmul.mubr.f32.gmra.mrb[0].mxu0 %v2759
    %v2828 = vpop.f32.mrb[0].mxu0
    %v2829 = vadd.f32 0.0, %v2828
    %v2830 = vpop.f32.mrb[0].mxu0
    %v2831 = vadd.f32 0.0, %v2830
    %2832 = vdwg.mxu0
    %2833 = vmatprep.subr.mxu0 %v1934
    %2834 = vmatpush1.msra.mxu0 %v1933
    %2835 = vmatprep.subr.mxu0 %v1938
    %2836 = vmatpush1.msra.mxu0 %v1937
    %2837 = vmatprep.subr.mxu0 %v1942
    %2838 = vmatpush1.msra.mxu0 %v1941
    %2839 = vmatprep.subr.mxu0 %v1946
    %2840 = vmatpush1.msra.mxu0 %v1945
    %2841 = vmatprep.subr.mxu0 %v1950
    %2842 = vmatpush1.msra.mxu0 %v1949
    %2843 = vmatprep.subr.mxu0 %v1954
    %2844 = vmatpush1.msra.mxu0 %v1953
    %2845 = vmatprep.subr.mxu0 %v1958
    %2846 = vmatpush1.msra.mxu0 %v1957
    %2847 = vmatprep.subr.mxu0 %v1962
    %2848 = vmatpush1.msra.mxu0 %v1961
    %2849 = vmatprep.subr.mxu0 %v1966
    %2850 = vmatpush1.msra.mxu0 %v1965
    %2851 = vmatprep.subr.mxu0 %v1970
    %2852 = vmatpush1.msra.mxu0 %v1969
    %2853 = vmatprep.subr.mxu0 %v1974
    %2854 = vmatpush1.msra.mxu0 %v1973
    %2855 = vmatprep.subr.mxu0 %v1978
    %2856 = vmatpush1.msra.mxu0 %v1977
    %2857 = vmatprep.subr.mxu0 %v1982
    %2858 = vmatpush1.msra.mxu0 %v1981
    %2859 = vmatprep.subr.mxu0 %v1986
    %2860 = vmatpush1.msra.mxu0 %v1985
    %2861 = vmatprep.subr.mxu0 %v1990
    %2862 = vmatpush1.msra.mxu0 %v1989
    %2863 = vmatprep.subr.mxu0 %v1994
    %2864 = vmatpush1.msra.mxu0 %v1993
    %2865 = vmatprep.subr.mxu0 0.0
    %2866 = vmatpush1.msra.mxu0 0.0
    %2867 = vmatprep.subr.mxu0 0.0
    %2868 = vmatpush1.msra.mxu0 0.0
    %2869 = vmatprep.subr.mxu0 0.0
    %2870 = vmatpush1.msra.mxu0 0.0
    %2871 = vmatprep.subr.mxu0 0.0
    %2872 = vmatpush1.msra.mxu0 0.0
    %2873 = vmatprep.subr.mxu0 0.0
    %2874 = vmatpush1.msra.mxu0 0.0
    %2875 = vmatprep.subr.mxu0 0.0
    %2876 = vmatpush1.msra.mxu0 0.0
    %2877 = vmatprep.subr.mxu0 0.0
    %2878 = vmatpush1.msra.mxu0 0.0
    %2879 = vmatprep.subr.mxu0 0.0
    %2880 = vmatpush1.msra.mxu0 0.0
    %2881 = vmatprep.subr.mxu0 0.0
    %2882 = vmatpush1.msra.mxu0 0.0
    %2883 = vmatprep.subr.mxu0 0.0
    %2884 = vmatpush1.msra.mxu0 0.0
    %2885 = vmatprep.subr.mxu0 0.0
    %2886 = vmatpush1.msra.mxu0 0.0
    %2887 = vmatprep.subr.mxu0 0.0
    %2888 = vmatpush1.msra.mxu0 0.0
    %2889 = vmatprep.subr.mxu0 0.0
    %2890 = vmatpush1.msra.mxu0 0.0
    %2891 = vmatprep.subr.mxu0 0.0
    %2892 = vmatpush1.msra.mxu0 0.0
    %2893 = vmatprep.subr.mxu0 0.0
    %2894 = vmatpush1.msra.mxu0 0.0
    %2895 = vmatprep.subr.mxu0 0.0
    %2896 = vmatpush1.msra.mxu0 0.0
    %2897 = vmatprep.mubr.f32.mxu0 0.0
    %2898 = vmatmul.mubr.f32.gmra.mrb[0].mxu0 %v2759
    %v2899 = vpop.f32.mrb[0].mxu0
    %v2900 = vadd.f32 0.0, %v2899
    %v2901 = vpop.f32.mrb[0].mxu0
    %v2902 = vadd.f32 0.0, %v2901
    %2903 = vdwg.mxu0
    %v2904 = vadd.f32 %v2102, %v2829
    %v2905 = vadd.f32 %v2104, %v2831
    %v2906 = vadd.f32 %v2215, %v2900
    %v2907 = vadd.f32 %v2217, %v2902
    %v2908 = vxor.u32 %v2904, 2147483648
    %v2909 = vxor.u32 %v2905, 2147483648
    %v2910 = vmul.f32 %v2908, 1.442695
    %v2911 = vpow.pop %v2910
    %v2912 = vmul.f32 %v2909, 1.442695
    %v2913 = vpow.pop %v2912
    %v2914 = vadd.f32 %v2911, 1.0
    %v2915 = vadd.f32 %v2913, 1.0
    %v2916 = vrcp.pop %v2914
    %v2917 = vmul.f32 1.0, %v2916
    %v2918 = vrcp.pop %v2915
    %v2919 = vmul.f32 1.0, %v2918
    %v2920 = vtanh.pop %v2906
    %v2921 = vxor.u32 %v2907, 2147483648
    %v2922 = vmul.f32 %v2921, 1.442695
    %v2923 = vpow.pop %v2922
    %v2924 = vadd.f32 %v2923, 1.0
    %v2925 = vrcp.pop %v2924
    %v2926 = vmul.f32 1.0, %v2925
    %v2927 = vmul.f32 %v2919, %v2757
    %v2928 = vmul.f32 %v2917, %v2920
    %v2929 = vadd.f32 %v2927, %v2928
    %v2930 = vtanh.pop %v2929
    %v2931 = vmul.f32 %v2926, %v2930
    %s2932 = scalar_lea.vmem [#allocation3], 24
    %2933 = vst [vmem:[%s2932] sm:$0xff] %v2931
    %2934 = vmatprep.subr.mxu0 %v1932
    %2935 = vmatpush1.msra.mxu0 %v1931
    %2936 = vmatprep.subr.mxu0 %v1936
    %2937 = vmatpush1.msra.mxu0 %v1935
    %2938 = vmatprep.subr.mxu0 %v1940
    %2939 = vmatpush1.msra.mxu0 %v1939
    %2940 = vmatprep.subr.mxu0 %v1944
    %2941 = vmatpush1.msra.mxu0 %v1943
    %2942 = vmatprep.subr.mxu0 %v1948
    %2943 = vmatpush1.msra.mxu0 %v1947
    %2944 = vmatprep.subr.mxu0 %v1952
    %2945 = vmatpush1.msra.mxu0 %v1951
    %2946 = vmatprep.subr.mxu0 %v1956
    %2947 = vmatpush1.msra.mxu0 %v1955
    %2948 = vmatprep.subr.mxu0 %v1960
    %2949 = vmatpush1.msra.mxu0 %v1959
    %2950 = vmatprep.subr.mxu0 %v1964
    %2951 = vmatpush1.msra.mxu0 %v1963
    %2952 = vmatprep.subr.mxu0 %v1968
    %2953 = vmatpush1.msra.mxu0 %v1967
    %2954 = vmatprep.subr.mxu0 %v1972
    %2955 = vmatpush1.msra.mxu0 %v1971
    %2956 = vmatprep.subr.mxu0 %v1976
    %2957 = vmatpush1.msra.mxu0 %v1975
    %2958 = vmatprep.subr.mxu0 %v1980
    %2959 = vmatpush1.msra.mxu0 %v1979
    %2960 = vmatprep.subr.mxu0 %v1984
    %2961 = vmatpush1.msra.mxu0 %v1983
    %2962 = vmatprep.subr.mxu0 %v1988
    %2963 = vmatpush1.msra.mxu0 %v1987
    %2964 = vmatprep.subr.mxu0 %v1992
    %2965 = vmatpush1.msra.mxu0 %v1991
    %2966 = vmatprep.subr.mxu0 0.0
    %2967 = vmatpush1.msra.mxu0 0.0
    %2968 = vmatprep.subr.mxu0 0.0
    %2969 = vmatpush1.msra.mxu0 0.0
    %2970 = vmatprep.subr.mxu0 0.0
    %2971 = vmatpush1.msra.mxu0 0.0
    %2972 = vmatprep.subr.mxu0 0.0
    %2973 = vmatpush1.msra.mxu0 0.0
    %2974 = vmatprep.subr.mxu0 0.0
    %2975 = vmatpush1.msra.mxu0 0.0
    %2976 = vmatprep.subr.mxu0 0.0
    %2977 = vmatpush1.msra.mxu0 0.0
    %2978 = vmatprep.subr.mxu0 0.0
    %2979 = vmatpush1.msra.mxu0 0.0
    %2980 = vmatprep.subr.mxu0 0.0
    %2981 = vmatpush1.msra.mxu0 0.0
    %2982 = vmatprep.subr.mxu0 0.0
    %2983 = vmatpush1.msra.mxu0 0.0
    %2984 = vmatprep.subr.mxu0 0.0
    %2985 = vmatpush1.msra.mxu0 0.0
    %2986 = vmatprep.subr.mxu0 0.0
    %2987 = vmatpush1.msra.mxu0 0.0
    %2988 = vmatprep.subr.mxu0 0.0
    %2989 = vmatpush1.msra.mxu0 0.0
    %2990 = vmatprep.subr.mxu0 0.0
    %2991 = vmatpush1.msra.mxu0 0.0
    %2992 = vmatprep.subr.mxu0 0.0
    %2993 = vmatpush1.msra.mxu0 0.0
    %2994 = vmatprep.subr.mxu0 0.0
    %2995 = vmatpush1.msra.mxu0 0.0
    %2996 = vmatprep.subr.mxu0 0.0
    %2997 = vmatpush1.msra.mxu0 0.0
    %2998 = vmatprep.mubr.f32.mxu0 0.0
    %2999 = vmatmul.mubr.f32.gmra.mrb[0].mxu0 %v2931
    %v3000 = vpop.f32.mrb[0].mxu0
    %v3001 = vadd.f32 0.0, %v3000
    %v3002 = vpop.f32.mrb[0].mxu0
    %v3003 = vadd.f32 0.0, %v3002
    %3004 = vdwg.mxu0
    %3005 = vmatprep.subr.mxu0 %v1934
    %3006 = vmatpush1.msra.mxu0 %v1933
    %3007 = vmatprep.subr.mxu0 %v1938
    %3008 = vmatpush1.msra.mxu0 %v1937
    %3009 = vmatprep.subr.mxu0 %v1942
    %3010 = vmatpush1.msra.mxu0 %v1941
    %3011 = vmatprep.subr.mxu0 %v1946
    %3012 = vmatpush1.msra.mxu0 %v1945
    %3013 = vmatprep.subr.mxu0 %v1950
    %3014 = vmatpush1.msra.mxu0 %v1949
    %3015 = vmatprep.subr.mxu0 %v1954
    %3016 = vmatpush1.msra.mxu0 %v1953
    %3017 = vmatprep.subr.mxu0 %v1958
    %3018 = vmatpush1.msra.mxu0 %v1957
    %3019 = vmatprep.subr.mxu0 %v1962
    %3020 = vmatpush1.msra.mxu0 %v1961
    %3021 = vmatprep.subr.mxu0 %v1966
    %3022 = vmatpush1.msra.mxu0 %v1965
    %3023 = vmatprep.subr.mxu0 %v1970
    %3024 = vmatpush1.msra.mxu0 %v1969
    %3025 = vmatprep.subr.mxu0 %v1974
    %3026 = vmatpush1.msra.mxu0 %v1973
    %3027 = vmatprep.subr.mxu0 %v1978
    %3028 = vmatpush1.msra.mxu0 %v1977
    %3029 = vmatprep.subr.mxu0 %v1982
    %3030 = vmatpush1.msra.mxu0 %v1981
    %3031 = vmatprep.subr.mxu0 %v1986
    %3032 = vmatpush1.msra.mxu0 %v1985
    %3033 = vmatprep.subr.mxu0 %v1990
    %3034 = vmatpush1.msra.mxu0 %v1989
    %3035 = vmatprep.subr.mxu0 %v1994
    %3036 = vmatpush1.msra.mxu0 %v1993
    %3037 = vmatprep.subr.mxu0 0.0
    %3038 = vmatpush1.msra.mxu0 0.0
    %3039 = vmatprep.subr.mxu0 0.0
    %3040 = vmatpush1.msra.mxu0 0.0
    %3041 = vmatprep.subr.mxu0 0.0
    %3042 = vmatpush1.msra.mxu0 0.0
    %3043 = vmatprep.subr.mxu0 0.0
    %3044 = vmatpush1.msra.mxu0 0.0
    %3045 = vmatprep.subr.mxu0 0.0
    %3046 = vmatpush1.msra.mxu0 0.0
    %3047 = vmatprep.subr.mxu0 0.0
    %3048 = vmatpush1.msra.mxu0 0.0
    %3049 = vmatprep.subr.mxu0 0.0
    %3050 = vmatpush1.msra.mxu0 0.0
    %3051 = vmatprep.subr.mxu0 0.0
    %3052 = vmatpush1.msra.mxu0 0.0
    %3053 = vmatprep.subr.mxu0 0.0
    %3054 = vmatpush1.msra.mxu0 0.0
    %3055 = vmatprep.subr.mxu0 0.0
    %3056 = vmatpush1.msra.mxu0 0.0
    %3057 = vmatprep.subr.mxu0 0.0
    %3058 = vmatpush1.msra.mxu0 0.0
    %3059 = vmatprep.subr.mxu0 0.0
    %3060 = vmatpush1.msra.mxu0 0.0
    %3061 = vmatprep.subr.mxu0 0.0
    %3062 = vmatpush1.msra.mxu0 0.0
    %3063 = vmatprep.subr.mxu0 0.0
    %3064 = vmatpush1.msra.mxu0 0.0
    %3065 = vmatprep.subr.mxu0 0.0
    %3066 = vmatpush1.msra.mxu0 0.0
    %3067 = vmatprep.subr.mxu0 0.0
    %3068 = vmatpush1.msra.mxu0 0.0
    %3069 = vmatprep.mubr.f32.mxu0 0.0
    %3070 = vmatmul.mubr.f32.gmra.mrb[0].mxu0 %v2931
    %v3071 = vpop.f32.mrb[0].mxu0
    %v3072 = vadd.f32 0.0, %v3071
    %v3073 = vpop.f32.mrb[0].mxu0
    %v3074 = vadd.f32 0.0, %v3073
    %3075 = vdwg.mxu0
    %v3076 = vadd.f32 %v2108, %v3001
    %v3077 = vadd.f32 %v2110, %v3003
    %v3078 = vadd.f32 %v2221, %v3072
    %v3079 = vadd.f32 %v2223, %v3074
    %v3080 = vxor.u32 %v3076, 2147483648
    %v3081 = vxor.u32 %v3077, 2147483648
    %v3082 = vmul.f32 %v3080, 1.442695
    %v3083 = vpow.pop %v3082
    %v3084 = vmul.f32 %v3081, 1.442695
    %v3085 = vpow.pop %v3084
    %v3086 = vadd.f32 %v3083, 1.0
    %v3087 = vadd.f32 %v3085, 1.0
    %v3088 = vrcp.pop %v3086
    %v3089 = vmul.f32 1.0, %v3088
    %v3090 = vrcp.pop %v3087
    %v3091 = vmul.f32 1.0, %v3090
    %v3092 = vtanh.pop %v3078
    %v3093 = vxor.u32 %v3079, 2147483648
    %v3094 = vmul.f32 %v3093, 1.442695
    %v3095 = vpow.pop %v3094
    %v3096 = vadd.f32 %v3095, 1.0
    %v3097 = vrcp.pop %v3096
    %v3098 = vmul.f32 1.0, %v3097
    %v3099 = vmul.f32 %v3091, %v2929
    %v3100 = vmul.f32 %v3089, %v3092
    %v3101 = vadd.f32 %v3099, %v3100
    %v3102 = vtanh.pop %v3101
    %v3103 = vmul.f32 %v3098, %v3102
    %s3104 = scalar_lea.vmem [#allocation3], 32
    %3105 = vst [vmem:[%s3104] sm:$0xff] %v3103
    %3106 = vmatprep.subr.mxu0 %v1932
    %3107 = vmatpush1.msra.mxu0 %v1931
    %3108 = vmatprep.subr.mxu0 %v1936
    %3109 = vmatpush1.msra.mxu0 %v1935
    %3110 = vmatprep.subr.mxu0 %v1940
    %3111 = vmatpush1.msra.mxu0 %v1939
    %3112 = vmatprep.subr.mxu0 %v1944
    %3113 = vmatpush1.msra.mxu0 %v1943
    %3114 = vmatprep.subr.mxu0 %v1948
    %3115 = vmatpush1.msra.mxu0 %v1947
    %3116 = vmatprep.subr.mxu0 %v1952
    %3117 = vmatpush1.msra.mxu0 %v1951
    %3118 = vmatprep.subr.mxu0 %v1956
    %3119 = vmatpush1.msra.mxu0 %v1955
    %3120 = vmatprep.subr.mxu0 %v1960
    %3121 = vmatpush1.msra.mxu0 %v1959
    %3122 = vmatprep.subr.mxu0 %v1964
    %3123 = vmatpush1.msra.mxu0 %v1963
    %3124 = vmatprep.subr.mxu0 %v1968
    %3125 = vmatpush1.msra.mxu0 %v1967
    %3126 = vmatprep.subr.mxu0 %v1972
    %3127 = vmatpush1.msra.mxu0 %v1971
    %3128 = vmatprep.subr.mxu0 %v1976
    %3129 = vmatpush1.msra.mxu0 %v1975
    %3130 = vmatprep.subr.mxu0 %v1980
    %3131 = vmatpush1.msra.mxu0 %v1979
    %3132 = vmatprep.subr.mxu0 %v1984
    %3133 = vmatpush1.msra.mxu0 %v1983
    %3134 = vmatprep.subr.mxu0 %v1988
    %3135 = vmatpush1.msra.mxu0 %v1987
    %3136 = vmatprep.subr.mxu0 %v1992
    %3137 = vmatpush1.msra.mxu0 %v1991
    %3138 = vmatprep.subr.mxu0 0.0
    %3139 = vmatpush1.msra.mxu0 0.0
    %3140 = vmatprep.subr.mxu0 0.0
    %3141 = vmatpush1.msra.mxu0 0.0
    %3142 = vmatprep.subr.mxu0 0.0
    %3143 = vmatpush1.msra.mxu0 0.0
    %3144 = vmatprep.subr.mxu0 0.0
    %3145 = vmatpush1.msra.mxu0 0.0
    %3146 = vmatprep.subr.mxu0 0.0
    %3147 = vmatpush1.msra.mxu0 0.0
    %3148 = vmatprep.subr.mxu0 0.0
    %3149 = vmatpush1.msra.mxu0 0.0
    %3150 = vmatprep.subr.mxu0 0.0
    %3151 = vmatpush1.msra.mxu0 0.0
    %3152 = vmatprep.subr.mxu0 0.0
    %3153 = vmatpush1.msra.mxu0 0.0
    %3154 = vmatprep.subr.mxu0 0.0
    %3155 = vmatpush1.msra.mxu0 0.0
    %3156 = vmatprep.subr.mxu0 0.0
    %3157 = vmatpush1.msra.mxu0 0.0
    %3158 = vmatprep.subr.mxu0 0.0
    %3159 = vmatpush1.msra.mxu0 0.0
    %3160 = vmatprep.subr.mxu0 0.0
    %3161 = vmatpush1.msra.mxu0 0.0
    %3162 = vmatprep.subr.mxu0 0.0
    %3163 = vmatpush1.msra.mxu0 0.0
    %3164 = vmatprep.subr.mxu0 0.0
    %3165 = vmatpush1.msra.mxu0 0.0
    %3166 = vmatprep.subr.mxu0 0.0
    %3167 = vmatpush1.msra.mxu0 0.0
    %3168 = vmatprep.subr.mxu0 0.0
    %3169 = vmatpush1.msra.mxu0 0.0
    %3170 = vmatprep.mubr.f32.mxu0 0.0
    %3171 = vmatmul.mubr.f32.gmra.mrb[0].mxu0 %v3103
    %v3172 = vpop.f32.mrb[0].mxu0
    %v3173 = vadd.f32 0.0, %v3172
    %v3174 = vpop.f32.mrb[0].mxu0
    %v3175 = vadd.f32 0.0, %v3174
    %3176 = vdwg.mxu0
    %3177 = vmatprep.subr.mxu0 %v1934
    %3178 = vmatpush1.msra.mxu0 %v1933
    %3179 = vmatprep.subr.mxu0 %v1938
    %3180 = vmatpush1.msra.mxu0 %v1937
    %3181 = vmatprep.subr.mxu0 %v1942
    %3182 = vmatpush1.msra.mxu0 %v1941
    %3183 = vmatprep.subr.mxu0 %v1946
    %3184 = vmatpush1.msra.mxu0 %v1945
    %3185 = vmatprep.subr.mxu0 %v1950
    %3186 = vmatpush1.msra.mxu0 %v1949
    %3187 = vmatprep.subr.mxu0 %v1954
    %3188 = vmatpush1.msra.mxu0 %v1953
    %3189 = vmatprep.subr.mxu0 %v1958
    %3190 = vmatpush1.msra.mxu0 %v1957
    %3191 = vmatprep.subr.mxu0 %v1962
    %3192 = vmatpush1.msra.mxu0 %v1961
    %3193 = vmatprep.subr.mxu0 %v1966
    %3194 = vmatpush1.msra.mxu0 %v1965
    %3195 = vmatprep.subr.mxu0 %v1970
    %3196 = vmatpush1.msra.mxu0 %v1969
    %3197 = vmatprep.subr.mxu0 %v1974
    %3198 = vmatpush1.msra.mxu0 %v1973
    %3199 = vmatprep.subr.mxu0 %v1978
    %3200 = vmatpush1.msra.mxu0 %v1977
    %3201 = vmatprep.subr.mxu0 %v1982
    %3202 = vmatpush1.msra.mxu0 %v1981
    %3203 = vmatprep.subr.mxu0 %v1986
    %3204 = vmatpush1.msra.mxu0 %v1985
    %3205 = vmatprep.subr.mxu0 %v1990
    %3206 = vmatpush1.msra.mxu0 %v1989
    %3207 = vmatprep.subr.mxu0 %v1994
    %3208 = vmatpush1.msra.mxu0 %v1993
    %3209 = vmatprep.subr.mxu0 0.0
    %3210 = vmatpush1.msra.mxu0 0.0
    %3211 = vmatprep.subr.mxu0 0.0
    %3212 = vmatpush1.msra.mxu0 0.0
    %3213 = vmatprep.subr.mxu0 0.0
    %3214 = vmatpush1.msra.mxu0 0.0
    %3215 = vmatprep.subr.mxu0 0.0
    %3216 = vmatpush1.msra.mxu0 0.0
    %3217 = vmatprep.subr.mxu0 0.0
    %3218 = vmatpush1.msra.mxu0 0.0
    %3219 = vmatprep.subr.mxu0 0.0
    %3220 = vmatpush1.msra.mxu0 0.0
    %3221 = vmatprep.subr.mxu0 0.0
    %3222 = vmatpush1.msra.mxu0 0.0
    %3223 = vmatprep.subr.mxu0 0.0
    %3224 = vmatpush1.msra.mxu0 0.0
    %3225 = vmatprep.subr.mxu0 0.0
    %3226 = vmatpush1.msra.mxu0 0.0
    %3227 = vmatprep.subr.mxu0 0.0
    %3228 = vmatpush1.msra.mxu0 0.0
    %3229 = vmatprep.subr.mxu0 0.0
    %3230 = vmatpush1.msra.mxu0 0.0
    %3231 = vmatprep.subr.mxu0 0.0
    %3232 = vmatpush1.msra.mxu0 0.0
    %3233 = vmatprep.subr.mxu0 0.0
    %3234 = vmatpush1.msra.mxu0 0.0
    %3235 = vmatprep.subr.mxu0 0.0
    %3236 = vmatpush1.msra.mxu0 0.0
    %3237 = vmatprep.subr.mxu0 0.0
    %3238 = vmatpush1.msra.mxu0 0.0
    %3239 = vmatprep.subr.mxu0 0.0
    %3240 = vmatpush1.msra.mxu0 0.0
    %3241 = vmatprep.mubr.f32.mxu0 0.0
    %3242 = vmatmul.mubr.f32.gmra.mrb[0].mxu0 %v3103
    %v3243 = vpop.f32.mrb[0].mxu0
    %v3244 = vadd.f32 0.0, %v3243
    %v3245 = vpop.f32.mrb[0].mxu0
    %v3246 = vadd.f32 0.0, %v3245
    %3247 = vdwg.mxu0
    %v3248 = vadd.f32 %v2114, %v3173
    %v3249 = vadd.f32 %v2116, %v3175
    %v3250 = vadd.f32 %v2227, %v3244
    %v3251 = vadd.f32 %v2229, %v3246
    %v3252 = vxor.u32 %v3248, 2147483648
    %v3253 = vxor.u32 %v3249, 2147483648
    %v3254 = vmul.f32 %v3252, 1.442695
    %v3255 = vpow.pop %v3254
    %v3256 = vmul.f32 %v3253, 1.442695
    %v3257 = vpow.pop %v3256
    %v3258 = vadd.f32 %v3255, 1.0
    %v3259 = vadd.f32 %v3257, 1.0
    %v3260 = vrcp.pop %v3258
    %v3261 = vmul.f32 1.0, %v3260
    %v3262 = vrcp.pop %v3259
    %v3263 = vmul.f32 1.0, %v3262
    %v3264 = vtanh.pop %v3250
    %v3265 = vxor.u32 %v3251, 2147483648
    %v3266 = vmul.f32 %v3265, 1.442695
    %v3267 = vpow.pop %v3266
    %v3268 = vadd.f32 %v3267, 1.0
    %v3269 = vrcp.pop %v3268
    %v3270 = vmul.f32 1.0, %v3269
    %v3271 = vmul.f32 %v3263, %v3101
    %v3272 = vmul.f32 %v3261, %v3264
    %v3273 = vadd.f32 %v3271, %v3272
    %v3274 = vtanh.pop %v3273
    %v3275 = vmul.f32 %v3270, %v3274
    %s3276 = scalar_lea.vmem [#allocation3], 40
    %3277 = vst [vmem:[%s3276] sm:$0xff] %v3275
    %3278 = vmatprep.subr.mxu0 %v1932
    %3279 = vmatpush1.msra.mxu0 %v1931
    %3280 = vmatprep.subr.mxu0 %v1936
    %3281 = vmatpush1.msra.mxu0 %v1935
    %3282 = vmatprep.subr.mxu0 %v1940
    %3283 = vmatpush1.msra.mxu0 %v1939
    %3284 = vmatprep.subr.mxu0 %v1944
    %3285 = vmatpush1.msra.mxu0 %v1943
    %3286 = vmatprep.subr.mxu0 %v1948
    %3287 = vmatpush1.msra.mxu0 %v1947
    %3288 = vmatprep.subr.mxu0 %v1952
    %3289 = vmatpush1.msra.mxu0 %v1951
    %3290 = vmatprep.subr.mxu0 %v1956
    %3291 = vmatpush1.msra.mxu0 %v1955
    %3292 = vmatprep.subr.mxu0 %v1960
    %3293 = vmatpush1.msra.mxu0 %v1959
    %3294 = vmatprep.subr.mxu0 %v1964
    %3295 = vmatpush1.msra.mxu0 %v1963
    %3296 = vmatprep.subr.mxu0 %v1968
    %3297 = vmatpush1.msra.mxu0 %v1967
    %3298 = vmatprep.subr.mxu0 %v1972
    %3299 = vmatpush1.msra.mxu0 %v1971
    %3300 = vmatprep.subr.mxu0 %v1976
    %3301 = vmatpush1.msra.mxu0 %v1975
    %3302 = vmatprep.subr.mxu0 %v1980
    %3303 = vmatpush1.msra.mxu0 %v1979
    %3304 = vmatprep.subr.mxu0 %v1984
    %3305 = vmatpush1.msra.mxu0 %v1983
    %3306 = vmatprep.subr.mxu0 %v1988
    %3307 = vmatpush1.msra.mxu0 %v1987
    %3308 = vmatprep.subr.mxu0 %v1992
    %3309 = vmatpush1.msra.mxu0 %v1991
    %3310 = vmatprep.subr.mxu0 0.0
    %3311 = vmatpush1.msra.mxu0 0.0
    %3312 = vmatprep.subr.mxu0 0.0
    %3313 = vmatpush1.msra.mxu0 0.0
    %3314 = vmatprep.subr.mxu0 0.0
    %3315 = vmatpush1.msra.mxu0 0.0
    %3316 = vmatprep.subr.mxu0 0.0
    %3317 = vmatpush1.msra.mxu0 0.0
    %3318 = vmatprep.subr.mxu0 0.0
    %3319 = vmatpush1.msra.mxu0 0.0
    %3320 = vmatprep.subr.mxu0 0.0
    %3321 = vmatpush1.msra.mxu0 0.0
    %3322 = vmatprep.subr.mxu0 0.0
    %3323 = vmatpush1.msra.mxu0 0.0
    %3324 = vmatprep.subr.mxu0 0.0
    %3325 = vmatpush1.msra.mxu0 0.0
    %3326 = vmatprep.subr.mxu0 0.0
    %3327 = vmatpush1.msra.mxu0 0.0
    %3328 = vmatprep.subr.mxu0 0.0
    %3329 = vmatpush1.msra.mxu0 0.0
    %3330 = vmatprep.subr.mxu0 0.0
    %3331 = vmatpush1.msra.mxu0 0.0
    %3332 = vmatprep.subr.mxu0 0.0
    %3333 = vmatpush1.msra.mxu0 0.0
    %3334 = vmatprep.subr.mxu0 0.0
    %3335 = vmatpush1.msra.mxu0 0.0
    %3336 = vmatprep.subr.mxu0 0.0
    %3337 = vmatpush1.msra.mxu0 0.0
    %3338 = vmatprep.subr.mxu0 0.0
    %3339 = vmatpush1.msra.mxu0 0.0
    %3340 = vmatprep.subr.mxu0 0.0
    %3341 = vmatpush1.msra.mxu0 0.0
    %3342 = vmatprep.mubr.f32.mxu0 0.0
    %3343 = vmatmul.mubr.f32.gmra.mrb[0].mxu0 %v3275
    %v3344 = vpop.f32.mrb[0].mxu0
    %v3345 = vadd.f32 0.0, %v3344
    %v3346 = vpop.f32.mrb[0].mxu0
    %v3347 = vadd.f32 0.0, %v3346
    %3348 = vdwg.mxu0
    %3349 = vmatprep.subr.mxu0 %v1934
    %3350 = vmatpush1.msra.mxu0 %v1933
    %3351 = vmatprep.subr.mxu0 %v1938
    %3352 = vmatpush1.msra.mxu0 %v1937
    %3353 = vmatprep.subr.mxu0 %v1942
    %3354 = vmatpush1.msra.mxu0 %v1941
    %3355 = vmatprep.subr.mxu0 %v1946
    %3356 = vmatpush1.msra.mxu0 %v1945
    %3357 = vmatprep.subr.mxu0 %v1950
    %3358 = vmatpush1.msra.mxu0 %v1949
    %3359 = vmatprep.subr.mxu0 %v1954
    %3360 = vmatpush1.msra.mxu0 %v1953
    %3361 = vmatprep.subr.mxu0 %v1958
    %3362 = vmatpush1.msra.mxu0 %v1957
    %3363 = vmatprep.subr.mxu0 %v1962
    %3364 = vmatpush1.msra.mxu0 %v1961
    %3365 = vmatprep.subr.mxu0 %v1966
    %3366 = vmatpush1.msra.mxu0 %v1965
    %3367 = vmatprep.subr.mxu0 %v1970
    %3368 = vmatpush1.msra.mxu0 %v1969
    %3369 = vmatprep.subr.mxu0 %v1974
    %3370 = vmatpush1.msra.mxu0 %v1973
    %3371 = vmatprep.subr.mxu0 %v1978
    %3372 = vmatpush1.msra.mxu0 %v1977
    %3373 = vmatprep.subr.mxu0 %v1982
    %3374 = vmatpush1.msra.mxu0 %v1981
    %3375 = vmatprep.subr.mxu0 %v1986
    %3376 = vmatpush1.msra.mxu0 %v1985
    %3377 = vmatprep.subr.mxu0 %v1990
    %3378 = vmatpush1.msra.mxu0 %v1989
    %3379 = vmatprep.subr.mxu0 %v1994
    %3380 = vmatpush1.msra.mxu0 %v1993
    %3381 = vmatprep.subr.mxu0 0.0
    %3382 = vmatpush1.msra.mxu0 0.0
    %3383 = vmatprep.subr.mxu0 0.0
    %3384 = vmatpush1.msra.mxu0 0.0
    %3385 = vmatprep.subr.mxu0 0.0
    %3386 = vmatpush1.msra.mxu0 0.0
    %3387 = vmatprep.subr.mxu0 0.0
    %3388 = vmatpush1.msra.mxu0 0.0
    %3389 = vmatprep.subr.mxu0 0.0
    %3390 = vmatpush1.msra.mxu0 0.0
    %3391 = vmatprep.subr.mxu0 0.0
    %3392 = vmatpush1.msra.mxu0 0.0
    %3393 = vmatprep.subr.mxu0 0.0
    %3394 = vmatpush1.msra.mxu0 0.0
    %3395 = vmatprep.subr.mxu0 0.0
    %3396 = vmatpush1.msra.mxu0 0.0
    %3397 = vmatprep.subr.mxu0 0.0
    %3398 = vmatpush1.msra.mxu0 0.0
    %3399 = vmatprep.subr.mxu0 0.0
    %3400 = vmatpush1.msra.mxu0 0.0
    %3401 = vmatprep.subr.mxu0 0.0
    %3402 = vmatpush1.msra.mxu0 0.0
    %3403 = vmatprep.subr.mxu0 0.0
    %3404 = vmatpush1.msra.mxu0 0.0
    %3405 = vmatprep.subr.mxu0 0.0
    %3406 = vmatpush1.msra.mxu0 0.0
    %3407 = vmatprep.subr.mxu0 0.0
    %3408 = vmatpush1.msra.mxu0 0.0
    %3409 = vmatprep.subr.mxu0 0.0
    %3410 = vmatpush1.msra.mxu0 0.0
    %3411 = vmatprep.subr.mxu0 0.0
    %3412 = vmatpush1.msra.mxu0 0.0
    %3413 = vmatprep.mubr.f32.mxu0 0.0
    %3414 = vmatmul.mubr.f32.gmra.mrb[0].mxu0 %v3275
    %v3415 = vpop.f32.mrb[0].mxu0
    %v3416 = vadd.f32 0.0, %v3415
    %v3417 = vpop.f32.mrb[0].mxu0
    %v3418 = vadd.f32 0.0, %v3417
    %3419 = vdwg.mxu0
    %v3420 = vadd.f32 %v2120, %v3345
    %v3421 = vadd.f32 %v2122, %v3347
    %v3422 = vadd.f32 %v2233, %v3416
    %v3423 = vadd.f32 %v2235, %v3418
    %v3424 = vxor.u32 %v3420, 2147483648
    %v3425 = vxor.u32 %v3421, 2147483648
    %v3426 = vmul.f32 %v3424, 1.442695
    %v3427 = vpow.pop %v3426
    %v3428 = vmul.f32 %v3425, 1.442695
    %v3429 = vpow.pop %v3428
    %v3430 = vadd.f32 %v3427, 1.0
    %v3431 = vadd.f32 %v3429, 1.0
    %v3432 = vrcp.pop %v3430
    %v3433 = vmul.f32 1.0, %v3432
    %v3434 = vrcp.pop %v3431
    %v3435 = vmul.f32 1.0, %v3434
    %v3436 = vtanh.pop %v3422
    %v3437 = vxor.u32 %v3423, 2147483648
    %v3438 = vmul.f32 %v3437, 1.442695
    %v3439 = vpow.pop %v3438
    %v3440 = vadd.f32 %v3439, 1.0
    %v3441 = vrcp.pop %v3440
    %v3442 = vmul.f32 1.0, %v3441
    %v3443 = vmul.f32 %v3435, %v3273
    %v3444 = vmul.f32 %v3433, %v3436
    %v3445 = vadd.f32 %v3443, %v3444
    %v3446 = vtanh.pop %v3445
    %v3447 = vmul.f32 %v3442, %v3446
    %s3448 = scalar_lea.vmem [#allocation3], 48
    %3449 = vst [vmem:[%s3448] sm:$0xff] %v3447
    %3450 = vmatprep.subr.mxu0 %v1932
    %3451 = vmatpush1.msra.mxu0 %v1931
    %3452 = vmatprep.subr.mxu0 %v1936
    %3453 = vmatpush1.msra.mxu0 %v1935
    %3454 = vmatprep.subr.mxu0 %v1940
    %3455 = vmatpush1.msra.mxu0 %v1939
    %3456 = vmatprep.subr.mxu0 %v1944
    %3457 = vmatpush1.msra.mxu0 %v1943
    %3458 = vmatprep.subr.mxu0 %v1948
    %3459 = vmatpush1.msra.mxu0 %v1947
    %3460 = vmatprep.subr.mxu0 %v1952
    %3461 = vmatpush1.msra.mxu0 %v1951
    %3462 = vmatprep.subr.mxu0 %v1956
    %3463 = vmatpush1.msra.mxu0 %v1955
    %3464 = vmatprep.subr.mxu0 %v1960
    %3465 = vmatpush1.msra.mxu0 %v1959
    %3466 = vmatprep.subr.mxu0 %v1964
    %3467 = vmatpush1.msra.mxu0 %v1963
    %3468 = vmatprep.subr.mxu0 %v1968
    %3469 = vmatpush1.msra.mxu0 %v1967
    %3470 = vmatprep.subr.mxu0 %v1972
    %3471 = vmatpush1.msra.mxu0 %v1971
    %3472 = vmatprep.subr.mxu0 %v1976
    %3473 = vmatpush1.msra.mxu0 %v1975
    %3474 = vmatprep.subr.mxu0 %v1980
    %3475 = vmatpush1.msra.mxu0 %v1979
    %3476 = vmatprep.subr.mxu0 %v1984
    %3477 = vmatpush1.msra.mxu0 %v1983
    %3478 = vmatprep.subr.mxu0 %v1988
    %3479 = vmatpush1.msra.mxu0 %v1987
    %3480 = vmatprep.subr.mxu0 %v1992
    %3481 = vmatpush1.msra.mxu0 %v1991
    %3482 = vmatprep.subr.mxu0 0.0
    %3483 = vmatpush1.msra.mxu0 0.0
    %3484 = vmatprep.subr.mxu0 0.0
    %3485 = vmatpush1.msra.mxu0 0.0
    %3486 = vmatprep.subr.mxu0 0.0
    %3487 = vmatpush1.msra.mxu0 0.0
    %3488 = vmatprep.subr.mxu0 0.0
    %3489 = vmatpush1.msra.mxu0 0.0
    %3490 = vmatprep.subr.mxu0 0.0
    %3491 = vmatpush1.msra.mxu0 0.0
    %3492 = vmatprep.subr.mxu0 0.0
    %3493 = vmatpush1.msra.mxu0 0.0
    %3494 = vmatprep.subr.mxu0 0.0
    %3495 = vmatpush1.msra.mxu0 0.0
    %3496 = vmatprep.subr.mxu0 0.0
    %3497 = vmatpush1.msra.mxu0 0.0
    %3498 = vmatprep.subr.mxu0 0.0
    %3499 = vmatpush1.msra.mxu0 0.0
    %3500 = vmatprep.subr.mxu0 0.0
    %3501 = vmatpush1.msra.mxu0 0.0
    %3502 = vmatprep.subr.mxu0 0.0
    %3503 = vmatpush1.msra.mxu0 0.0
    %3504 = vmatprep.subr.mxu0 0.0
    %3505 = vmatpush1.msra.mxu0 0.0
    %3506 = vmatprep.subr.mxu0 0.0
    %3507 = vmatpush1.msra.mxu0 0.0
    %3508 = vmatprep.subr.mxu0 0.0
    %3509 = vmatpush1.msra.mxu0 0.0
    %3510 = vmatprep.subr.mxu0 0.0
    %3511 = vmatpush1.msra.mxu0 0.0
    %3512 = vmatprep.subr.mxu0 0.0
    %3513 = vmatpush1.msra.mxu0 0.0
    %3514 = vmatprep.mubr.f32.mxu0 0.0
    %3515 = vmatmul.mubr.f32.gmra.mrb[0].mxu0 %v3447
    %v3516 = vpop.f32.mrb[0].mxu0
    %v3517 = vadd.f32 0.0, %v3516
    %v3518 = vpop.f32.mrb[0].mxu0
    %v3519 = vadd.f32 0.0, %v3518
    %3520 = vdwg.mxu0
    %3521 = vmatprep.subr.mxu0 %v1934
    %3522 = vmatpush1.msra.mxu0 %v1933
    %3523 = vmatprep.subr.mxu0 %v1938
    %3524 = vmatpush1.msra.mxu0 %v1937
    %3525 = vmatprep.subr.mxu0 %v1942
    %3526 = vmatpush1.msra.mxu0 %v1941
    %3527 = vmatprep.subr.mxu0 %v1946
    %3528 = vmatpush1.msra.mxu0 %v1945
    %3529 = vmatprep.subr.mxu0 %v1950
    %3530 = vmatpush1.msra.mxu0 %v1949
    %3531 = vmatprep.subr.mxu0 %v1954
    %3532 = vmatpush1.msra.mxu0 %v1953
    %3533 = vmatprep.subr.mxu0 %v1958
    %3534 = vmatpush1.msra.mxu0 %v1957
    %3535 = vmatprep.subr.mxu0 %v1962
    %3536 = vmatpush1.msra.mxu0 %v1961
    %3537 = vmatprep.subr.mxu0 %v1966
    %3538 = vmatpush1.msra.mxu0 %v1965
    %3539 = vmatprep.subr.mxu0 %v1970
    %3540 = vmatpush1.msra.mxu0 %v1969
    %3541 = vmatprep.subr.mxu0 %v1974
    %3542 = vmatpush1.msra.mxu0 %v1973
    %3543 = vmatprep.subr.mxu0 %v1978
    %3544 = vmatpush1.msra.mxu0 %v1977
    %3545 = vmatprep.subr.mxu0 %v1982
    %3546 = vmatpush1.msra.mxu0 %v1981
    %3547 = vmatprep.subr.mxu0 %v1986
    %3548 = vmatpush1.msra.mxu0 %v1985
    %3549 = vmatprep.subr.mxu0 %v1990
    %3550 = vmatpush1.msra.mxu0 %v1989
    %3551 = vmatprep.subr.mxu0 %v1994
    %3552 = vmatpush1.msra.mxu0 %v1993
    %3553 = vmatprep.subr.mxu0 0.0
    %3554 = vmatpush1.msra.mxu0 0.0
    %3555 = vmatprep.subr.mxu0 0.0
    %3556 = vmatpush1.msra.mxu0 0.0
    %3557 = vmatprep.subr.mxu0 0.0
    %3558 = vmatpush1.msra.mxu0 0.0
    %3559 = vmatprep.subr.mxu0 0.0
    %3560 = vmatpush1.msra.mxu0 0.0
    %3561 = vmatprep.subr.mxu0 0.0
    %3562 = vmatpush1.msra.mxu0 0.0
    %3563 = vmatprep.subr.mxu0 0.0
    %3564 = vmatpush1.msra.mxu0 0.0
    %3565 = vmatprep.subr.mxu0 0.0
    %3566 = vmatpush1.msra.mxu0 0.0
    %3567 = vmatprep.subr.mxu0 0.0
    %3568 = vmatpush1.msra.mxu0 0.0
    %3569 = vmatprep.subr.mxu0 0.0
    %3570 = vmatpush1.msra.mxu0 0.0
    %3571 = vmatprep.subr.mxu0 0.0
    %3572 = vmatpush1.msra.mxu0 0.0
    %3573 = vmatprep.subr.mxu0 0.0
    %3574 = vmatpush1.msra.mxu0 0.0
    %3575 = vmatprep.subr.mxu0 0.0
    %3576 = vmatpush1.msra.mxu0 0.0
    %3577 = vmatprep.subr.mxu0 0.0
    %3578 = vmatpush1.msra.mxu0 0.0
    %3579 = vmatprep.subr.mxu0 0.0
    %3580 = vmatpush1.msra.mxu0 0.0
    %3581 = vmatprep.subr.mxu0 0.0
    %3582 = vmatpush1.msra.mxu0 0.0
    %3583 = vmatprep.subr.mxu0 0.0
    %3584 = vmatpush1.msra.mxu0 0.0
    %3585 = vmatprep.mubr.f32.mxu0 0.0
    %3586 = vmatmul.mubr.f32.gmra.mrb[0].mxu0 %v3447
    %v3587 = vpop.f32.mrb[0].mxu0
    %v3588 = vadd.f32 0.0, %v3587
    %v3589 = vpop.f32.mrb[0].mxu0
    %v3590 = vadd.f32 0.0, %v3589
    %3591 = vdwg.mxu0
    %v3592 = vadd.f32 %v2126, %v3517
    %v3593 = vadd.f32 %v2128, %v3519
    %v3594 = vadd.f32 %v2239, %v3588
    %v3595 = vadd.f32 %v2241, %v3590
    %v3596 = vxor.u32 %v3592, 2147483648
    %v3597 = vxor.u32 %v3593, 2147483648
    %v3598 = vmul.f32 %v3596, 1.442695
    %v3599 = vpow.pop %v3598
    %v3600 = vmul.f32 %v3597, 1.442695
    %v3601 = vpow.pop %v3600
    %v3602 = vadd.f32 %v3599, 1.0
    %v3603 = vadd.f32 %v3601, 1.0
    %v3604 = vrcp.pop %v3602
    %v3605 = vmul.f32 1.0, %v3604
    %v3606 = vrcp.pop %v3603
    %v3607 = vmul.f32 1.0, %v3606
    %v3608 = vtanh.pop %v3594
    %v3609 = vxor.u32 %v3595, 2147483648
    %v3610 = vmul.f32 %v3609, 1.442695
    %v3611 = vpow.pop %v3610
    %v3612 = vadd.f32 %v3611, 1.0
    %v3613 = vrcp.pop %v3612
    %v3614 = vmul.f32 1.0, %v3613
    %v3615 = vmul.f32 %v3607, %v3445
    %v3616 = vmul.f32 %v3605, %v3608
    %v3617 = vadd.f32 %v3615, %v3616
    %v3618 = vtanh.pop %v3617
    %v3619 = vmul.f32 %v3614, %v3618
    %s3620 = scalar_lea.vmem [#allocation3], 56
    %3621 = vst [vmem:[%s3620] sm:$0xff] %v3619
    %s3622 = scalar_lea.vmem %s12, 8
    %3623 = vst [vmem:[%s3622] sm:$0xff] %v3619
    %s3624 = scalar_lea.vmem %s13, 8
    %3625 = vst [vmem:[%s3624] sm:$0xff] %v3617
    %v3626 = vld [vmem:[#allocation3] sm:$0xff]
    %v3627 = vld [vmem:[#allocation3 + $0x8] sm:$0xff]
    %v3628 = vld [vmem:[#allocation3 + $0x10] sm:$0xff]
    %v3629 = vld [vmem:[#allocation3 + $0x18] sm:$0xff]
    %v3630 = vld [vmem:[#allocation3 + $0x20] sm:$0xff]
    %v3631 = vld [vmem:[#allocation3 + $0x28] sm:$0xff]
    %v3632 = vld [vmem:[#allocation3 + $0x30] sm:$0xff]
    %v3633 = vld [vmem:[#allocation3 + $0x38] sm:$0xff]
    %v3634 = vld [vmem:[%s9] sm:$0xff]
    %v3635 = vld [vmem:[%s9 + $0x8] sm:$0xff]
    %v3636 = vld [vmem:[%s9 + $0x10] sm:$0xff]
    %v3637 = vld [vmem:[%s9 + $0x18] sm:$0xff]
    %v3638 = vld [vmem:[%s9 + $0x20] sm:$0xff]
    %v3639 = vld [vmem:[%s9 + $0x28] sm:$0xff]
    %v3640 = vld [vmem:[%s9 + $0x30] sm:$0xff]
    %v3641 = vld [vmem:[%s9 + $0x38] sm:$0xff]
    %v3642 = vld [vmem:[%s9 + $0x40] sm:$0xff]
    %v3643 = vld [vmem:[%s9 + $0x48] sm:$0xff]
    %v3644 = vld [vmem:[%s9 + $0x50] sm:$0xff]
    %v3645 = vld [vmem:[%s9 + $0x58] sm:$0xff]
    %v3646 = vld [vmem:[%s9 + $0x60] sm:$0xff]
    %v3647 = vld [vmem:[%s9 + $0x68] sm:$0xff]
    %v3648 = vld [vmem:[%s9 + $0x70] sm:$0xff]
    %v3649 = vld [vmem:[%s9 + $0x78] sm:$0xff]
    %v3650 = vld [vmem:[%s10] sm:$0x1]
    %v3652 = vlaneseq
    %v3653 = vshrl.u32 %v3652, 7
    %v3654 = vsub.s32 0, %v3653
    %v3655 = vrot.slane %v3650, %v3654
    %3657 = vmatprep.subr.mxu0 0.0
    %3658 = vmatpush1.msra.mxu0 %v3634
    %3659 = vmatprep.subr.mxu0 0.0
    %3660 = vmatpush1.msra.mxu0 %v3635
    %3661 = vmatprep.subr.mxu0 0.0
    %3662 = vmatpush1.msra.mxu0 %v3636
    %3663 = vmatprep.subr.mxu0 0.0
    %3664 = vmatpush1.msra.mxu0 %v3637
    %3665 = vmatprep.subr.mxu0 0.0
    %3666 = vmatpush1.msra.mxu0 %v3638
    %3667 = vmatprep.subr.mxu0 0.0
    %3668 = vmatpush1.msra.mxu0 %v3639
    %3669 = vmatprep.subr.mxu0 0.0
    %3670 = vmatpush1.msra.mxu0 %v3640
    %3671 = vmatprep.subr.mxu0 0.0
    %3672 = vmatpush1.msra.mxu0 %v3641
    %3673 = vmatprep.subr.mxu0 0.0
    %3674 = vmatpush1.msra.mxu0 %v3642
    %3675 = vmatprep.subr.mxu0 0.0
    %3676 = vmatpush1.msra.mxu0 %v3643
    %3677 = vmatprep.subr.mxu0 0.0
    %3678 = vmatpush1.msra.mxu0 %v3644
    %3679 = vmatprep.subr.mxu0 0.0
    %3680 = vmatpush1.msra.mxu0 %v3645
    %3681 = vmatprep.subr.mxu0 0.0
    %3682 = vmatpush1.msra.mxu0 %v3646
    %3683 = vmatprep.subr.mxu0 0.0
    %3684 = vmatpush1.msra.mxu0 %v3647
    %3685 = vmatprep.subr.mxu0 0.0
    %3686 = vmatpush1.msra.mxu0 %v3648
    %3687 = vmatprep.subr.mxu0 0.0
    %3688 = vmatpush1.msra.mxu0 %v3649
    %3689 = vmatprep.subr.mxu0 0.0
    %3690 = vmatpush1.msra.mxu0 0.0
    %3691 = vmatprep.subr.mxu0 0.0
    %3692 = vmatpush1.msra.mxu0 0.0
    %3693 = vmatprep.subr.mxu0 0.0
    %3694 = vmatpush1.msra.mxu0 0.0
    %3695 = vmatprep.subr.mxu0 0.0
    %3696 = vmatpush1.msra.mxu0 0.0
    %3697 = vmatprep.subr.mxu0 0.0
    %3698 = vmatpush1.msra.mxu0 0.0
    %3699 = vmatprep.subr.mxu0 0.0
    %3700 = vmatpush1.msra.mxu0 0.0
    %3701 = vmatprep.subr.mxu0 0.0
    %3702 = vmatpush1.msra.mxu0 0.0
    %3703 = vmatprep.subr.mxu0 0.0
    %3704 = vmatpush1.msra.mxu0 0.0
    %3705 = vmatprep.subr.mxu0 0.0
    %3706 = vmatpush1.msra.mxu0 0.0
    %3707 = vmatprep.subr.mxu0 0.0
    %3708 = vmatpush1.msra.mxu0 0.0
    %3709 = vmatprep.subr.mxu0 0.0
    %3710 = vmatpush1.msra.mxu0 0.0
    %3711 = vmatprep.subr.mxu0 0.0
    %3712 = vmatpush1.msra.mxu0 0.0
    %3713 = vmatprep.subr.mxu0 0.0
    %3714 = vmatpush1.msra.mxu0 0.0
    %3715 = vmatprep.subr.mxu0 0.0
    %3716 = vmatpush1.msra.mxu0 0.0
    %3717 = vmatprep.subr.mxu0 0.0
    %3718 = vmatpush1.msra.mxu0 0.0
    %3719 = vmatprep.subr.mxu0 0.0
    %3720 = vmatpush1.msra.mxu0 0.0
    %3721 = vmatprep.mubr.f32.mxu0 0.0
    %3722 = vmatmul.mubr.f32.gmra.mrb[0].mxu0 %v3626
    %v3723 = vpop.f32.mrb[0].mxu0
    %v3724 = vadd.f32 %v3655, %v3723
    %v3725 = vpop.f32.mrb[0].mxu0
    %3726 = vmatprep.mubr.f32.mxu0 0.0
    %3727 = vmatmul.mubr.f32.gmra.mrb[0].mxu0 %v3627
    %v3728 = vpop.f32.mrb[0].mxu0
    %v3729 = vadd.f32 %v3655, %v3728
    %v3730 = vpop.f32.mrb[0].mxu0
    %3731 = vmatprep.mubr.f32.mxu0 0.0
    %3732 = vmatmul.mubr.f32.gmra.mrb[0].mxu0 %v3628
    %v3733 = vpop.f32.mrb[0].mxu0
    %v3734 = vadd.f32 %v3655, %v3733
    %v3735 = vpop.f32.mrb[0].mxu0
    %3736 = vmatprep.mubr.f32.mxu0 0.0
    %3737 = vmatmul.mubr.f32.gmra.mrb[0].mxu0 %v3629
    %v3738 = vpop.f32.mrb[0].mxu0
    %v3739 = vadd.f32 %v3655, %v3738
    %v3740 = vpop.f32.mrb[0].mxu0
    %3741 = vmatprep.mubr.f32.mxu0 0.0
    %3742 = vmatmul.mubr.f32.gmra.mrb[0].mxu0 %v3630
    %v3743 = vpop.f32.mrb[0].mxu0
    %v3744 = vadd.f32 %v3655, %v3743
    %v3745 = vpop.f32.mrb[0].mxu0
    %3746 = vmatprep.mubr.f32.mxu0 0.0
    %3747 = vmatmul.mubr.f32.gmra.mrb[0].mxu0 %v3631
    %v3748 = vpop.f32.mrb[0].mxu0
    %v3749 = vadd.f32 %v3655, %v3748
    %v3750 = vpop.f32.mrb[0].mxu0
    %3751 = vmatprep.mubr.f32.mxu0 0.0
    %3752 = vmatmul.mubr.f32.gmra.mrb[0].mxu0 %v3632
    %v3753 = vpop.f32.mrb[0].mxu0
    %v3754 = vadd.f32 %v3655, %v3753
    %v3755 = vpop.f32.mrb[0].mxu0
    %3756 = vmatprep.mubr.f32.mxu0 0.0
    %3757 = vmatmul.mubr.f32.gmra.mrb[0].mxu0 %v3633
    %v3758 = vpop.f32.mrb[0].mxu0
    %v3759 = vadd.f32 %v3655, %v3758
    %v3760 = vpop.f32.mrb[0].mxu0
    %3761 = vdwg.mxu0
    %3762 = vst [vmem:[%s11] sm:$0xff] %v3724
    %3763 = vst [vmem:[%s11 + $0x8] sm:$0xff] %v3729
    %3764 = vst [vmem:[%s11 + $0x10] sm:$0xff] %v3734
    %3765 = vst [vmem:[%s11 + $0x18] sm:$0xff] %v3739
    %3766 = vst [vmem:[%s11 + $0x20] sm:$0xff] %v3744
    %3767 = vst [vmem:[%s11 + $0x28] sm:$0xff] %v3749
    %3768 = vst [vmem:[%s11 + $0x30] sm:$0xff] %v3754
    %3769 = vst [vmem:[%s11 + $0x38] sm:$0xff] %v3759
    // Predicated region
    $region62: #{_forward_impl.1} parent=1 // pred_check
      _
    $region63: #{_forward_impl.1} parent=1 // pred_check_branch
      %3771 = sbr.rel (0) target = $region65
    $region64: #{_forward_impl.1} parent=1 // pred_region
      _
    $region65: #{_forward_impl.1} parent=1 // pred_fallthru
      _
    // Predicated region
    $region66: #{_forward_impl.1} parent=1 // pred_check
      _
    $region67: #{_forward_impl.1} parent=1 // pred_check_branch
      %3773 = sbr.rel (0) target = $region69
    $region68: #{_forward_impl.1} parent=1 // pred_region
      _
    $region69: #{_forward_impl.1} parent=1 // pred_fallthru
      _
    // Predicated region
    $region70: #{_forward_impl.1} parent=1 // pred_check
      _
    $region71: #{_forward_impl.1} parent=1 // pred_check_branch
      %3775 = sbr.rel (0) target = $region73
    $region72: #{_forward_impl.1} parent=1 // pred_region
      _
    $region73: #{_forward_impl.1} parent=1 // pred_fallthru
      _
    // Predicated region
    $region74: #{_forward_impl.1} parent=1 // pred_check
      _
    $region75: #{_forward_impl.1} parent=1 // pred_check_branch
      %3777 = sbr.rel (0) target = $region77
    $region76: #{_forward_impl.1} parent=1 // pred_region
      _
    $region77: #{_forward_impl.1} parent=1 // pred_fallthru
      _
    // Predicated region
    $region78: #{_forward_impl.1} parent=1 // pred_check
      _
    $region79: #{_forward_impl.1} parent=1 // pred_check_branch
      %3779 = sbr.rel (0) target = $region81
    $region80: #{_forward_impl.1} parent=1 // pred_region
      _
    $region81: #{_forward_impl.1} parent=1 // pred_fallthru
      _
    // Predicated region
    $region82: #{_forward_impl.1} parent=1 // pred_check
      _
    $region83: #{_forward_impl.1} parent=1 // pred_check_branch
      %3781 = sbr.rel (0) target = $region85
    $region84: #{_forward_impl.1} parent=1 // pred_region
      _
    $region85: #{_forward_impl.1} parent=1 // pred_fallthru
      _
    %3782 = vsyncpa [#allocation5], 1
    %3783 = vsyncpa [#allocation7], 1
    %3784 = vsyncpa [#allocation10], 1

</llo_original>
